<compile_context>
chip_gen: v5e
topology: v5e:2x2
jax: 0.10.0
libtpu: 0.0.40
codegen_flags: <defaults>
</compile_context>

<pallas_src>
import jax
import jax.numpy as jnp
from jax import lax
from jax.experimental import pallas as pl
from jax.experimental.pallas import tpu as pltpu

D_IN, H, D_OUT = 30522, 32, 3
B_PAD = 8                    # pad batch rows to sublane width
LANE = 128                   # lane-dense logits block width
TK = 15360                   # reduction tile over D_in (multiple of 128)
K_STEPS = 2                  # TK * K_STEPS >= D_IN
K_PAD = TK * K_STEPS         # 30720


def _head_kernel(x_ref, w1t_ref, b1_ref, w2_ref, b2_ref, out_ref, acc_ref):
    """Fused classifier head: ReLU -> Linear1 (K-tiled) -> ReLU -> Linear2.

    x_ref   : (B_PAD, TK)    bf16 CLS-feature tile
    w1t_ref : (H, TK)        bf16 W1 tile, lane-dense PyTorch (out, in) layout
    b1_ref  : (1, H)         f32 Linear1 bias
    w2_ref  : (H, LANE)      f32 W2, zero-padded to 128 lanes
    b2_ref  : (1, LANE)      f32 Linear2 bias, zero-padded to 128 lanes
    out_ref : (B_PAD, LANE)  f32 padded logits (cols 0..2 valid)
    acc_ref : (B_PAD, H)     f32 hidden accumulator scratch
    """
    k = pl.program_id(0)

    @pl.when(k == 0)
    def _():
        acc_ref[...] = jnp.zeros_like(acc_ref)

    # Dropout(0.1) -> identity (eval), then ReLU on the CLS features.
    x = jnp.maximum(x_ref[...], 0.0)
    # Contract both operands on their last (lane) dim: (B_PAD,TK) x (H,TK) -> (B_PAD,H)
    acc_ref[...] += lax.dot_general(
        x, w1t_ref[...],
        dimension_numbers=(((1,), (1,)), ((), ())),
        preferred_element_type=jnp.float32)

    @pl.when(k == pl.num_programs(0) - 1)
    def _():
        # Linear1 bias + ReLU, Dropout -> identity, then Linear2 into the
        # lane-dense (B_PAD, 128) logits block.
        h = jnp.maximum(acc_ref[...] + b1_ref[...], 0.0)
        out_ref[...] = jnp.dot(
            h, w2_ref[...], preferred_element_type=jnp.float32) + b2_ref[...]


_COST = pl.CostEstimate(
    flops=2 * B_PAD * K_PAD * H + 2 * B_PAD * H * LANE,
    transcendentals=0,
    bytes_accessed=(B_PAD * K_PAD * 2) + (H * K_PAD * 2)
                   + (H * 4) + (H * LANE * 4) + (LANE * 4)
                   + (B_PAD * LANE * 4),
)

_head = pl.pallas_call(
    _head_kernel,
    out_shape=jax.ShapeDtypeStruct((B_PAD, LANE), jnp.float32),
    grid_spec=pltpu.PrefetchScalarGridSpec(
        num_scalar_prefetch=0,
        grid=(K_STEPS,),                                   # reduction axis only
        in_specs=[
            pl.BlockSpec((B_PAD, TK), lambda k: (0, k)),   # x tile
            pl.BlockSpec((H, TK), lambda k: (0, k)),       # W1 tile
            pl.BlockSpec((1, H), lambda k: (0, 0)),        # b1 (resident)
            pl.BlockSpec((H, LANE), lambda k: (0, 0)),     # W2 padded (resident)
            pl.BlockSpec((1, LANE), lambda k: (0, 0)),     # b2 padded (resident)
        ],
        out_specs=pl.BlockSpec((B_PAD, LANE), lambda k: (0, 0)),
        scratch_shapes=[pltpu.VMEM((B_PAD, H), jnp.float32)],
    ),
    compiler_params=pltpu.CompilerParams(
        dimension_semantics=("arbitrary",)),
    cost_estimate=_COST,
)


def prepare_classifier_params(w1, b1, w2, b2):
    """One-time setup: W1 -> lane-dense (H, K_PAD) bf16; W2/b2 -> 128-lane pads."""
    w1t = jnp.zeros((H, K_PAD), jnp.bfloat16).at[:, :D_IN].set(
        w1.T.astype(jnp.bfloat16))
    b1r = b1.reshape(1, H).astype(jnp.float32)
    w2p = jnp.zeros((H, LANE), jnp.float32).at[:, :D_OUT].set(
        w2.astype(jnp.float32))
    b2r = jnp.zeros((1, LANE), jnp.float32).at[:, :D_OUT].set(
        b2.astype(jnp.float32))
    return {"w1t": w1t, "b1r": b1r, "w2p": w2p, "b2r": b2r}


def classifier_head(cls_features, prep):
    """cls_features: (B, D_IN) f32. Returns (B, D_OUT) f32 logits."""
    B, d_in = cls_features.shape
    assert d_in == D_IN
    assert B <= B_PAD, f"batch {B} > B_PAD={B_PAD}: add a batch-tiling path"
    # Cast then pad only the batch/K tails (zero pads are inert: ReLU(0)=0 and
    # W1's K-tail is zero-padded at setup).
    x = jnp.pad(cls_features.astype(jnp.bfloat16),
                ((0, B_PAD - B), (0, K_PAD - D_IN)))
    logits_pad = _head(x, prep["w1t"], prep["b1r"], prep["w2p"], prep["b2r"])
    return logits_pad[:B, :D_OUT]


def fake_bert_cls(input_ids, attention_mask, emb_table):
    # TODO(synk): stand-in for the checkpointed MLM BERT; returns outputs[0][:, 0, :].
    cls = emb_table[input_ids[:, 0]]                      # (B, D_IN)
    cls = cls * attention_mask[:, :1].astype(cls.dtype)   # touch the mask deterministically
    return cls


def bert_classifier_forward(input_ids, attention_mask, params, prep):
    cls_features = fake_bert_cls(input_ids, attention_mask, params["emb"])
    return classifier_head(cls_features, prep)


if __name__ == "__main__":
    key = jax.random.PRNGKey(0)
    k_emb, k_w1, k_b1, k_w2, k_b2, k_ids = jax.random.split(key, 6)

    B, SEQ, VOCAB_STUB = 2, 8, 64

    params = {
        "emb": jax.random.normal(k_emb, (VOCAB_STUB, D_IN), jnp.float32) * 0.02,
        "w1": jax.random.normal(k_w1, (D_IN, H), jnp.float32) * 0.02,
        "b1": jax.random.normal(k_b1, (H,), jnp.float32) * 0.02,
        "w2": jax.random.normal(k_w2, (H, D_OUT), jnp.float32) * 0.02,
        "b2": jax.random.normal(k_b2, (D_OUT,), jnp.float32) * 0.02,
    }
    # One-time weight prep (transpose/pad/cast) — not repeated per forward call.
    prep = prepare_classifier_params(params["w1"], params["b1"],
                                     params["w2"], params["b2"])
    prep = jax.tree_util.tree_map(jax.block_until_ready, prep)

    input_ids = jax.random.randint(k_ids, (B, SEQ), 0, VOCAB_STUB, jnp.int32)
    attention_mask = jnp.ones((B, SEQ), jnp.int32)

    logits = bert_classifier_forward(input_ids, attention_mask, params, prep)
    logits = jax.block_until_ready(logits)

    # Pure-JAX f32 reference for the classifier head (dropout = identity in eval).
    cls = fake_bert_cls(input_ids, attention_mask, params["emb"])
    ref = jnp.maximum(cls, 0.0) @ params["w1"] + params["b1"]
    ref = jnp.maximum(ref, 0.0) @ params["w2"] + params["b2"]

    assert logits.shape == (B, D_OUT)
    # bf16 weights/activations with f32 accumulation: slightly looser atol.
    assert jnp.allclose(logits, ref, atol=2e-3, rtol=2e-3)
    print("KERNEL_OK")
</pallas_src>

<mosaic_0001>
module attributes {stable_mosaic.version = 11 : i64} {
  func.func @_head_kernel(%arg0: i32, %arg1: memref<8x15360xbf16, #tpu.memory_space<vmem>>, %arg2: memref<32x15360xbf16, #tpu.memory_space<vmem>>, %arg3: memref<1x32xf32, #tpu.memory_space<vmem>>, %arg4: memref<32x128xf32, #tpu.memory_space<vmem>>, %arg5: memref<1x128xf32, #tpu.memory_space<vmem>>, %arg6: memref<8x128xf32, #tpu.memory_space<vmem>>, %arg7: memref<8x32xf32, #tpu.memory_space<vmem>>) attributes {dimension_semantics = [#tpu.dimension_semantics<arbitrary>], iteration_bounds = array<i64: 2>, scalar_prefetch = 0 : i64, scratch_operands = 1 : i64, tpu.core_type = #tpu.core_type<tc>, window_params = [{transform_indices = @transform_0, window_bounds = array<i64: 8, 15360>}, {transform_indices = @transform_1, window_bounds = array<i64: 32, 15360>}, {pipeline_mode = #tpu.pipeline_mode<synchronous>, transform_indices = @transform_2, window_bounds = array<i64: 1, 32>}, {pipeline_mode = #tpu.pipeline_mode<synchronous>, transform_indices = @transform_3, window_bounds = array<i64: 32, 128>}, {pipeline_mode = #tpu.pipeline_mode<synchronous>, transform_indices = @transform_4, window_bounds = array<i64: 1, 128>}, {pipeline_mode = #tpu.pipeline_mode<synchronous>, transform_indices = @transform_5, window_bounds = array<i64: 8, 128>}]} {
    %c0_i32 = arith.constant 0 : i32
    %0 = arith.cmpi eq, %arg0, %c0_i32 : i32
    %1 = arith.extui %0 : i1 to i32
    %c0_i32_0 = arith.constant 0 : i32
    %2 = arith.cmpi ne, %1, %c0_i32_0 : i32
    scf.if %2 {
      %cst_10 = arith.constant 0.000000e+00 : f32
      %14 = vector.broadcast %cst_10 : f32 to vector<8x32xf32>
      %c0_11 = arith.constant 0 : index
      %c0_12 = arith.constant 0 : index
      %15 = vector.load %arg7[%c0_11, %c0_12] : memref<8x32xf32, #tpu.memory_space<vmem>>, vector<8x32xf32>
      tpu.vector_store %arg7[%c0_11, %c0_12], %14 {strides = array<i32>} : memref<8x32xf32, #tpu.memory_space<vmem>>, vector<8x32xf32>,
    } else {
    }
    %c0 = arith.constant 0 : index
    %c0_1 = arith.constant 0 : index
    %3 = vector.load %arg1[%c0, %c0_1] : memref<8x15360xbf16, #tpu.memory_space<vmem>>, vector<8x15360xbf16>
    %cst = arith.constant 0.000000e+00 : bf16
    %4 = vector.broadcast %cst : bf16 to vector<8x15360xbf16>
    %5 = arith.maximumf %3, %4 : vector<8x15360xbf16>
    %c0_2 = arith.constant 0 : index
    %c0_3 = arith.constant 0 : index
    %6 = vector.load %arg7[%c0_2, %c0_3] : memref<8x32xf32, #tpu.memory_space<vmem>>, vector<8x32xf32>
    %c0_4 = arith.constant 0 : index
    %c0_5 = arith.constant 0 : index
    %7 = vector.load %arg2[%c0_4, %c0_5] : memref<32x15360xbf16, #tpu.memory_space<vmem>>, vector<32x15360xbf16>
    %cst_6 = arith.constant dense<0.000000e+00> : vector<8x32xf32>
    %8 = tpu.matmul %5, %7, %cst_6 {dimension_numbers = #tpu.dot_dimension_numbers<[1], [1], [0], [0], [0, 0, 1, 0], [], []>} : vector<8x15360xbf16>, vector<32x15360xbf16>, vector<8x32xf32> -> vector<8x32xf32>
    %9 = arith.addf %6, %8 : vector<8x32xf32>
    %c0_7 = arith.constant 0 : index
    %c0_8 = arith.constant 0 : index
    %10 = vector.load %arg7[%c0_7, %c0_8] : memref<8x32xf32, #tpu.memory_space<vmem>>, vector<8x32xf32>
    tpu.vector_store %arg7[%c0_7, %c0_8], %9 {strides = array<i32>} : memref<8x32xf32, #tpu.memory_space<vmem>>, vector<8x32xf32>,
    %c1_i32 = arith.constant 1 : i32
    %11 = arith.cmpi eq, %arg0, %c1_i32 : i32
    %12 = arith.extui %11 : i1 to i32
    %c0_i32_9 = arith.constant 0 : i32
    %13 = arith.cmpi ne, %12, %c0_i32_9 : i32
    scf.if %13 {
      %c0_10 = arith.constant 0 : index
      %c0_11 = arith.constant 0 : index
      %14 = vector.load %arg7[%c0_10, %c0_11] : memref<8x32xf32, #tpu.memory_space<vmem>>, vector<8x32xf32>
      %c0_12 = arith.constant 0 : index
      %c0_13 = arith.constant 0 : index
      %15 = vector.load %arg3[%c0_12, %c0_13] : memref<1x32xf32, #tpu.memory_space<vmem>>, vector<1x32xf32>
      %16 = vector.broadcast %15 : vector<1x32xf32> to vector<8x32xf32>
      %17 = arith.addf %14, %16 : vector<8x32xf32>
      %cst_14 = arith.constant 0.000000e+00 : f32
      %18 = vector.broadcast %cst_14 : f32 to vector<8x32xf32>
      %19 = arith.maximumf %17, %18 : vector<8x32xf32>
      %c0_15 = arith.constant 0 : index
      %c0_16 = arith.constant 0 : index
      %20 = vector.load %arg4[%c0_15, %c0_16] : memref<32x128xf32, #tpu.memory_space<vmem>>, vector<32x128xf32>
      %cst_17 = arith.constant dense<0.000000e+00> : vector<8x128xf32>
      %21 = tpu.matmul %19, %20, %cst_17 {dimension_numbers = #tpu.dot_dimension_numbers<[1], [0], [0], [1], [0, 0, 1, 1], [], []>} : vector<8x32xf32>, vector<32x128xf32>, vector<8x128xf32> -> vector<8x128xf32>
      %c0_18 = arith.constant 0 : index
      %c0_19 = arith.constant 0 : index
      %22 = vector.load %arg5[%c0_18, %c0_19] : memref<1x128xf32, #tpu.memory_space<vmem>>, vector<1x128xf32>
      %23 = vector.broadcast %22 : vector<1x128xf32> to vector<8x128xf32>
      %24 = arith.addf %21, %23 : vector<8x128xf32>
      %c0_20 = arith.constant 0 : index
      %c0_21 = arith.constant 0 : index
      %25 = vector.load %arg6[%c0_20, %c0_21] : memref<8x128xf32, #tpu.memory_space<vmem>>, vector<8x128xf32>
      tpu.vector_store %arg6[%c0_20, %c0_21], %24 {strides = array<i32>} : memref<8x128xf32, #tpu.memory_space<vmem>>, vector<8x128xf32>,
    } else {
    }
    return
  }
  func.func @transform_0(%arg0: i32) -> (i32, i32) {
    %c0_i32 = arith.constant 0 : i32
    %c0_i32_0 = arith.constant 0 : i32
    return %c0_i32, %arg0 : i32, i32
  }
  func.func @transform_1(%arg0: i32) -> (i32, i32) {
    %c0_i32 = arith.constant 0 : i32
    %c0_i32_0 = arith.constant 0 : i32
    return %c0_i32, %arg0 : i32, i32
  }
  func.func @transform_2(%arg0: i32) -> (i32, i32) {
    %c0_i32 = arith.constant 0 : i32
    %c0_i32_0 = arith.constant 0 : i32
    %c0_i32_1 = arith.constant 0 : i32
    return %c0_i32, %c0_i32_0 : i32, i32
  }
  func.func @transform_3(%arg0: i32) -> (i32, i32) {
    %c0_i32 = arith.constant 0 : i32
    %c0_i32_0 = arith.constant 0 : i32
    %c0_i32_1 = arith.constant 0 : i32
    return %c0_i32, %c0_i32_0 : i32, i32
  }
  func.func @transform_4(%arg0: i32) -> (i32, i32) {
    %c0_i32 = arith.constant 0 : i32
    %c0_i32_0 = arith.constant 0 : i32
    %c0_i32_1 = arith.constant 0 : i32
    return %c0_i32, %c0_i32_0 : i32, i32
  }
  func.func @transform_5(%arg0: i32) -> (i32, i32) {
    %c0_i32 = arith.constant 0 : i32
    %c0_i32_0 = arith.constant 0 : i32
    %c0_i32_1 = arith.constant 0 : i32
    return %c0_i32, %c0_i32_0 : i32, i32
  }
}

</mosaic_0001>

<llo_original>
// kernel: tpu_custom_call.1
$region0: #{tpu_custom_call.1}
  #allocation0 [shape = 'u32[]', space=smem, size = 0x4, offset = 0x4, fixed_abs, tag = 'smem constant byte address 0x4 - core index']
  #allocation1 [shape = 'u32[72,128]{1,0:T(1,128)}', space=vmem, size = 0x9000, scoped, tag = 'internal scratch']
  #allocation2 [shape = 'f32[8,32]{1,0:T(8,128)}', space=vmem, size = 0x1000, scoped, tag = 'scratch operand']
  %s0 = inlined_call_operand.hbm [shape: bf16[8,30720], index: 0, kind: input, shape index: {}]
  %s1 = inlined_call_operand.hbm [shape: bf16[32,30720], index: 1, kind: input, shape index: {}]
  %s2 = inlined_call_operand.hbm [shape: f32[1,32], index: 2, kind: input, shape index: {}]
  %s3 = inlined_call_operand.hbm [shape: f32[32,128], index: 3, kind: input, shape index: {}]
  %s4 = inlined_call_operand.hbm [shape: f32[1,128], index: 4, kind: input, shape index: {}]
  %s5 = inlined_call_operand.hbm [shape: f32[8,128], index: 5, kind: output, shape index: {}]
  %s6 = sld [smem:[#allocation0]]
  $region81: #{tpu_custom_call.1} parent=0
    _
  %s8 = ssub.s32 1, %s6
  %s9 = scalar_select 0, %s8, %s6
  $region1: #{tpu_custom_call.1} parent=0
    #allocation3 [shape = 'u8[491520]{0}', space=vmem, size = 0x78000, scoped, tag = 'input window, operand 0']
    #allocation4 [shape = 's32[2]{0}', space=sflag, size = 0x8, scoped, tag = 'scoped memory for tpu_custom_call.1']
    #allocation5 [shape = 's32[2]{0}', space=sflag, size = 0x8, scoped, tag = 'scoped memory for tpu_custom_call.1']
    #allocation6 [shape = 'u8[1966080]{0}', space=vmem, size = 0x1e0000, scoped, tag = 'input window, operand 1']
    #allocation7 [shape = 's32[2]{0}', space=sflag, size = 0x8, scoped, tag = 'scoped memory for tpu_custom_call.1']
    #allocation8 [shape = 'u8[512]{0}', space=vmem, size = 0x400, scoped, tag = 'input window, operand 2, single buffered']
    #allocation9 [shape = 'u8[16384]{0}', space=vmem, size = 0x4000, scoped, tag = 'input window, operand 3, single buffered']
    #allocation10 [shape = 's32[1]{0}', space=sflag, size = 0x4, scoped, tag = 'scoped memory for tpu_custom_call.1']
    #allocation11 [shape = 'u8[512]{0}', space=vmem, size = 0x400, scoped, tag = 'input window, operand 4, single buffered']
    #allocation12 [shape = 'u8[4096]{0}', space=vmem, size = 0x1000, scoped, tag = 'output window, operand 0, single buffered']
    %10 = vsyncpa [#allocation4], 0
    %s11 = scalar_lea.sflag [#allocation4], 1
    %12 = vsyncpa %s11, 0
    %13 = vsyncpa [#allocation7], 0
    %s14 = scalar_lea.sflag [#allocation7], 1
    %15 = vsyncpa %s14, 0
    %16 = vsyncpa [#allocation10], 0
    %17 = vsyncpa [#allocation5], 0
    loop: start=0, step=1, limit=4
    $region2: #{tpu_custom_call.1} parent=1 // loop_pre_header
      _
    $region3: #{tpu_custom_call.1} parent=1 // loop_header
      %s19 = sphi 0, %s23
      %p20 = scmp.ge.s32.totalorder %s19, 4
      %s29 = sphi 0, %s31
      %s32 = sphi 0, %s29
      %s33 = sphi 0, %s32
      %s49 = sphi 0, %s33
      %s55 = sphi 0, %s57
      %s58 = sphi 0, %s55
      %s59 = sphi 0, %s58
      %s75 = sphi 0, %s59
      %s79 = sphi 0, %s79
      %s81 = sphi 0, %s79
      %s82 = sphi 0, %s81
      %s96 = sphi 0, %s82
      %s100 = sphi 0, %s100
      %s102 = sphi 0, %s100
      %s103 = sphi 0, %s102
      %s117 = sphi 0, %s103
      %s121 = sphi 0, %s121
      %s123 = sphi 0, %s121
      %s124 = sphi 0, %s123
      %s138 = sphi 0, %s124
      %s142 = sphi 0, %s142
      %s144 = sphi 0, %s142
      %s145 = sphi 0, %s144
      %s159 = sphi 0, %s145
    $region4: #{tpu_custom_call.1} parent=1 // loop_header_branch
      %22 = sbr.rel (%p20) target = $region8
    $region5: #{tpu_custom_call.1} parent=1 // loop_body
      %s24 = ssub.s32 %s19, 1
      %s25 = ssub.s32 %s19, 2
      %s26 = sadd.s32 %s19, 1
      %s27 = ssub.s32 %s19, %s26
      %p28 = scmp.eq.s32.totalorder %s27, 0
      %s30 = sadd.s32 %s29, 1
      %s31 = scalar_select %p28, %s29, %s30
      %p34 = pneg %p28
      %p35 = scmp.eq.s32.totalorder %s19, 1
      %p36 = por %p34, %p35
      %p37 = scmp.ne.s32.totalorder %s29, %s32
      %p38 = scmp.eq.s32.totalorder %s19, 0
      %p39 = por %p37, %p38
      %p40 = scmp.ne.s32.totalorder %s29, %s32
      %p41 = scmp.eq.s32.totalorder %s24, 1
      %p42 = por %p40, %p41
      %p43 = scmp.ne.s32.totalorder %s32, %s33
      %p44 = scmp.eq.s32.totalorder %s24, 0
      %p45 = por %p43, %p44
      %p46 = scmp.ne.s32.totalorder %s32, %s33
      %p47 = scmp.eq.s32.totalorder %s25, 1
      %p48 = por %p46, %p47
      %p50 = scmp.ne.s32.totalorder %s33, %s49
      %p51 = scmp.eq.s32.totalorder %s25, 0
      %p52 = por %p50, %p51
      %s53 = ssub.s32 %s19, %s26
      %p54 = scmp.eq.s32.totalorder %s53, 0
      %s56 = sadd.s32 %s55, 1
      %s57 = scalar_select %p54, %s55, %s56
      %p60 = pneg %p54
      %p61 = scmp.eq.s32.totalorder %s19, 1
      %p62 = por %p60, %p61
      %p63 = scmp.ne.s32.totalorder %s55, %s58
      %p64 = scmp.eq.s32.totalorder %s19, 0
      %p65 = por %p63, %p64
      %p66 = scmp.ne.s32.totalorder %s55, %s58
      %p67 = scmp.eq.s32.totalorder %s24, 1
      %p68 = por %p66, %p67
      %p69 = scmp.ne.s32.totalorder %s58, %s59
      %p70 = scmp.eq.s32.totalorder %s24, 0
      %p71 = por %p69, %p70
      %p72 = scmp.ne.s32.totalorder %s58, %s59
      %p73 = scmp.eq.s32.totalorder %s25, 1
      %p74 = por %p72, %p73
      %p76 = scmp.ne.s32.totalorder %s59, %s75
      %p77 = scmp.eq.s32.totalorder %s25, 0
      %p78 = por %p76, %p77
      %s80 = sadd.s32 %s79, 1
      %p83 = scmp.eq.s32.totalorder %s19, 1
      %p84 = scmp.ne.s32.totalorder %s79, %s81
      %p85 = scmp.eq.s32.totalorder %s19, 0
      %p86 = por %p84, %p85
      %p87 = scmp.ne.s32.totalorder %s79, %s81
      %p88 = scmp.eq.s32.totalorder %s24, 1
      %p89 = por %p87, %p88
      %p90 = scmp.ne.s32.totalorder %s81, %s82
      %p91 = scmp.eq.s32.totalorder %s24, 0
      %p92 = por %p90, %p91
      %p93 = scmp.ne.s32.totalorder %s81, %s82
      %p94 = scmp.eq.s32.totalorder %s25, 1
      %p95 = por %p93, %p94
      %p97 = scmp.ne.s32.totalorder %s82, %s96
      %p98 = scmp.eq.s32.totalorder %s25, 0
      %p99 = por %p97, %p98
      %s101 = sadd.s32 %s100, 1
      %p104 = scmp.eq.s32.totalorder %s19, 1
      %p105 = scmp.ne.s32.totalorder %s100, %s102
      %p106 = scmp.eq.s32.totalorder %s19, 0
      %p107 = por %p105, %p106
      %p108 = scmp.ne.s32.totalorder %s100, %s102
      %p109 = scmp.eq.s32.totalorder %s24, 1
      %p110 = por %p108, %p109
      %p111 = scmp.ne.s32.totalorder %s102, %s103
      %p112 = scmp.eq.s32.totalorder %s24, 0
      %p113 = por %p111, %p112
      %p114 = scmp.ne.s32.totalorder %s102, %s103
      %p115 = scmp.eq.s32.totalorder %s25, 1
      %p116 = por %p114, %p115
      %p118 = scmp.ne.s32.totalorder %s103, %s117
      %p119 = scmp.eq.s32.totalorder %s25, 0
      %p120 = por %p118, %p119
      %s122 = sadd.s32 %s121, 1
      %p125 = scmp.eq.s32.totalorder %s19, 1
      %p126 = scmp.ne.s32.totalorder %s121, %s123
      %p127 = scmp.eq.s32.totalorder %s19, 0
      %p128 = por %p126, %p127
      %p129 = scmp.ne.s32.totalorder %s121, %s123
      %p130 = scmp.eq.s32.totalorder %s24, 1
      %p131 = por %p129, %p130
      %p132 = scmp.ne.s32.totalorder %s123, %s124
      %p133 = scmp.eq.s32.totalorder %s24, 0
      %p134 = por %p132, %p133
      %p135 = scmp.ne.s32.totalorder %s123, %s124
      %p136 = scmp.eq.s32.totalorder %s25, 1
      %p137 = por %p135, %p136
      %p139 = scmp.ne.s32.totalorder %s124, %s138
      %p140 = scmp.eq.s32.totalorder %s25, 0
      %p141 = por %p139, %p140
      %s143 = sadd.s32 %s142, 1
      %p146 = scmp.eq.s32.totalorder %s19, 1
      %p147 = scmp.ne.s32.totalorder %s142, %s144
      %p148 = scmp.eq.s32.totalorder %s19, 0
      %p149 = por %p147, %p148
      %p150 = scmp.ne.s32.totalorder %s142, %s144
      %p151 = scmp.eq.s32.totalorder %s24, 1
      %p152 = por %p150, %p151
      %p153 = scmp.ne.s32.totalorder %s144, %s145
      %p154 = scmp.eq.s32.totalorder %s24, 0
      %p155 = por %p153, %p154
      %p156 = scmp.ne.s32.totalorder %s144, %s145
      %p157 = scmp.eq.s32.totalorder %s25, 1
      %p158 = por %p156, %p157
      %p160 = scmp.ne.s32.totalorder %s145, %s159
      %p161 = scmp.eq.s32.totalorder %s25, 0
      %p162 = por %p160, %p161
      %p163 = scmp.le.s32.totalorder 1, %s19
      %p164 = scmp.lt.s32.totalorder %s19, 3
      %p165 = pnand %p163, %p164
      %p166 = pneg %p165
      // Predicated region
      $region9: #{tpu_custom_call.1} parent=5 // pred_check
        _
      $region10: #{tpu_custom_call.1} parent=5 // pred_check_branch
        %168 = sbr.rel (%p165) target = $region12
      $region11: #{tpu_custom_call.1} parent=5 // pred_region
        %s169 = ssub.s32 %s19, 1
        // Predicated region
        $region13: #{tpu_custom_call.1} parent=11 // pred_check
          %p170 = pneg %p92
        $region14: #{tpu_custom_call.1} parent=11 // pred_check_branch
          %172 = sbr.rel (%p170) target = $region16
        $region15: #{tpu_custom_call.1} parent=11 // pred_region
          %174 = vsyncadd [#allocation7], 0
          %s176 = sshll.u32 %s2, 4
          %s177 = int_to_ptr.hbm [resolvable:$true] %s176
          %s178 = sshll.u32 [#allocation8], 4
          %s179 = int_to_ptr.vmem [resolvable:$true] %s178
          %181 = dma.hbm_to_vmem [thread:$0]  %s177, 16, %s179, [#allocation7]
        $region16: #{tpu_custom_call.1} parent=11 // pred_fallthru
          _
        // Predicated region
        $region17: #{tpu_custom_call.1} parent=11 // pred_check
          %p182 = pneg %p113
        $region18: #{tpu_custom_call.1} parent=11 // pred_check_branch
          %184 = sbr.rel (%p182) target = $region20
        $region19: #{tpu_custom_call.1} parent=11 // pred_region
          %186 = vsyncadd [#allocation10], 0
          %s187 = sshll.u32 %s3, 4
          %s188 = int_to_ptr.hbm [resolvable:$true] %s187
          %s189 = sshll.u32 [#allocation9], 4
          %s190 = int_to_ptr.vmem [resolvable:$true] %s189
          %195 = dma.hbm_to_vmem [thread:$0]  %s188, 512, %s190, [#allocation10], 128, 128, 8
        $region20: #{tpu_custom_call.1} parent=11 // pred_fallthru
          _
        // Predicated region
        $region21: #{tpu_custom_call.1} parent=11 // pred_check
          %p196 = pneg %p134
        $region22: #{tpu_custom_call.1} parent=11 // pred_check_branch
          %198 = sbr.rel (%p196) target = $region24
        $region23: #{tpu_custom_call.1} parent=11 // pred_region
          %200 = vsyncadd [#allocation10], 0
          %s202 = sshll.u32 %s4, 4
          %s203 = int_to_ptr.hbm [resolvable:$true] %s202
          %s204 = sshll.u32 [#allocation11], 4
          %s205 = int_to_ptr.vmem [resolvable:$true] %s204
          %207 = dma.hbm_to_vmem [thread:$0]  %s203, 16, %s205, [#allocation10]
        $region24: #{tpu_custom_call.1} parent=11 // pred_fallthru
          _
      $region12: #{tpu_custom_call.1} parent=5 // pred_fallthru
        _
      %p208 = scmp.lt.s32.totalorder %s19, 2
      // Predicated region
      $region25: #{tpu_custom_call.1} parent=5 // pred_check
        %p209 = pneg %p208
      $region26: #{tpu_custom_call.1} parent=5 // pred_check_branch
        %211 = sbr.rel (%p209) target = $region28
      $region27: #{tpu_custom_call.1} parent=5 // pred_region
        // Predicated region
        $region29: #{tpu_custom_call.1} parent=27 // pred_check
          %p212 = pneg %p39
        $region30: #{tpu_custom_call.1} parent=27 // pred_check_branch
          %214 = sbr.rel (%p212) target = $region32
        $region31: #{tpu_custom_call.1} parent=27 // pred_region
          %s215 = sand.u32 %s29, 1
          %s216 = scalar_lea.sflag [#allocation4], %s215
          %s217 = sand.u32 %s29, 1
          %s218 = smul.addr %s217, 480
          %s219 = scalar_lea.vmem [#allocation3], %s218
          %s220 = smul.u32 120, %s19
          %222 = vsyncadd %s216, 0
          %s223 = smul.addr %s220, 4
          %s224 = scalar_lea.hbm %s0, %s223
          %s226 = sshll.u32 %s224, 4
          %s227 = int_to_ptr.hbm [resolvable:$true] %s226
          %s228 = sshll.u32 %s219, 4
          %s229 = int_to_ptr.vmem [resolvable:$true] %s228
          %231 = dma.hbm_to_vmem [thread:$0]  %s227, 7680, %s229, %s216
        $region32: #{tpu_custom_call.1} parent=27 // pred_fallthru
          _
        // Predicated region
        $region33: #{tpu_custom_call.1} parent=27 // pred_check
          %p232 = pneg %p65
        $region34: #{tpu_custom_call.1} parent=27 // pred_check_branch
          %234 = sbr.rel (%p232) target = $region36
        $region35: #{tpu_custom_call.1} parent=27 // pred_region
          %s235 = sand.u32 %s19, 1
          %s236 = scalar_lea.sflag [#allocation7], %s235
          %s237 = sand.u32 %s55, 1
          %s238 = smul.addr %s237, 1920
          %s239 = scalar_lea.vmem [#allocation6], %s238
          %s240 = smul.u32 120, %s19
          %242 = vsyncadd %s236, 0
          %s243 = smul.addr %s240, 4
          %s244 = scalar_lea.hbm %s1, %s243
          %s245 = sshll.u32 %s244, 4
          %s246 = int_to_ptr.hbm [resolvable:$true] %s245
          %s247 = sshll.u32 %s239, 4
          %s248 = int_to_ptr.vmem [resolvable:$true] %s247
          %253 = dma.hbm_to_vmem [thread:$0]  %s246, 30720, %s248, %s236, 15360, 7680, 480
        $region36: #{tpu_custom_call.1} parent=27 // pred_fallthru
          _
      $region28: #{tpu_custom_call.1} parent=5 // pred_fallthru
        _
      %p254 = scmp.le.s32.totalorder 1, %s19
      %p255 = scmp.lt.s32.totalorder %s19, 3
      %p256 = pnand %p254, %p255
      %p257 = pneg %p256
      // Predicated region
      $region37: #{tpu_custom_call.1} parent=5 // pred_check
        _
      $region38: #{tpu_custom_call.1} parent=5 // pred_check_branch
        %259 = sbr.rel (%p256) target = $region40
      $region39: #{tpu_custom_call.1} parent=5 // pred_region
        %s260 = ssub.s32 %s19, 1
        %s261 = sand.u32 %s32, 1
        %s262 = scalar_lea.sflag [#allocation4], %s261
        %s263 = sand.u32 %s32, 1
        %s264 = smul.addr %s263, 480
        %s265 = scalar_lea.vmem [#allocation3], %s264
        // Predicated region
        $region41: #{tpu_custom_call.1} parent=39 // pred_check
          %p266 = pneg %p45
        $region42: #{tpu_custom_call.1} parent=39 // pred_check_branch
          %268 = sbr.rel (%p266) target = $region44
        $region43: #{tpu_custom_call.1} parent=39 // pred_region
          %270 = dma.done %s262, 7680
        $region44: #{tpu_custom_call.1} parent=39 // pred_fallthru
          _
        %s271 = sand.u32 %s24, 1
        %s272 = scalar_lea.sflag [#allocation7], %s271
        %s273 = sand.u32 %s58, 1
        %s274 = smul.addr %s273, 1920
        %s275 = scalar_lea.vmem [#allocation6], %s274
        // Predicated region
        $region45: #{tpu_custom_call.1} parent=39 // pred_check
          %p276 = pneg %p71
        $region46: #{tpu_custom_call.1} parent=39 // pred_check_branch
          %278 = sbr.rel (%p276) target = $region48
        $region47: #{tpu_custom_call.1} parent=39 // pred_region
          %280 = dma.done %s272, 30720
        $region48: #{tpu_custom_call.1} parent=39 // pred_fallthru
          _
        // Predicated region
        $region49: #{tpu_custom_call.1} parent=39 // pred_check
          %p281 = pneg %p92
        $region50: #{tpu_custom_call.1} parent=39 // pred_check_branch
          %283 = sbr.rel (%p281) target = $region52
        $region51: #{tpu_custom_call.1} parent=39 // pred_region
          %285 = dma.done [#allocation7], 16
        $region52: #{tpu_custom_call.1} parent=39 // pred_fallthru
          _
        // Predicated region
        $region53: #{tpu_custom_call.1} parent=39 // pred_check
          %p286 = pneg %p113
        $region54: #{tpu_custom_call.1} parent=39 // pred_check_branch
          %288 = sbr.rel (%p286) target = $region56
        $region55: #{tpu_custom_call.1} parent=39 // pred_region
          %290 = dma.done [#allocation10], 512
        $region56: #{tpu_custom_call.1} parent=39 // pred_fallthru
          _
        // Predicated region
        $region57: #{tpu_custom_call.1} parent=39 // pred_check
          %p291 = pneg %p134
        $region58: #{tpu_custom_call.1} parent=39 // pred_check_branch
          %293 = sbr.rel (%p291) target = $region60
        $region59: #{tpu_custom_call.1} parent=39 // pred_region
          %295 = dma.done [#allocation10], 16
        $region60: #{tpu_custom_call.1} parent=39 // pred_fallthru
          _
        %s296 = sand.u32 %s32, 1
        %s297 = scalar_lea.sflag [#allocation4], %s296
        %s298 = sand.u32 %s32, 1
        %s299 = smul.addr %s298, 480
        %s300 = scalar_lea.vmem [#allocation3], %s299
        %p301 = pneg %p45
        %p302 = pneg %p42
        %s303 = sand.u32 %s24, 1
        %s304 = scalar_lea.sflag [#allocation7], %s303
        %s305 = sand.u32 %s58, 1
        %s306 = smul.addr %s305, 1920
        %s307 = scalar_lea.vmem [#allocation6], %s306
        %p308 = pneg %p71
        %p309 = pneg %p68
        %p310 = pneg %p92
        %p311 = pneg %p89
        %p312 = pneg %p113
        %p313 = pneg %p110
        %p314 = pneg %p134
        %p315 = pneg %p131
        %p316 = pneg %p155
        %p317 = pneg %p152
        %s318 = smul.u32 120, %s24
        %s319 = smul.u32 120, %s24
        %p321 = scmp.eq.s32.totalorder %s24, 0
        // Predicated region
        $region61: #{tpu_custom_call.1} parent=39 // pred_check
          %p322 = pneg %p321
        $region62: #{tpu_custom_call.1} parent=39 // pred_check_branch
          %324 = sbr.rel (%p322) target = $region64
        $region63: #{tpu_custom_call.1} parent=39 // pred_region
          %vm325 = vcmask 261120
          %326 = vst.msk [vmem:[#allocation2] sm:$0xff] %vm325, 0.0
        $region64: #{tpu_custom_call.1} parent=39 // pred_fallthru
          _
        %v327 = vld [vmem:[%s265] sm:$0xff]
        %v328 = vld [vmem:[%s265 + $0x8] sm:$0xff]
        %v329 = vld [vmem:[%s265 + $0x10] sm:$0xff]
        %v330 = vld [vmem:[%s265 + $0x18] sm:$0xff]
        %v331 = vld [vmem:[%s265 + $0x20] sm:$0xff]
        %v332 = vld [vmem:[%s265 + $0x28] sm:$0xff]
        %v333 = vld [vmem:[%s265 + $0x30] sm:$0xff]
        %v334 = vld [vmem:[%s265 + $0x38] sm:$0xff]
        %v335 = vld [vmem:[%s265 + $0x40] sm:$0xff]
        %v336 = vld [vmem:[%s265 + $0x48] sm:$0xff]
        %v337 = vld [vmem:[%s265 + $0x50] sm:$0xff]
        %v338 = vld [vmem:[%s265 + $0x58] sm:$0xff]
        %v339 = vld [vmem:[%s265 + $0x60] sm:$0xff]
        %v340 = vld [vmem:[%s265 + $0x68] sm:$0xff]
        %v341 = vld [vmem:[%s265 + $0x70] sm:$0xff]
        %v342 = vld [vmem:[%s265 + $0x78] sm:$0xff]
        %v343 = vld [vmem:[%s265 + $0x80] sm:$0xff]
        %v344 = vld [vmem:[%s265 + $0x88] sm:$0xff]
        %v345 = vld [vmem:[%s265 + $0x90] sm:$0xff]
        %v346 = vld [vmem:[%s265 + $0x98] sm:$0xff]
        %v347 = vld [vmem:[%s265 + $0xa0] sm:$0xff]
        %v348 = vld [vmem:[%s265 + $0xa8] sm:$0xff]
        %v349 = vld [vmem:[%s265 + $0xb0] sm:$0xff]
        %v350 = vld [vmem:[%s265 + $0xb8] sm:$0xff]
        %v351 = vld [vmem:[%s265 + $0xc0] sm:$0xff]
        %v352 = vld [vmem:[%s265 + $0xc8] sm:$0xff]
        %v353 = vld [vmem:[%s265 + $0xd0] sm:$0xff]
        %v354 = vld [vmem:[%s265 + $0xd8] sm:$0xff]
        %v355 = vld [vmem:[%s265 + $0xe0] sm:$0xff]
        %v356 = vld [vmem:[%s265 + $0xe8] sm:$0xff]
        %v357 = vld [vmem:[%s265 + $0xf0] sm:$0xff]
        %v358 = vld [vmem:[%s265 + $0xf8] sm:$0xff]
        %v359 = vld [vmem:[%s265 + $0x100] sm:$0xff]
        %v360 = vld [vmem:[%s265 + $0x108] sm:$0xff]
        %v361 = vld [vmem:[%s265 + $0x110] sm:$0xff]
        %v362 = vld [vmem:[%s265 + $0x118] sm:$0xff]
        %v363 = vld [vmem:[%s265 + $0x120] sm:$0xff]
        %v364 = vld [vmem:[%s265 + $0x128] sm:$0xff]
        %v365 = vld [vmem:[%s265 + $0x130] sm:$0xff]
        %v366 = vld [vmem:[%s265 + $0x138] sm:$0xff]
        %v367 = vld [vmem:[%s265 + $0x140] sm:$0xff]
        %v368 = vld [vmem:[%s265 + $0x148] sm:$0xff]
        %v369 = vld [vmem:[%s265 + $0x150] sm:$0xff]
        %v370 = vld [vmem:[%s265 + $0x158] sm:$0xff]
        %v371 = vld [vmem:[%s265 + $0x160] sm:$0xff]
        %v372 = vld [vmem:[%s265 + $0x168] sm:$0xff]
        %v373 = vld [vmem:[%s265 + $0x170] sm:$0xff]
        %v374 = vld [vmem:[%s265 + $0x178] sm:$0xff]
        %v375 = vld [vmem:[%s265 + $0x180] sm:$0xff]
        %v376 = vld [vmem:[%s265 + $0x188] sm:$0xff]
        %v377 = vld [vmem:[%s265 + $0x190] sm:$0xff]
        %v378 = vld [vmem:[%s265 + $0x198] sm:$0xff]
        %v379 = vld [vmem:[%s265 + $0x1a0] sm:$0xff]
        %v380 = vld [vmem:[%s265 + $0x1a8] sm:$0xff]
        %v381 = vld [vmem:[%s265 + $0x1b0] sm:$0xff]
        %v382 = vld [vmem:[%s265 + $0x1b8] sm:$0xff]
        %v383 = vld [vmem:[%s265 + $0x1c0] sm:$0xff]
        %v384 = vld [vmem:[%s265 + $0x1c8] sm:$0xff]
        %v385 = vld [vmem:[%s265 + $0x1d0] sm:$0xff]
        %v386 = vld [vmem:[%s265 + $0x1d8] sm:$0xff]
        %v387 = vunpack.c.l.bf16 %v327
        %v388 = vunpack.c.h.bf16 %v327
        %v389 = vunpack.c.l.bf16 %v328
        %v390 = vunpack.c.h.bf16 %v328
        %v391 = vunpack.c.l.bf16 %v329
        %v392 = vunpack.c.h.bf16 %v329
        %v393 = vunpack.c.l.bf16 %v330
        %v394 = vunpack.c.h.bf16 %v330
        %v395 = vunpack.c.l.bf16 %v331
        %v396 = vunpack.c.h.bf16 %v331
        %v397 = vunpack.c.l.bf16 %v332
        %v398 = vunpack.c.h.bf16 %v332
        %v399 = vunpack.c.l.bf16 %v333
        %v400 = vunpack.c.h.bf16 %v333
        %v401 = vunpack.c.l.bf16 %v334
        %v402 = vunpack.c.h.bf16 %v334
        %v403 = vunpack.c.l.bf16 %v335
        %v404 = vunpack.c.h.bf16 %v335
        %v405 = vunpack.c.l.bf16 %v336
        %v406 = vunpack.c.h.bf16 %v336
        %v407 = vunpack.c.l.bf16 %v337
        %v408 = vunpack.c.h.bf16 %v337
        %v409 = vunpack.c.l.bf16 %v338
        %v410 = vunpack.c.h.bf16 %v338
        %v411 = vunpack.c.l.bf16 %v339
        %v412 = vunpack.c.h.bf16 %v339
        %v413 = vunpack.c.l.bf16 %v340
        %v414 = vunpack.c.h.bf16 %v340
        %v415 = vunpack.c.l.bf16 %v341
        %v416 = vunpack.c.h.bf16 %v341
        %v417 = vunpack.c.l.bf16 %v342
        %v418 = vunpack.c.h.bf16 %v342
        %v419 = vunpack.c.l.bf16 %v343
        %v420 = vunpack.c.h.bf16 %v343
        %v421 = vunpack.c.l.bf16 %v344
        %v422 = vunpack.c.h.bf16 %v344
        %v423 = vunpack.c.l.bf16 %v345
        %v424 = vunpack.c.h.bf16 %v345
        %v425 = vunpack.c.l.bf16 %v346
        %v426 = vunpack.c.h.bf16 %v346
        %v427 = vunpack.c.l.bf16 %v347
        %v428 = vunpack.c.h.bf16 %v347
        %v429 = vunpack.c.l.bf16 %v348
        %v430 = vunpack.c.h.bf16 %v348
        %v431 = vunpack.c.l.bf16 %v349
        %v432 = vunpack.c.h.bf16 %v349
        %v433 = vunpack.c.l.bf16 %v350
        %v434 = vunpack.c.h.bf16 %v350
        %v435 = vunpack.c.l.bf16 %v351
        %v436 = vunpack.c.h.bf16 %v351
        %v437 = vunpack.c.l.bf16 %v352
        %v438 = vunpack.c.h.bf16 %v352
        %v439 = vunpack.c.l.bf16 %v353
        %v440 = vunpack.c.h.bf16 %v353
        %v441 = vunpack.c.l.bf16 %v354
        %v442 = vunpack.c.h.bf16 %v354
        %v443 = vunpack.c.l.bf16 %v355
        %v444 = vunpack.c.h.bf16 %v355
        %v445 = vunpack.c.l.bf16 %v356
        %v446 = vunpack.c.h.bf16 %v356
        %v447 = vunpack.c.l.bf16 %v357
        %v448 = vunpack.c.h.bf16 %v357
        %v449 = vunpack.c.l.bf16 %v358
        %v450 = vunpack.c.h.bf16 %v358
        %v451 = vunpack.c.l.bf16 %v359
        %v452 = vunpack.c.h.bf16 %v359
        %v453 = vunpack.c.l.bf16 %v360
        %v454 = vunpack.c.h.bf16 %v360
        %v455 = vunpack.c.l.bf16 %v361
        %v456 = vunpack.c.h.bf16 %v361
        %v457 = vunpack.c.l.bf16 %v362
        %v458 = vunpack.c.h.bf16 %v362
        %v459 = vunpack.c.l.bf16 %v363
        %v460 = vunpack.c.h.bf16 %v363
        %v461 = vunpack.c.l.bf16 %v364
        %v462 = vunpack.c.h.bf16 %v364
        %v463 = vunpack.c.l.bf16 %v365
        %v464 = vunpack.c.h.bf16 %v365
        %v465 = vunpack.c.l.bf16 %v366
        %v466 = vunpack.c.h.bf16 %v366
        %v467 = vunpack.c.l.bf16 %v367
        %v468 = vunpack.c.h.bf16 %v367
        %v469 = vunpack.c.l.bf16 %v368
        %v470 = vunpack.c.h.bf16 %v368
        %v471 = vunpack.c.l.bf16 %v369
        %v472 = vunpack.c.h.bf16 %v369
        %v473 = vunpack.c.l.bf16 %v370
        %v474 = vunpack.c.h.bf16 %v370
        %v475 = vunpack.c.l.bf16 %v371
        %v476 = vunpack.c.h.bf16 %v371
        %v477 = vunpack.c.l.bf16 %v372
        %v478 = vunpack.c.h.bf16 %v372
        %v479 = vunpack.c.l.bf16 %v373
        %v480 = vunpack.c.h.bf16 %v373
        %v481 = vunpack.c.l.bf16 %v374
        %v482 = vunpack.c.h.bf16 %v374
        %v483 = vunpack.c.l.bf16 %v375
        %v484 = vunpack.c.h.bf16 %v375
        %v485 = vunpack.c.l.bf16 %v376
        %v486 = vunpack.c.h.bf16 %v376
        %v487 = vunpack.c.l.bf16 %v377
        %v488 = vunpack.c.h.bf16 %v377
        %v489 = vunpack.c.l.bf16 %v378
        %v490 = vunpack.c.h.bf16 %v378
        %v491 = vunpack.c.l.bf16 %v379
        %v492 = vunpack.c.h.bf16 %v379
        %v493 = vunpack.c.l.bf16 %v380
        %v494 = vunpack.c.h.bf16 %v380
        %v495 = vunpack.c.l.bf16 %v381
        %v496 = vunpack.c.h.bf16 %v381
        %v497 = vunpack.c.l.bf16 %v382
        %v498 = vunpack.c.h.bf16 %v382
        %v499 = vunpack.c.l.bf16 %v383
        %v500 = vunpack.c.h.bf16 %v383
        %v501 = vunpack.c.l.bf16 %v384
        %v502 = vunpack.c.h.bf16 %v384
        %v503 = vunpack.c.l.bf16 %v385
        %v504 = vunpack.c.h.bf16 %v385
        %v505 = vunpack.c.l.bf16 %v386
        %v506 = vunpack.c.h.bf16 %v386
        %v507 = vmax.f32 %v387, 0.0
        %v508 = vmax.f32 %v388, 0.0
        %v509 = vmax.f32 %v389, 0.0
        %v510 = vmax.f32 %v390, 0.0
        %v511 = vmax.f32 %v391, 0.0
        %v512 = vmax.f32 %v392, 0.0
        %v513 = vmax.f32 %v393, 0.0
        %v514 = vmax.f32 %v394, 0.0
        %v515 = vmax.f32 %v395, 0.0
        %v516 = vmax.f32 %v396, 0.0
        %v517 = vmax.f32 %v397, 0.0
        %v518 = vmax.f32 %v398, 0.0
        %v519 = vmax.f32 %v399, 0.0
        %v520 = vmax.f32 %v400, 0.0
        %v521 = vmax.f32 %v401, 0.0
        %v522 = vmax.f32 %v402, 0.0
        %v523 = vmax.f32 %v403, 0.0
        %v524 = vmax.f32 %v404, 0.0
        %v525 = vmax.f32 %v405, 0.0
        %v526 = vmax.f32 %v406, 0.0
        %v527 = vmax.f32 %v407, 0.0
        %v528 = vmax.f32 %v408, 0.0
        %v529 = vmax.f32 %v409, 0.0
        %v530 = vmax.f32 %v410, 0.0
        %v531 = vmax.f32 %v411, 0.0
        %v532 = vmax.f32 %v412, 0.0
        %v533 = vmax.f32 %v413, 0.0
        %v534 = vmax.f32 %v414, 0.0
        %v535 = vmax.f32 %v415, 0.0
        %v536 = vmax.f32 %v416, 0.0
        %v537 = vmax.f32 %v417, 0.0
        %v538 = vmax.f32 %v418, 0.0
        %v539 = vmax.f32 %v419, 0.0
        %v540 = vmax.f32 %v420, 0.0
        %v541 = vmax.f32 %v421, 0.0
        %v542 = vmax.f32 %v422, 0.0
        %v543 = vmax.f32 %v423, 0.0
        %v544 = vmax.f32 %v424, 0.0
        %v545 = vmax.f32 %v425, 0.0
        %v546 = vmax.f32 %v426, 0.0
        %v547 = vmax.f32 %v427, 0.0
        %v548 = vmax.f32 %v428, 0.0
        %v549 = vmax.f32 %v429, 0.0
        %v550 = vmax.f32 %v430, 0.0
        %v551 = vmax.f32 %v431, 0.0
        %v552 = vmax.f32 %v432, 0.0
        %v553 = vmax.f32 %v433, 0.0
        %v554 = vmax.f32 %v434, 0.0
        %v555 = vmax.f32 %v435, 0.0
        %v556 = vmax.f32 %v436, 0.0
        %v557 = vmax.f32 %v437, 0.0
        %v558 = vmax.f32 %v438, 0.0
        %v559 = vmax.f32 %v439, 0.0
        %v560 = vmax.f32 %v440, 0.0
        %v561 = vmax.f32 %v441, 0.0
        %v562 = vmax.f32 %v442, 0.0
        %v563 = vmax.f32 %v443, 0.0
        %v564 = vmax.f32 %v444, 0.0
        %v565 = vmax.f32 %v445, 0.0
        %v566 = vmax.f32 %v446, 0.0
        %v567 = vmax.f32 %v447, 0.0
        %v568 = vmax.f32 %v448, 0.0
        %v569 = vmax.f32 %v449, 0.0
        %v570 = vmax.f32 %v450, 0.0
        %v571 = vmax.f32 %v451, 0.0
        %v572 = vmax.f32 %v452, 0.0
        %v573 = vmax.f32 %v453, 0.0
        %v574 = vmax.f32 %v454, 0.0
        %v575 = vmax.f32 %v455, 0.0
        %v576 = vmax.f32 %v456, 0.0
        %v577 = vmax.f32 %v457, 0.0
        %v578 = vmax.f32 %v458, 0.0
        %v579 = vmax.f32 %v459, 0.0
        %v580 = vmax.f32 %v460, 0.0
        %v581 = vmax.f32 %v461, 0.0
        %v582 = vmax.f32 %v462, 0.0
        %v583 = vmax.f32 %v463, 0.0
        %v584 = vmax.f32 %v464, 0.0
        %v585 = vmax.f32 %v465, 0.0
        %v586 = vmax.f32 %v466, 0.0
        %v587 = vmax.f32 %v467, 0.0
        %v588 = vmax.f32 %v468, 0.0
        %v589 = vmax.f32 %v469, 0.0
        %v590 = vmax.f32 %v470, 0.0
        %v591 = vmax.f32 %v471, 0.0
        %v592 = vmax.f32 %v472, 0.0
        %v593 = vmax.f32 %v473, 0.0
        %v594 = vmax.f32 %v474, 0.0
        %v595 = vmax.f32 %v475, 0.0
        %v596 = vmax.f32 %v476, 0.0
        %v597 = vmax.f32 %v477, 0.0
        %v598 = vmax.f32 %v478, 0.0
        %v599 = vmax.f32 %v479, 0.0
        %v600 = vmax.f32 %v480, 0.0
        %v601 = vmax.f32 %v481, 0.0
        %v602 = vmax.f32 %v482, 0.0
        %v603 = vmax.f32 %v483, 0.0
        %v604 = vmax.f32 %v484, 0.0
        %v605 = vmax.f32 %v485, 0.0
        %v606 = vmax.f32 %v486, 0.0
        %v607 = vmax.f32 %v487, 0.0
        %v608 = vmax.f32 %v488, 0.0
        %v609 = vmax.f32 %v489, 0.0
        %v610 = vmax.f32 %v490, 0.0
        %v611 = vmax.f32 %v491, 0.0
        %v612 = vmax.f32 %v492, 0.0
        %v613 = vmax.f32 %v493, 0.0
        %v614 = vmax.f32 %v494, 0.0
        %v615 = vmax.f32 %v495, 0.0
        %v616 = vmax.f32 %v496, 0.0
        %v617 = vmax.f32 %v497, 0.0
        %v618 = vmax.f32 %v498, 0.0
        %v619 = vmax.f32 %v499, 0.0
        %v620 = vmax.f32 %v500, 0.0
        %v621 = vmax.f32 %v501, 0.0
        %v622 = vmax.f32 %v502, 0.0
        %v623 = vmax.f32 %v503, 0.0
        %v624 = vmax.f32 %v504, 0.0
        %v625 = vmax.f32 %v505, 0.0
        %v626 = vmax.f32 %v506, 0.0
        %v627 = vpack.c.bf16 %v507, %v507
        %v628 = vpack.c.bf16 %v508, %v508
        %v629 = vpack.c.bf16 %v509, %v509
        %v630 = vpack.c.bf16 %v510, %v510
        %v631 = vpack.c.bf16 %v511, %v511
        %v632 = vpack.c.bf16 %v512, %v512
        %v633 = vpack.c.bf16 %v513, %v513
        %v634 = vpack.c.bf16 %v514, %v514
        %v635 = vpack.c.bf16 %v515, %v515
        %v636 = vpack.c.bf16 %v516, %v516
        %v637 = vpack.c.bf16 %v517, %v517
        %v638 = vpack.c.bf16 %v518, %v518
        %v639 = vpack.c.bf16 %v519, %v519
        %v640 = vpack.c.bf16 %v520, %v520
        %v641 = vpack.c.bf16 %v521, %v521
        %v642 = vpack.c.bf16 %v522, %v522
        %v643 = vpack.c.bf16 %v523, %v523
        %v644 = vpack.c.bf16 %v524, %v524
        %v645 = vpack.c.bf16 %v525, %v525
        %v646 = vpack.c.bf16 %v526, %v526
        %v647 = vpack.c.bf16 %v527, %v527
        %v648 = vpack.c.bf16 %v528, %v528
        %v649 = vpack.c.bf16 %v529, %v529
        %v650 = vpack.c.bf16 %v530, %v530
        %v651 = vpack.c.bf16 %v531, %v531
        %v652 = vpack.c.bf16 %v532, %v532
        %v653 = vpack.c.bf16 %v533, %v533
        %v654 = vpack.c.bf16 %v534, %v534
        %v655 = vpack.c.bf16 %v535, %v535
        %v656 = vpack.c.bf16 %v536, %v536
        %v657 = vpack.c.bf16 %v537, %v537
        %v658 = vpack.c.bf16 %v538, %v538
        %v659 = vpack.c.bf16 %v539, %v539
        %v660 = vpack.c.bf16 %v540, %v540
        %v661 = vpack.c.bf16 %v541, %v541
        %v662 = vpack.c.bf16 %v542, %v542
        %v663 = vpack.c.bf16 %v543, %v543
        %v664 = vpack.c.bf16 %v544, %v544
        %v665 = vpack.c.bf16 %v545, %v545
        %v666 = vpack.c.bf16 %v546, %v546
        %v667 = vpack.c.bf16 %v547, %v547
        %v668 = vpack.c.bf16 %v548, %v548
        %v669 = vpack.c.bf16 %v549, %v549
        %v670 = vpack.c.bf16 %v550, %v550
        %v671 = vpack.c.bf16 %v551, %v551
        %v672 = vpack.c.bf16 %v552, %v552
        %v673 = vpack.c.bf16 %v553, %v553
        %v674 = vpack.c.bf16 %v554, %v554
        %v675 = vpack.c.bf16 %v555, %v555
        %v676 = vpack.c.bf16 %v556, %v556
        %v677 = vpack.c.bf16 %v557, %v557
        %v678 = vpack.c.bf16 %v558, %v558
        %v679 = vpack.c.bf16 %v559, %v559
        %v680 = vpack.c.bf16 %v560, %v560
        %v681 = vpack.c.bf16 %v561, %v561
        %v682 = vpack.c.bf16 %v562, %v562
        %v683 = vpack.c.bf16 %v563, %v563
        %v684 = vpack.c.bf16 %v564, %v564
        %v685 = vpack.c.bf16 %v565, %v565
        %v686 = vpack.c.bf16 %v566, %v566
        %v687 = vpack.c.bf16 %v567, %v567
        %v688 = vpack.c.bf16 %v568, %v568
        %v689 = vpack.c.bf16 %v569, %v569
        %v690 = vpack.c.bf16 %v570, %v570
        %v691 = vpack.c.bf16 %v571, %v571
        %v692 = vpack.c.bf16 %v572, %v572
        %v693 = vpack.c.bf16 %v573, %v573
        %v694 = vpack.c.bf16 %v574, %v574
        %v695 = vpack.c.bf16 %v575, %v575
        %v696 = vpack.c.bf16 %v576, %v576
        %v697 = vpack.c.bf16 %v577, %v577
        %v698 = vpack.c.bf16 %v578, %v578
        %v699 = vpack.c.bf16 %v579, %v579
        %v700 = vpack.c.bf16 %v580, %v580
        %v701 = vpack.c.bf16 %v581, %v581
        %v702 = vpack.c.bf16 %v582, %v582
        %v703 = vpack.c.bf16 %v583, %v583
        %v704 = vpack.c.bf16 %v584, %v584
        %v705 = vpack.c.bf16 %v585, %v585
        %v706 = vpack.c.bf16 %v586, %v586
        %v707 = vpack.c.bf16 %v587, %v587
        %v708 = vpack.c.bf16 %v588, %v588
        %v709 = vpack.c.bf16 %v589, %v589
        %v710 = vpack.c.bf16 %v590, %v590
        %v711 = vpack.c.bf16 %v591, %v591
        %v712 = vpack.c.bf16 %v592, %v592
        %v713 = vpack.c.bf16 %v593, %v593
        %v714 = vpack.c.bf16 %v594, %v594
        %v715 = vpack.c.bf16 %v595, %v595
        %v716 = vpack.c.bf16 %v596, %v596
        %v717 = vpack.c.bf16 %v597, %v597
        %v718 = vpack.c.bf16 %v598, %v598
        %v719 = vpack.c.bf16 %v599, %v599
        %v720 = vpack.c.bf16 %v600, %v600
        %v721 = vpack.c.bf16 %v601, %v601
        %v722 = vpack.c.bf16 %v602, %v602
        %v723 = vpack.c.bf16 %v603, %v603
        %v724 = vpack.c.bf16 %v604, %v604
        %v725 = vpack.c.bf16 %v605, %v605
        %v726 = vpack.c.bf16 %v606, %v606
        %v727 = vpack.c.bf16 %v607, %v607
        %v728 = vpack.c.bf16 %v608, %v608
        %v729 = vpack.c.bf16 %v609, %v609
        %v730 = vpack.c.bf16 %v610, %v610
        %v731 = vpack.c.bf16 %v611, %v611
        %v732 = vpack.c.bf16 %v612, %v612
        %v733 = vpack.c.bf16 %v613, %v613
        %v734 = vpack.c.bf16 %v614, %v614
        %v735 = vpack.c.bf16 %v615, %v615
        %v736 = vpack.c.bf16 %v616, %v616
        %v737 = vpack.c.bf16 %v617, %v617
        %v738 = vpack.c.bf16 %v618, %v618
        %v739 = vpack.c.bf16 %v619, %v619
        %v740 = vpack.c.bf16 %v620, %v620
        %v741 = vpack.c.bf16 %v621, %v621
        %v742 = vpack.c.bf16 %v622, %v622
        %v743 = vpack.c.bf16 %v623, %v623
        %v744 = vpack.c.bf16 %v624, %v624
        %v745 = vpack.c.bf16 %v625, %v625
        %v746 = vpack.c.bf16 %v626, %v626
        %v747 = vld [vmem:[#allocation2] sm:$0xff]
        %v748 = vld [vmem:[%s275] sm:$0xff]
        %v749 = vld [vmem:[%s275 + $0x8] sm:$0xff]
        %v750 = vld [vmem:[%s275 + $0x10] sm:$0xff]
        %v751 = vld [vmem:[%s275 + $0x18] sm:$0xff]
        %v752 = vld [vmem:[%s275 + $0x20] sm:$0xff]
        %v753 = vld [vmem:[%s275 + $0x28] sm:$0xff]
        %v754 = vld [vmem:[%s275 + $0x30] sm:$0xff]
        %v755 = vld [vmem:[%s275 + $0x38] sm:$0xff]
        %v756 = vld [vmem:[%s275 + $0x40] sm:$0xff]
        %v757 = vld [vmem:[%s275 + $0x48] sm:$0xff]
        %v758 = vld [vmem:[%s275 + $0x50] sm:$0xff]
        %v759 = vld [vmem:[%s275 + $0x58] sm:$0xff]
        %v760 = vld [vmem:[%s275 + $0x60] sm:$0xff]
        %v761 = vld [vmem:[%s275 + $0x68] sm:$0xff]
        %v762 = vld [vmem:[%s275 + $0x70] sm:$0xff]
        %v763 = vld [vmem:[%s275 + $0x78] sm:$0xff]
        %v764 = vld [vmem:[%s275 + $0x80] sm:$0xff]
        %v765 = vld [vmem:[%s275 + $0x88] sm:$0xff]
        %v766 = vld [vmem:[%s275 + $0x90] sm:$0xff]
        %v767 = vld [vmem:[%s275 + $0x98] sm:$0xff]
        %v768 = vld [vmem:[%s275 + $0xa0] sm:$0xff]
        %v769 = vld [vmem:[%s275 + $0xa8] sm:$0xff]
        %v770 = vld [vmem:[%s275 + $0xb0] sm:$0xff]
        %v771 = vld [vmem:[%s275 + $0xb8] sm:$0xff]
        %v772 = vld [vmem:[%s275 + $0xc0] sm:$0xff]
        %v773 = vld [vmem:[%s275 + $0xc8] sm:$0xff]
        %v774 = vld [vmem:[%s275 + $0xd0] sm:$0xff]
        %v775 = vld [vmem:[%s275 + $0xd8] sm:$0xff]
        %v776 = vld [vmem:[%s275 + $0xe0] sm:$0xff]
        %v777 = vld [vmem:[%s275 + $0xe8] sm:$0xff]
        %v778 = vld [vmem:[%s275 + $0xf0] sm:$0xff]
        %v779 = vld [vmem:[%s275 + $0xf8] sm:$0xff]
        %v780 = vld [vmem:[%s275 + $0x100] sm:$0xff]
        %v781 = vld [vmem:[%s275 + $0x108] sm:$0xff]
        %v782 = vld [vmem:[%s275 + $0x110] sm:$0xff]
        %v783 = vld [vmem:[%s275 + $0x118] sm:$0xff]
        %v784 = vld [vmem:[%s275 + $0x120] sm:$0xff]
        %v785 = vld [vmem:[%s275 + $0x128] sm:$0xff]
        %v786 = vld [vmem:[%s275 + $0x130] sm:$0xff]
        %v787 = vld [vmem:[%s275 + $0x138] sm:$0xff]
        %v788 = vld [vmem:[%s275 + $0x140] sm:$0xff]
        %v789 = vld [vmem:[%s275 + $0x148] sm:$0xff]
        %v790 = vld [vmem:[%s275 + $0x150] sm:$0xff]
        %v791 = vld [vmem:[%s275 + $0x158] sm:$0xff]
        %v792 = vld [vmem:[%s275 + $0x160] sm:$0xff]
        %v793 = vld [vmem:[%s275 + $0x168] sm:$0xff]
        %v794 = vld [vmem:[%s275 + $0x170] sm:$0xff]
        %v795 = vld [vmem:[%s275 + $0x178] sm:$0xff]
        %v796 = vld [vmem:[%s275 + $0x180] sm:$0xff]
        %v797 = vld [vmem:[%s275 + $0x188] sm:$0xff]
        %v798 = vld [vmem:[%s275 + $0x190] sm:$0xff]
        %v799 = vld [vmem:[%s275 + $0x198] sm:$0xff]
        %v800 = vld [vmem:[%s275 + $0x1a0] sm:$0xff]
        %v801 = vld [vmem:[%s275 + $0x1a8] sm:$0xff]
        %v802 = vld [vmem:[%s275 + $0x1b0] sm:$0xff]
        %v803 = vld [vmem:[%s275 + $0x1b8] sm:$0xff]
        %v804 = vld [vmem:[%s275 + $0x1c0] sm:$0xff]
        %v805 = vld [vmem:[%s275 + $0x1c8] sm:$0xff]
        %v806 = vld [vmem:[%s275 + $0x1d0] sm:$0xff]
        %v807 = vld [vmem:[%s275 + $0x1d8] sm:$0xff]
        %v808 = vld [vmem:[%s275 + $0x1e0] sm:$0xff]
        %v809 = vld [vmem:[%s275 + $0x1e8] sm:$0xff]
        %v810 = vld [vmem:[%s275 + $0x1f0] sm:$0xff]
        %v811 = vld [vmem:[%s275 + $0x1f8] sm:$0xff]
        %v812 = vld [vmem:[%s275 + $0x200] sm:$0xff]
        %v813 = vld [vmem:[%s275 + $0x208] sm:$0xff]
        %v814 = vld [vmem:[%s275 + $0x210] sm:$0xff]
        %v815 = vld [vmem:[%s275 + $0x218] sm:$0xff]
        %v816 = vld [vmem:[%s275 + $0x220] sm:$0xff]
        %v817 = vld [vmem:[%s275 + $0x228] sm:$0xff]
        %v818 = vld [vmem:[%s275 + $0x230] sm:$0xff]
        %v819 = vld [vmem:[%s275 + $0x238] sm:$0xff]
        %v820 = vld [vmem:[%s275 + $0x240] sm:$0xff]
        %v821 = vld [vmem:[%s275 + $0x248] sm:$0xff]
        %v822 = vld [vmem:[%s275 + $0x250] sm:$0xff]
        %v823 = vld [vmem:[%s275 + $0x258] sm:$0xff]
        %v824 = vld [vmem:[%s275 + $0x260] sm:$0xff]
        %v825 = vld [vmem:[%s275 + $0x268] sm:$0xff]
        %v826 = vld [vmem:[%s275 + $0x270] sm:$0xff]
        %v827 = vld [vmem:[%s275 + $0x278] sm:$0xff]
        %v828 = vld [vmem:[%s275 + $0x280] sm:$0xff]
        %v829 = vld [vmem:[%s275 + $0x288] sm:$0xff]
        %v830 = vld [vmem:[%s275 + $0x290] sm:$0xff]
        %v831 = vld [vmem:[%s275 + $0x298] sm:$0xff]
        %v832 = vld [vmem:[%s275 + $0x2a0] sm:$0xff]
        %v833 = vld [vmem:[%s275 + $0x2a8] sm:$0xff]
        %v834 = vld [vmem:[%s275 + $0x2b0] sm:$0xff]
        %v835 = vld [vmem:[%s275 + $0x2b8] sm:$0xff]
        %v836 = vld [vmem:[%s275 + $0x2c0] sm:$0xff]
        %v837 = vld [vmem:[%s275 + $0x2c8] sm:$0xff]
        %v838 = vld [vmem:[%s275 + $0x2d0] sm:$0xff]
        %v839 = vld [vmem:[%s275 + $0x2d8] sm:$0xff]
        %v840 = vld [vmem:[%s275 + $0x2e0] sm:$0xff]
        %v841 = vld [vmem:[%s275 + $0x2e8] sm:$0xff]
        %v842 = vld [vmem:[%s275 + $0x2f0] sm:$0xff]
        %v843 = vld [vmem:[%s275 + $0x2f8] sm:$0xff]
        %v844 = vld [vmem:[%s275 + $0x300] sm:$0xff]
        %v845 = vld [vmem:[%s275 + $0x308] sm:$0xff]
        %v846 = vld [vmem:[%s275 + $0x310] sm:$0xff]
        %v847 = vld [vmem:[%s275 + $0x318] sm:$0xff]
        %v848 = vld [vmem:[%s275 + $0x320] sm:$0xff]
        %v849 = vld [vmem:[%s275 + $0x328] sm:$0xff]
        %v850 = vld [vmem:[%s275 + $0x330] sm:$0xff]
        %v851 = vld [vmem:[%s275 + $0x338] sm:$0xff]
        %v852 = vld [vmem:[%s275 + $0x340] sm:$0xff]
        %v853 = vld [vmem:[%s275 + $0x348] sm:$0xff]
        %v854 = vld [vmem:[%s275 + $0x350] sm:$0xff]
        %v855 = vld [vmem:[%s275 + $0x358] sm:$0xff]
        %v856 = vld [vmem:[%s275 + $0x360] sm:$0xff]
        %v857 = vld [vmem:[%s275 + $0x368] sm:$0xff]
        %v858 = vld [vmem:[%s275 + $0x370] sm:$0xff]
        %v859 = vld [vmem:[%s275 + $0x378] sm:$0xff]
        %v860 = vld [vmem:[%s275 + $0x380] sm:$0xff]
        %v861 = vld [vmem:[%s275 + $0x388] sm:$0xff]
        %v862 = vld [vmem:[%s275 + $0x390] sm:$0xff]
        %v863 = vld [vmem:[%s275 + $0x398] sm:$0xff]
        %v864 = vld [vmem:[%s275 + $0x3a0] sm:$0xff]
        %v865 = vld [vmem:[%s275 + $0x3a8] sm:$0xff]
        %v866 = vld [vmem:[%s275 + $0x3b0] sm:$0xff]
        %v867 = vld [vmem:[%s275 + $0x3b8] sm:$0xff]
        %v868 = vld [vmem:[%s275 + $0x3c0] sm:$0xff]
        %v869 = vld [vmem:[%s275 + $0x3c8] sm:$0xff]
        %v870 = vld [vmem:[%s275 + $0x3d0] sm:$0xff]
        %v871 = vld [vmem:[%s275 + $0x3d8] sm:$0xff]
        %v872 = vld [vmem:[%s275 + $0x3e0] sm:$0xff]
        %v873 = vld [vmem:[%s275 + $0x3e8] sm:$0xff]
        %v874 = vld [vmem:[%s275 + $0x3f0] sm:$0xff]
        %v875 = vld [vmem:[%s275 + $0x3f8] sm:$0xff]
        %v876 = vld [vmem:[%s275 + $0x400] sm:$0xff]
        %v877 = vld [vmem:[%s275 + $0x408] sm:$0xff]
        %v878 = vld [vmem:[%s275 + $0x410] sm:$0xff]
        %v879 = vld [vmem:[%s275 + $0x418] sm:$0xff]
        %v880 = vld [vmem:[%s275 + $0x420] sm:$0xff]
        %v881 = vld [vmem:[%s275 + $0x428] sm:$0xff]
        %v882 = vld [vmem:[%s275 + $0x430] sm:$0xff]
        %v883 = vld [vmem:[%s275 + $0x438] sm:$0xff]
        %v884 = vld [vmem:[%s275 + $0x440] sm:$0xff]
        %v885 = vld [vmem:[%s275 + $0x448] sm:$0xff]
        %v886 = vld [vmem:[%s275 + $0x450] sm:$0xff]
        %v887 = vld [vmem:[%s275 + $0x458] sm:$0xff]
        %v888 = vld [vmem:[%s275 + $0x460] sm:$0xff]
        %v889 = vld [vmem:[%s275 + $0x468] sm:$0xff]
        %v890 = vld [vmem:[%s275 + $0x470] sm:$0xff]
        %v891 = vld [vmem:[%s275 + $0x478] sm:$0xff]
        %v892 = vld [vmem:[%s275 + $0x480] sm:$0xff]
        %v893 = vld [vmem:[%s275 + $0x488] sm:$0xff]
        %v894 = vld [vmem:[%s275 + $0x490] sm:$0xff]
        %v895 = vld [vmem:[%s275 + $0x498] sm:$0xff]
        %v896 = vld [vmem:[%s275 + $0x4a0] sm:$0xff]
        %v897 = vld [vmem:[%s275 + $0x4a8] sm:$0xff]
        %v898 = vld [vmem:[%s275 + $0x4b0] sm:$0xff]
        %v899 = vld [vmem:[%s275 + $0x4b8] sm:$0xff]
        %v900 = vld [vmem:[%s275 + $0x4c0] sm:$0xff]
        %v901 = vld [vmem:[%s275 + $0x4c8] sm:$0xff]
        %v902 = vld [vmem:[%s275 + $0x4d0] sm:$0xff]
        %v903 = vld [vmem:[%s275 + $0x4d8] sm:$0xff]
        %v904 = vld [vmem:[%s275 + $0x4e0] sm:$0xff]
        %v905 = vld [vmem:[%s275 + $0x4e8] sm:$0xff]
        %v906 = vld [vmem:[%s275 + $0x4f0] sm:$0xff]
        %v907 = vld [vmem:[%s275 + $0x4f8] sm:$0xff]
        %v908 = vld [vmem:[%s275 + $0x500] sm:$0xff]
        %v909 = vld [vmem:[%s275 + $0x508] sm:$0xff]
        %v910 = vld [vmem:[%s275 + $0x510] sm:$0xff]
        %v911 = vld [vmem:[%s275 + $0x518] sm:$0xff]
        %v912 = vld [vmem:[%s275 + $0x520] sm:$0xff]
        %v913 = vld [vmem:[%s275 + $0x528] sm:$0xff]
        %v914 = vld [vmem:[%s275 + $0x530] sm:$0xff]
        %v915 = vld [vmem:[%s275 + $0x538] sm:$0xff]
        %v916 = vld [vmem:[%s275 + $0x540] sm:$0xff]
        %v917 = vld [vmem:[%s275 + $0x548] sm:$0xff]
        %v918 = vld [vmem:[%s275 + $0x550] sm:$0xff]
        %v919 = vld [vmem:[%s275 + $0x558] sm:$0xff]
        %v920 = vld [vmem:[%s275 + $0x560] sm:$0xff]
        %v921 = vld [vmem:[%s275 + $0x568] sm:$0xff]
        %v922 = vld [vmem:[%s275 + $0x570] sm:$0xff]
        %v923 = vld [vmem:[%s275 + $0x578] sm:$0xff]
        %v924 = vld [vmem:[%s275 + $0x580] sm:$0xff]
        %v925 = vld [vmem:[%s275 + $0x588] sm:$0xff]
        %v926 = vld [vmem:[%s275 + $0x590] sm:$0xff]
        %v927 = vld [vmem:[%s275 + $0x598] sm:$0xff]
        %v928 = vld [vmem:[%s275 + $0x5a0] sm:$0xff]
        %v929 = vld [vmem:[%s275 + $0x5a8] sm:$0xff]
        %v930 = vld [vmem:[%s275 + $0x5b0] sm:$0xff]
        %v931 = vld [vmem:[%s275 + $0x5b8] sm:$0xff]
        %v932 = vld [vmem:[%s275 + $0x5c0] sm:$0xff]
        %v933 = vld [vmem:[%s275 + $0x5c8] sm:$0xff]
        %v934 = vld [vmem:[%s275 + $0x5d0] sm:$0xff]
        %v935 = vld [vmem:[%s275 + $0x5d8] sm:$0xff]
        %v936 = vld [vmem:[%s275 + $0x5e0] sm:$0xff]
        %v937 = vld [vmem:[%s275 + $0x5e8] sm:$0xff]
        %v938 = vld [vmem:[%s275 + $0x5f0] sm:$0xff]
        %v939 = vld [vmem:[%s275 + $0x5f8] sm:$0xff]
        %v940 = vld [vmem:[%s275 + $0x600] sm:$0xff]
        %v941 = vld [vmem:[%s275 + $0x608] sm:$0xff]
        %v942 = vld [vmem:[%s275 + $0x610] sm:$0xff]
        %v943 = vld [vmem:[%s275 + $0x618] sm:$0xff]
        %v944 = vld [vmem:[%s275 + $0x620] sm:$0xff]
        %v945 = vld [vmem:[%s275 + $0x628] sm:$0xff]
        %v946 = vld [vmem:[%s275 + $0x630] sm:$0xff]
        %v947 = vld [vmem:[%s275 + $0x638] sm:$0xff]
        %v948 = vld [vmem:[%s275 + $0x640] sm:$0xff]
        %v949 = vld [vmem:[%s275 + $0x648] sm:$0xff]
        %v950 = vld [vmem:[%s275 + $0x650] sm:$0xff]
        %v951 = vld [vmem:[%s275 + $0x658] sm:$0xff]
        %v952 = vld [vmem:[%s275 + $0x660] sm:$0xff]
        %v953 = vld [vmem:[%s275 + $0x668] sm:$0xff]
        %v954 = vld [vmem:[%s275 + $0x670] sm:$0xff]
        %v955 = vld [vmem:[%s275 + $0x678] sm:$0xff]
        %v956 = vld [vmem:[%s275 + $0x680] sm:$0xff]
        %v957 = vld [vmem:[%s275 + $0x688] sm:$0xff]
        %v958 = vld [vmem:[%s275 + $0x690] sm:$0xff]
        %v959 = vld [vmem:[%s275 + $0x698] sm:$0xff]
        %v960 = vld [vmem:[%s275 + $0x6a0] sm:$0xff]
        %v961 = vld [vmem:[%s275 + $0x6a8] sm:$0xff]
        %v962 = vld [vmem:[%s275 + $0x6b0] sm:$0xff]
        %v963 = vld [vmem:[%s275 + $0x6b8] sm:$0xff]
        %v964 = vld [vmem:[%s275 + $0x6c0] sm:$0xff]
        %v965 = vld [vmem:[%s275 + $0x6c8] sm:$0xff]
        %v966 = vld [vmem:[%s275 + $0x6d0] sm:$0xff]
        %v967 = vld [vmem:[%s275 + $0x6d8] sm:$0xff]
        %v968 = vld [vmem:[%s275 + $0x6e0] sm:$0xff]
        %v969 = vld [vmem:[%s275 + $0x6e8] sm:$0xff]
        %v970 = vld [vmem:[%s275 + $0x6f0] sm:$0xff]
        %v971 = vld [vmem:[%s275 + $0x6f8] sm:$0xff]
        %v972 = vld [vmem:[%s275 + $0x700] sm:$0xff]
        %v973 = vld [vmem:[%s275 + $0x708] sm:$0xff]
        %v974 = vld [vmem:[%s275 + $0x710] sm:$0xff]
        %v975 = vld [vmem:[%s275 + $0x718] sm:$0xff]
        %v976 = vld [vmem:[%s275 + $0x720] sm:$0xff]
        %v977 = vld [vmem:[%s275 + $0x728] sm:$0xff]
        %v978 = vld [vmem:[%s275 + $0x730] sm:$0xff]
        %v979 = vld [vmem:[%s275 + $0x738] sm:$0xff]
        %v980 = vld [vmem:[%s275 + $0x740] sm:$0xff]
        %v981 = vld [vmem:[%s275 + $0x748] sm:$0xff]
        %v982 = vld [vmem:[%s275 + $0x750] sm:$0xff]
        %v983 = vld [vmem:[%s275 + $0x758] sm:$0xff]
        %v984 = vld [vmem:[%s275 + $0x760] sm:$0xff]
        %v985 = vld [vmem:[%s275 + $0x768] sm:$0xff]
        %v986 = vld [vmem:[%s275 + $0x770] sm:$0xff]
        %v987 = vld [vmem:[%s275 + $0x778] sm:$0xff]
        %v1228 = vunpack.c.l.b16 %v748
        %v1229 = vunpack.c.h.b16 %v748
        %v1230 = vunpack.c.l.b16 %v749
        %v1231 = vunpack.c.h.b16 %v749
        %v1232 = vunpack.c.l.b16 %v750
        %v1233 = vunpack.c.h.b16 %v750
        %v1234 = vunpack.c.l.b16 %v751
        %v1235 = vunpack.c.h.b16 %v751
        %v1236 = vunpack.c.l.b16 %v752
        %v1237 = vunpack.c.h.b16 %v752
        %v1238 = vunpack.c.l.b16 %v753
        %v1239 = vunpack.c.h.b16 %v753
        %v1240 = vunpack.c.l.b16 %v754
        %v1241 = vunpack.c.h.b16 %v754
        %v1242 = vunpack.c.l.b16 %v755
        %v1243 = vunpack.c.h.b16 %v755
        %v1244 = vunpack.c.l.b16 %v756
        %v1245 = vunpack.c.h.b16 %v756
        %v1246 = vunpack.c.l.b16 %v757
        %v1247 = vunpack.c.h.b16 %v757
        %v1248 = vunpack.c.l.b16 %v758
        %v1249 = vunpack.c.h.b16 %v758
        %v1250 = vunpack.c.l.b16 %v759
        %v1251 = vunpack.c.h.b16 %v759
        %v1252 = vunpack.c.l.b16 %v760
        %v1253 = vunpack.c.h.b16 %v760
        %v1254 = vunpack.c.l.b16 %v761
        %v1255 = vunpack.c.h.b16 %v761
        %v1256 = vunpack.c.l.b16 %v762
        %v1257 = vunpack.c.h.b16 %v762
        %v1258 = vunpack.c.l.b16 %v763
        %v1259 = vunpack.c.h.b16 %v763
        %v1260 = vunpack.c.l.b16 %v764
        %v1261 = vunpack.c.h.b16 %v764
        %v1262 = vunpack.c.l.b16 %v765
        %v1263 = vunpack.c.h.b16 %v765
        %v1264 = vunpack.c.l.b16 %v766
        %v1265 = vunpack.c.h.b16 %v766
        %v1266 = vunpack.c.l.b16 %v767
        %v1267 = vunpack.c.h.b16 %v767
        %v1268 = vunpack.c.l.b16 %v768
        %v1269 = vunpack.c.h.b16 %v768
        %v1270 = vunpack.c.l.b16 %v769
        %v1271 = vunpack.c.h.b16 %v769
        %v1272 = vunpack.c.l.b16 %v770
        %v1273 = vunpack.c.h.b16 %v770
        %v1274 = vunpack.c.l.b16 %v771
        %v1275 = vunpack.c.h.b16 %v771
        %v1276 = vunpack.c.l.b16 %v772
        %v1277 = vunpack.c.h.b16 %v772
        %v1278 = vunpack.c.l.b16 %v773
        %v1279 = vunpack.c.h.b16 %v773
        %v1280 = vunpack.c.l.b16 %v774
        %v1281 = vunpack.c.h.b16 %v774
        %v1282 = vunpack.c.l.b16 %v775
        %v1283 = vunpack.c.h.b16 %v775
        %v1284 = vunpack.c.l.b16 %v776
        %v1285 = vunpack.c.h.b16 %v776
        %v1286 = vunpack.c.l.b16 %v777
        %v1287 = vunpack.c.h.b16 %v777
        %v1288 = vunpack.c.l.b16 %v778
        %v1289 = vunpack.c.h.b16 %v778
        %v1290 = vunpack.c.l.b16 %v779
        %v1291 = vunpack.c.h.b16 %v779
        %v1292 = vunpack.c.l.b16 %v780
        %v1293 = vunpack.c.h.b16 %v780
        %v1294 = vunpack.c.l.b16 %v781
        %v1295 = vunpack.c.h.b16 %v781
        %v1296 = vunpack.c.l.b16 %v782
        %v1297 = vunpack.c.h.b16 %v782
        %v1298 = vunpack.c.l.b16 %v783
        %v1299 = vunpack.c.h.b16 %v783
        %v1300 = vunpack.c.l.b16 %v784
        %v1301 = vunpack.c.h.b16 %v784
        %v1302 = vunpack.c.l.b16 %v785
        %v1303 = vunpack.c.h.b16 %v785
        %v1304 = vunpack.c.l.b16 %v786
        %v1305 = vunpack.c.h.b16 %v786
        %v1306 = vunpack.c.l.b16 %v787
        %v1307 = vunpack.c.h.b16 %v787
        %v1308 = vunpack.c.l.b16 %v788
        %v1309 = vunpack.c.h.b16 %v788
        %v1310 = vunpack.c.l.b16 %v789
        %v1311 = vunpack.c.h.b16 %v789
        %v1312 = vunpack.c.l.b16 %v790
        %v1313 = vunpack.c.h.b16 %v790
        %v1314 = vunpack.c.l.b16 %v791
        %v1315 = vunpack.c.h.b16 %v791
        %v1316 = vunpack.c.l.b16 %v792
        %v1317 = vunpack.c.h.b16 %v792
        %v1318 = vunpack.c.l.b16 %v793
        %v1319 = vunpack.c.h.b16 %v793
        %v1320 = vunpack.c.l.b16 %v794
        %v1321 = vunpack.c.h.b16 %v794
        %v1322 = vunpack.c.l.b16 %v795
        %v1323 = vunpack.c.h.b16 %v795
        %v1324 = vunpack.c.l.b16 %v796
        %v1325 = vunpack.c.h.b16 %v796
        %v1326 = vunpack.c.l.b16 %v797
        %v1327 = vunpack.c.h.b16 %v797
        %v1328 = vunpack.c.l.b16 %v798
        %v1329 = vunpack.c.h.b16 %v798
        %v1330 = vunpack.c.l.b16 %v799
        %v1331 = vunpack.c.h.b16 %v799
        %v1332 = vunpack.c.l.b16 %v800
        %v1333 = vunpack.c.h.b16 %v800
        %v1334 = vunpack.c.l.b16 %v801
        %v1335 = vunpack.c.h.b16 %v801
        %v1336 = vunpack.c.l.b16 %v802
        %v1337 = vunpack.c.h.b16 %v802
        %v1338 = vunpack.c.l.b16 %v803
        %v1339 = vunpack.c.h.b16 %v803
        %v1340 = vunpack.c.l.b16 %v804
        %v1341 = vunpack.c.h.b16 %v804
        %v1342 = vunpack.c.l.b16 %v805
        %v1343 = vunpack.c.h.b16 %v805
        %v1344 = vunpack.c.l.b16 %v806
        %v1345 = vunpack.c.h.b16 %v806
        %v1346 = vunpack.c.l.b16 %v807
        %v1347 = vunpack.c.h.b16 %v807
        %v1348 = vunpack.c.l.b16 %v808
        %v1349 = vunpack.c.h.b16 %v808
        %v1350 = vunpack.c.l.b16 %v809
        %v1351 = vunpack.c.h.b16 %v809
        %v1352 = vunpack.c.l.b16 %v810
        %v1353 = vunpack.c.h.b16 %v810
        %v1354 = vunpack.c.l.b16 %v811
        %v1355 = vunpack.c.h.b16 %v811
        %v1356 = vunpack.c.l.b16 %v812
        %v1357 = vunpack.c.h.b16 %v812
        %v1358 = vunpack.c.l.b16 %v813
        %v1359 = vunpack.c.h.b16 %v813
        %v1360 = vunpack.c.l.b16 %v814
        %v1361 = vunpack.c.h.b16 %v814
        %v1362 = vunpack.c.l.b16 %v815
        %v1363 = vunpack.c.h.b16 %v815
        %v1364 = vunpack.c.l.b16 %v816
        %v1365 = vunpack.c.h.b16 %v816
        %v1366 = vunpack.c.l.b16 %v817
        %v1367 = vunpack.c.h.b16 %v817
        %v1368 = vunpack.c.l.b16 %v818
        %v1369 = vunpack.c.h.b16 %v818
        %v1370 = vunpack.c.l.b16 %v819
        %v1371 = vunpack.c.h.b16 %v819
        %v1372 = vunpack.c.l.b16 %v820
        %v1373 = vunpack.c.h.b16 %v820
        %v1374 = vunpack.c.l.b16 %v821
        %v1375 = vunpack.c.h.b16 %v821
        %v1376 = vunpack.c.l.b16 %v822
        %v1377 = vunpack.c.h.b16 %v822
        %v1378 = vunpack.c.l.b16 %v823
        %v1379 = vunpack.c.h.b16 %v823
        %v1380 = vunpack.c.l.b16 %v824
        %v1381 = vunpack.c.h.b16 %v824
        %v1382 = vunpack.c.l.b16 %v825
        %v1383 = vunpack.c.h.b16 %v825
        %v1384 = vunpack.c.l.b16 %v826
        %v1385 = vunpack.c.h.b16 %v826
        %v1386 = vunpack.c.l.b16 %v827
        %v1387 = vunpack.c.h.b16 %v827
        %v1388 = vunpack.c.l.b16 %v828
        %v1389 = vunpack.c.h.b16 %v828
        %v1390 = vunpack.c.l.b16 %v829
        %v1391 = vunpack.c.h.b16 %v829
        %v1392 = vunpack.c.l.b16 %v830
        %v1393 = vunpack.c.h.b16 %v830
        %v1394 = vunpack.c.l.b16 %v831
        %v1395 = vunpack.c.h.b16 %v831
        %v1396 = vunpack.c.l.b16 %v832
        %v1397 = vunpack.c.h.b16 %v832
        %v1398 = vunpack.c.l.b16 %v833
        %v1399 = vunpack.c.h.b16 %v833
        %v1400 = vunpack.c.l.b16 %v834
        %v1401 = vunpack.c.h.b16 %v834
        %v1402 = vunpack.c.l.b16 %v835
        %v1403 = vunpack.c.h.b16 %v835
        %v1404 = vunpack.c.l.b16 %v836
        %v1405 = vunpack.c.h.b16 %v836
        %v1406 = vunpack.c.l.b16 %v837
        %v1407 = vunpack.c.h.b16 %v837
        %v1408 = vunpack.c.l.b16 %v838
        %v1409 = vunpack.c.h.b16 %v838
        %v1410 = vunpack.c.l.b16 %v839
        %v1411 = vunpack.c.h.b16 %v839
        %v1412 = vunpack.c.l.b16 %v840
        %v1413 = vunpack.c.h.b16 %v840
        %v1414 = vunpack.c.l.b16 %v841
        %v1415 = vunpack.c.h.b16 %v841
        %v1416 = vunpack.c.l.b16 %v842
        %v1417 = vunpack.c.h.b16 %v842
        %v1418 = vunpack.c.l.b16 %v843
        %v1419 = vunpack.c.h.b16 %v843
        %v1420 = vunpack.c.l.b16 %v844
        %v1421 = vunpack.c.h.b16 %v844
        %v1422 = vunpack.c.l.b16 %v845
        %v1423 = vunpack.c.h.b16 %v845
        %v1424 = vunpack.c.l.b16 %v846
        %v1425 = vunpack.c.h.b16 %v846
        %v1426 = vunpack.c.l.b16 %v847
        %v1427 = vunpack.c.h.b16 %v847
        %v1428 = vunpack.c.l.b16 %v848
        %v1429 = vunpack.c.h.b16 %v848
        %v1430 = vunpack.c.l.b16 %v849
        %v1431 = vunpack.c.h.b16 %v849
        %v1432 = vunpack.c.l.b16 %v850
        %v1433 = vunpack.c.h.b16 %v850
        %v1434 = vunpack.c.l.b16 %v851
        %v1435 = vunpack.c.h.b16 %v851
        %v1436 = vunpack.c.l.b16 %v852
        %v1437 = vunpack.c.h.b16 %v852
        %v1438 = vunpack.c.l.b16 %v853
        %v1439 = vunpack.c.h.b16 %v853
        %v1440 = vunpack.c.l.b16 %v854
        %v1441 = vunpack.c.h.b16 %v854
        %v1442 = vunpack.c.l.b16 %v855
        %v1443 = vunpack.c.h.b16 %v855
        %v1444 = vunpack.c.l.b16 %v856
        %v1445 = vunpack.c.h.b16 %v856
        %v1446 = vunpack.c.l.b16 %v857
        %v1447 = vunpack.c.h.b16 %v857
        %v1448 = vunpack.c.l.b16 %v858
        %v1449 = vunpack.c.h.b16 %v858
        %v1450 = vunpack.c.l.b16 %v859
        %v1451 = vunpack.c.h.b16 %v859
        %v1452 = vunpack.c.l.b16 %v860
        %v1453 = vunpack.c.h.b16 %v860
        %v1454 = vunpack.c.l.b16 %v861
        %v1455 = vunpack.c.h.b16 %v861
        %v1456 = vunpack.c.l.b16 %v862
        %v1457 = vunpack.c.h.b16 %v862
        %v1458 = vunpack.c.l.b16 %v863
        %v1459 = vunpack.c.h.b16 %v863
        %v1460 = vunpack.c.l.b16 %v864
        %v1461 = vunpack.c.h.b16 %v864
        %v1462 = vunpack.c.l.b16 %v865
        %v1463 = vunpack.c.h.b16 %v865
        %v1464 = vunpack.c.l.b16 %v866
        %v1465 = vunpack.c.h.b16 %v866
        %v1466 = vunpack.c.l.b16 %v867
        %v1467 = vunpack.c.h.b16 %v867
        %v1468 = vunpack.c.l.b16 %v868
        %v1469 = vunpack.c.h.b16 %v868
        %v1470 = vunpack.c.l.b16 %v869
        %v1471 = vunpack.c.h.b16 %v869
        %v1472 = vunpack.c.l.b16 %v870
        %v1473 = vunpack.c.h.b16 %v870
        %v1474 = vunpack.c.l.b16 %v871
        %v1475 = vunpack.c.h.b16 %v871
        %v1476 = vunpack.c.l.b16 %v872
        %v1477 = vunpack.c.h.b16 %v872
        %v1478 = vunpack.c.l.b16 %v873
        %v1479 = vunpack.c.h.b16 %v873
        %v1480 = vunpack.c.l.b16 %v874
        %v1481 = vunpack.c.h.b16 %v874
        %v1482 = vunpack.c.l.b16 %v875
        %v1483 = vunpack.c.h.b16 %v875
        %v1484 = vunpack.c.l.b16 %v876
        %v1485 = vunpack.c.h.b16 %v876
        %v1486 = vunpack.c.l.b16 %v877
        %v1487 = vunpack.c.h.b16 %v877
        %v1488 = vunpack.c.l.b16 %v878
        %v1489 = vunpack.c.h.b16 %v878
        %v1490 = vunpack.c.l.b16 %v879
        %v1491 = vunpack.c.h.b16 %v879
        %v1492 = vunpack.c.l.b16 %v880
        %v1493 = vunpack.c.h.b16 %v880
        %v1494 = vunpack.c.l.b16 %v881
        %v1495 = vunpack.c.h.b16 %v881
        %v1496 = vunpack.c.l.b16 %v882
        %v1497 = vunpack.c.h.b16 %v882
        %v1498 = vunpack.c.l.b16 %v883
        %v1499 = vunpack.c.h.b16 %v883
        %v1500 = vunpack.c.l.b16 %v884
        %v1501 = vunpack.c.h.b16 %v884
        %v1502 = vunpack.c.l.b16 %v885
        %v1503 = vunpack.c.h.b16 %v885
        %v1504 = vunpack.c.l.b16 %v886
        %v1505 = vunpack.c.h.b16 %v886
        %v1506 = vunpack.c.l.b16 %v887
        %v1507 = vunpack.c.h.b16 %v887
        %v1508 = vunpack.c.l.b16 %v888
        %v1509 = vunpack.c.h.b16 %v888
        %v1510 = vunpack.c.l.b16 %v889
        %v1511 = vunpack.c.h.b16 %v889
        %v1512 = vunpack.c.l.b16 %v890
        %v1513 = vunpack.c.h.b16 %v890
        %v1514 = vunpack.c.l.b16 %v891
        %v1515 = vunpack.c.h.b16 %v891
        %v1516 = vunpack.c.l.b16 %v892
        %v1517 = vunpack.c.h.b16 %v892
        %v1518 = vunpack.c.l.b16 %v893
        %v1519 = vunpack.c.h.b16 %v893
        %v1520 = vunpack.c.l.b16 %v894
        %v1521 = vunpack.c.h.b16 %v894
        %v1522 = vunpack.c.l.b16 %v895
        %v1523 = vunpack.c.h.b16 %v895
        %v1524 = vunpack.c.l.b16 %v896
        %v1525 = vunpack.c.h.b16 %v896
        %v1526 = vunpack.c.l.b16 %v897
        %v1527 = vunpack.c.h.b16 %v897
        %v1528 = vunpack.c.l.b16 %v898
        %v1529 = vunpack.c.h.b16 %v898
        %v1530 = vunpack.c.l.b16 %v899
        %v1531 = vunpack.c.h.b16 %v899
        %v1532 = vunpack.c.l.b16 %v900
        %v1533 = vunpack.c.h.b16 %v900
        %v1534 = vunpack.c.l.b16 %v901
        %v1535 = vunpack.c.h.b16 %v901
        %v1536 = vunpack.c.l.b16 %v902
        %v1537 = vunpack.c.h.b16 %v902
        %v1538 = vunpack.c.l.b16 %v903
        %v1539 = vunpack.c.h.b16 %v903
        %v1540 = vunpack.c.l.b16 %v904
        %v1541 = vunpack.c.h.b16 %v904
        %v1542 = vunpack.c.l.b16 %v905
        %v1543 = vunpack.c.h.b16 %v905
        %v1544 = vunpack.c.l.b16 %v906
        %v1545 = vunpack.c.h.b16 %v906
        %v1546 = vunpack.c.l.b16 %v907
        %v1547 = vunpack.c.h.b16 %v907
        %v1548 = vunpack.c.l.b16 %v908
        %v1549 = vunpack.c.h.b16 %v908
        %v1550 = vunpack.c.l.b16 %v909
        %v1551 = vunpack.c.h.b16 %v909
        %v1552 = vunpack.c.l.b16 %v910
        %v1553 = vunpack.c.h.b16 %v910
        %v1554 = vunpack.c.l.b16 %v911
        %v1555 = vunpack.c.h.b16 %v911
        %v1556 = vunpack.c.l.b16 %v912
        %v1557 = vunpack.c.h.b16 %v912
        %v1558 = vunpack.c.l.b16 %v913
        %v1559 = vunpack.c.h.b16 %v913
        %v1560 = vunpack.c.l.b16 %v914
        %v1561 = vunpack.c.h.b16 %v914
        %v1562 = vunpack.c.l.b16 %v915
        %v1563 = vunpack.c.h.b16 %v915
        %v1564 = vunpack.c.l.b16 %v916
        %v1565 = vunpack.c.h.b16 %v916
        %v1566 = vunpack.c.l.b16 %v917
        %v1567 = vunpack.c.h.b16 %v917
        %v1568 = vunpack.c.l.b16 %v918
        %v1569 = vunpack.c.h.b16 %v918
        %v1570 = vunpack.c.l.b16 %v919
        %v1571 = vunpack.c.h.b16 %v919
        %v1572 = vunpack.c.l.b16 %v920
        %v1573 = vunpack.c.h.b16 %v920
        %v1574 = vunpack.c.l.b16 %v921
        %v1575 = vunpack.c.h.b16 %v921
        %v1576 = vunpack.c.l.b16 %v922
        %v1577 = vunpack.c.h.b16 %v922
        %v1578 = vunpack.c.l.b16 %v923
        %v1579 = vunpack.c.h.b16 %v923
        %v1580 = vunpack.c.l.b16 %v924
        %v1581 = vunpack.c.h.b16 %v924
        %v1582 = vunpack.c.l.b16 %v925
        %v1583 = vunpack.c.h.b16 %v925
        %v1584 = vunpack.c.l.b16 %v926
        %v1585 = vunpack.c.h.b16 %v926
        %v1586 = vunpack.c.l.b16 %v927
        %v1587 = vunpack.c.h.b16 %v927
        %v1588 = vunpack.c.l.b16 %v928
        %v1589 = vunpack.c.h.b16 %v928
        %v1590 = vunpack.c.l.b16 %v929
        %v1591 = vunpack.c.h.b16 %v929
        %v1592 = vunpack.c.l.b16 %v930
        %v1593 = vunpack.c.h.b16 %v930
        %v1594 = vunpack.c.l.b16 %v931
        %v1595 = vunpack.c.h.b16 %v931
        %v1596 = vunpack.c.l.b16 %v932
        %v1597 = vunpack.c.h.b16 %v932
        %v1598 = vunpack.c.l.b16 %v933
        %v1599 = vunpack.c.h.b16 %v933
        %v1600 = vunpack.c.l.b16 %v934
        %v1601 = vunpack.c.h.b16 %v934
        %v1602 = vunpack.c.l.b16 %v935
        %v1603 = vunpack.c.h.b16 %v935
        %v1604 = vunpack.c.l.b16 %v936
        %v1605 = vunpack.c.h.b16 %v936
        %v1606 = vunpack.c.l.b16 %v937
        %v1607 = vunpack.c.h.b16 %v937
        %v1608 = vunpack.c.l.b16 %v938
        %v1609 = vunpack.c.h.b16 %v938
        %v1610 = vunpack.c.l.b16 %v939
        %v1611 = vunpack.c.h.b16 %v939
        %v1612 = vunpack.c.l.b16 %v940
        %v1613 = vunpack.c.h.b16 %v940
        %v1614 = vunpack.c.l.b16 %v941
        %v1615 = vunpack.c.h.b16 %v941
        %v1616 = vunpack.c.l.b16 %v942
        %v1617 = vunpack.c.h.b16 %v942
        %v1618 = vunpack.c.l.b16 %v943
        %v1619 = vunpack.c.h.b16 %v943
        %v1620 = vunpack.c.l.b16 %v944
        %v1621 = vunpack.c.h.b16 %v944
        %v1622 = vunpack.c.l.b16 %v945
        %v1623 = vunpack.c.h.b16 %v945
        %v1624 = vunpack.c.l.b16 %v946
        %v1625 = vunpack.c.h.b16 %v946
        %v1626 = vunpack.c.l.b16 %v947
        %v1627 = vunpack.c.h.b16 %v947
        %v1628 = vunpack.c.l.b16 %v948
        %v1629 = vunpack.c.h.b16 %v948
        %v1630 = vunpack.c.l.b16 %v949
        %v1631 = vunpack.c.h.b16 %v949
        %v1632 = vunpack.c.l.b16 %v950
        %v1633 = vunpack.c.h.b16 %v950
        %v1634 = vunpack.c.l.b16 %v951
        %v1635 = vunpack.c.h.b16 %v951
        %v1636 = vunpack.c.l.b16 %v952
        %v1637 = vunpack.c.h.b16 %v952
        %v1638 = vunpack.c.l.b16 %v953
        %v1639 = vunpack.c.h.b16 %v953
        %v1640 = vunpack.c.l.b16 %v954
        %v1641 = vunpack.c.h.b16 %v954
        %v1642 = vunpack.c.l.b16 %v955
        %v1643 = vunpack.c.h.b16 %v955
        %v1644 = vunpack.c.l.b16 %v956
        %v1645 = vunpack.c.h.b16 %v956
        %v1646 = vunpack.c.l.b16 %v957
        %v1647 = vunpack.c.h.b16 %v957
        %v1648 = vunpack.c.l.b16 %v958
        %v1649 = vunpack.c.h.b16 %v958
        %v1650 = vunpack.c.l.b16 %v959
        %v1651 = vunpack.c.h.b16 %v959
        %v1652 = vunpack.c.l.b16 %v960
        %v1653 = vunpack.c.h.b16 %v960
        %v1654 = vunpack.c.l.b16 %v961
        %v1655 = vunpack.c.h.b16 %v961
        %v1656 = vunpack.c.l.b16 %v962
        %v1657 = vunpack.c.h.b16 %v962
        %v1658 = vunpack.c.l.b16 %v963
        %v1659 = vunpack.c.h.b16 %v963
        %v1660 = vunpack.c.l.b16 %v964
        %v1661 = vunpack.c.h.b16 %v964
        %v1662 = vunpack.c.l.b16 %v965
        %v1663 = vunpack.c.h.b16 %v965
        %v1664 = vunpack.c.l.b16 %v966
        %v1665 = vunpack.c.h.b16 %v966
        %v1666 = vunpack.c.l.b16 %v967
        %v1667 = vunpack.c.h.b16 %v967
        %v1668 = vunpack.c.l.b16 %v968
        %v1669 = vunpack.c.h.b16 %v968
        %v1670 = vunpack.c.l.b16 %v969
        %v1671 = vunpack.c.h.b16 %v969
        %v1672 = vunpack.c.l.b16 %v970
        %v1673 = vunpack.c.h.b16 %v970
        %v1674 = vunpack.c.l.b16 %v971
        %v1675 = vunpack.c.h.b16 %v971
        %v1676 = vunpack.c.l.b16 %v972
        %v1677 = vunpack.c.h.b16 %v972
        %v1678 = vunpack.c.l.b16 %v973
        %v1679 = vunpack.c.h.b16 %v973
        %v1680 = vunpack.c.l.b16 %v974
        %v1681 = vunpack.c.h.b16 %v974
        %v1682 = vunpack.c.l.b16 %v975
        %v1683 = vunpack.c.h.b16 %v975
        %v1684 = vunpack.c.l.b16 %v976
        %v1685 = vunpack.c.h.b16 %v976
        %v1686 = vunpack.c.l.b16 %v977
        %v1687 = vunpack.c.h.b16 %v977
        %v1688 = vunpack.c.l.b16 %v978
        %v1689 = vunpack.c.h.b16 %v978
        %v1690 = vunpack.c.l.b16 %v979
        %v1691 = vunpack.c.h.b16 %v979
        %v1692 = vunpack.c.l.b16 %v980
        %v1693 = vunpack.c.h.b16 %v980
        %v1694 = vunpack.c.l.b16 %v981
        %v1695 = vunpack.c.h.b16 %v981
        %v1696 = vunpack.c.l.b16 %v982
        %v1697 = vunpack.c.h.b16 %v982
        %v1698 = vunpack.c.l.b16 %v983
        %v1699 = vunpack.c.h.b16 %v983
        %v1700 = vunpack.c.l.b16 %v984
        %v1701 = vunpack.c.h.b16 %v984
        %v1702 = vunpack.c.l.b16 %v985
        %v1703 = vunpack.c.h.b16 %v985
        %v1704 = vunpack.c.l.b16 %v986
        %v1705 = vunpack.c.h.b16 %v986
        %v1706 = vunpack.c.l.b16 %v987
        %v1707 = vunpack.c.h.b16 %v987
        %v1708 = vpack.c.b16 %v1348, %v1228
        %v1709 = vpack.c.b16 %v1349, %v1229
        %v1710 = vpack.c.b16 %v1350, %v1230
        %v1711 = vpack.c.b16 %v1351, %v1231
        %v1712 = vpack.c.b16 %v1352, %v1232
        %v1713 = vpack.c.b16 %v1353, %v1233
        %v1714 = vpack.c.b16 %v1354, %v1234
        %v1715 = vpack.c.b16 %v1355, %v1235
        %v1716 = vpack.c.b16 %v1356, %v1236
        %v1717 = vpack.c.b16 %v1357, %v1237
        %v1718 = vpack.c.b16 %v1358, %v1238
        %v1719 = vpack.c.b16 %v1359, %v1239
        %v1720 = vpack.c.b16 %v1360, %v1240
        %v1721 = vpack.c.b16 %v1361, %v1241
        %v1722 = vpack.c.b16 %v1362, %v1242
        %v1723 = vpack.c.b16 %v1363, %v1243
        %v1724 = vpack.c.b16 %v1364, %v1244
        %v1725 = vpack.c.b16 %v1365, %v1245
        %v1726 = vpack.c.b16 %v1366, %v1246
        %v1727 = vpack.c.b16 %v1367, %v1247
        %v1728 = vpack.c.b16 %v1368, %v1248
        %v1729 = vpack.c.b16 %v1369, %v1249
        %v1730 = vpack.c.b16 %v1370, %v1250
        %v1731 = vpack.c.b16 %v1371, %v1251
        %v1732 = vpack.c.b16 %v1372, %v1252
        %v1733 = vpack.c.b16 %v1373, %v1253
        %v1734 = vpack.c.b16 %v1374, %v1254
        %v1735 = vpack.c.b16 %v1375, %v1255
        %v1736 = vpack.c.b16 %v1376, %v1256
        %v1737 = vpack.c.b16 %v1377, %v1257
        %v1738 = vpack.c.b16 %v1378, %v1258
        %v1739 = vpack.c.b16 %v1379, %v1259
        %v1740 = vpack.c.b16 %v1380, %v1260
        %v1741 = vpack.c.b16 %v1381, %v1261
        %v1742 = vpack.c.b16 %v1382, %v1262
        %v1743 = vpack.c.b16 %v1383, %v1263
        %v1744 = vpack.c.b16 %v1384, %v1264
        %v1745 = vpack.c.b16 %v1385, %v1265
        %v1746 = vpack.c.b16 %v1386, %v1266
        %v1747 = vpack.c.b16 %v1387, %v1267
        %v1748 = vpack.c.b16 %v1388, %v1268
        %v1749 = vpack.c.b16 %v1389, %v1269
        %v1750 = vpack.c.b16 %v1390, %v1270
        %v1751 = vpack.c.b16 %v1391, %v1271
        %v1752 = vpack.c.b16 %v1392, %v1272
        %v1753 = vpack.c.b16 %v1393, %v1273
        %v1754 = vpack.c.b16 %v1394, %v1274
        %v1755 = vpack.c.b16 %v1395, %v1275
        %v1756 = vpack.c.b16 %v1396, %v1276
        %v1757 = vpack.c.b16 %v1397, %v1277
        %v1758 = vpack.c.b16 %v1398, %v1278
        %v1759 = vpack.c.b16 %v1399, %v1279
        %v1760 = vpack.c.b16 %v1400, %v1280
        %v1761 = vpack.c.b16 %v1401, %v1281
        %v1762 = vpack.c.b16 %v1402, %v1282
        %v1763 = vpack.c.b16 %v1403, %v1283
        %v1764 = vpack.c.b16 %v1404, %v1284
        %v1765 = vpack.c.b16 %v1405, %v1285
        %v1766 = vpack.c.b16 %v1406, %v1286
        %v1767 = vpack.c.b16 %v1407, %v1287
        %v1768 = vpack.c.b16 %v1408, %v1288
        %v1769 = vpack.c.b16 %v1409, %v1289
        %v1770 = vpack.c.b16 %v1410, %v1290
        %v1771 = vpack.c.b16 %v1411, %v1291
        %v1772 = vpack.c.b16 %v1412, %v1292
        %v1773 = vpack.c.b16 %v1413, %v1293
        %v1774 = vpack.c.b16 %v1414, %v1294
        %v1775 = vpack.c.b16 %v1415, %v1295
        %v1776 = vpack.c.b16 %v1416, %v1296
        %v1777 = vpack.c.b16 %v1417, %v1297
        %v1778 = vpack.c.b16 %v1418, %v1298
        %v1779 = vpack.c.b16 %v1419, %v1299
        %v1780 = vpack.c.b16 %v1420, %v1300
        %v1781 = vpack.c.b16 %v1421, %v1301
        %v1782 = vpack.c.b16 %v1422, %v1302
        %v1783 = vpack.c.b16 %v1423, %v1303
        %v1784 = vpack.c.b16 %v1424, %v1304
        %v1785 = vpack.c.b16 %v1425, %v1305
        %v1786 = vpack.c.b16 %v1426, %v1306
        %v1787 = vpack.c.b16 %v1427, %v1307
        %v1788 = vpack.c.b16 %v1428, %v1308
        %v1789 = vpack.c.b16 %v1429, %v1309
        %v1790 = vpack.c.b16 %v1430, %v1310
        %v1791 = vpack.c.b16 %v1431, %v1311
        %v1792 = vpack.c.b16 %v1432, %v1312
        %v1793 = vpack.c.b16 %v1433, %v1313
        %v1794 = vpack.c.b16 %v1434, %v1314
        %v1795 = vpack.c.b16 %v1435, %v1315
        %v1796 = vpack.c.b16 %v1436, %v1316
        %v1797 = vpack.c.b16 %v1437, %v1317
        %v1798 = vpack.c.b16 %v1438, %v1318
        %v1799 = vpack.c.b16 %v1439, %v1319
        %v1800 = vpack.c.b16 %v1440, %v1320
        %v1801 = vpack.c.b16 %v1441, %v1321
        %v1802 = vpack.c.b16 %v1442, %v1322
        %v1803 = vpack.c.b16 %v1443, %v1323
        %v1804 = vpack.c.b16 %v1444, %v1324
        %v1805 = vpack.c.b16 %v1445, %v1325
        %v1806 = vpack.c.b16 %v1446, %v1326
        %v1807 = vpack.c.b16 %v1447, %v1327
        %v1808 = vpack.c.b16 %v1448, %v1328
        %v1809 = vpack.c.b16 %v1449, %v1329
        %v1810 = vpack.c.b16 %v1450, %v1330
        %v1811 = vpack.c.b16 %v1451, %v1331
        %v1812 = vpack.c.b16 %v1452, %v1332
        %v1813 = vpack.c.b16 %v1453, %v1333
        %v1814 = vpack.c.b16 %v1454, %v1334
        %v1815 = vpack.c.b16 %v1455, %v1335
        %v1816 = vpack.c.b16 %v1456, %v1336
        %v1817 = vpack.c.b16 %v1457, %v1337
        %v1818 = vpack.c.b16 %v1458, %v1338
        %v1819 = vpack.c.b16 %v1459, %v1339
        %v1820 = vpack.c.b16 %v1460, %v1340
        %v1821 = vpack.c.b16 %v1461, %v1341
        %v1822 = vpack.c.b16 %v1462, %v1342
        %v1823 = vpack.c.b16 %v1463, %v1343
        %v1824 = vpack.c.b16 %v1464, %v1344
        %v1825 = vpack.c.b16 %v1465, %v1345
        %v1826 = vpack.c.b16 %v1466, %v1346
        %v1827 = vpack.c.b16 %v1467, %v1347
        %v1828 = vpack.c.b16 %v1588, %v1468
        %v1829 = vpack.c.b16 %v1589, %v1469
        %v1830 = vpack.c.b16 %v1590, %v1470
        %v1831 = vpack.c.b16 %v1591, %v1471
        %v1832 = vpack.c.b16 %v1592, %v1472
        %v1833 = vpack.c.b16 %v1593, %v1473
        %v1834 = vpack.c.b16 %v1594, %v1474
        %v1835 = vpack.c.b16 %v1595, %v1475
        %v1836 = vpack.c.b16 %v1596, %v1476
        %v1837 = vpack.c.b16 %v1597, %v1477
        %v1838 = vpack.c.b16 %v1598, %v1478
        %v1839 = vpack.c.b16 %v1599, %v1479
        %v1840 = vpack.c.b16 %v1600, %v1480
        %v1841 = vpack.c.b16 %v1601, %v1481
        %v1842 = vpack.c.b16 %v1602, %v1482
        %v1843 = vpack.c.b16 %v1603, %v1483
        %v1844 = vpack.c.b16 %v1604, %v1484
        %v1845 = vpack.c.b16 %v1605, %v1485
        %v1846 = vpack.c.b16 %v1606, %v1486
        %v1847 = vpack.c.b16 %v1607, %v1487
        %v1848 = vpack.c.b16 %v1608, %v1488
        %v1849 = vpack.c.b16 %v1609, %v1489
        %v1850 = vpack.c.b16 %v1610, %v1490
        %v1851 = vpack.c.b16 %v1611, %v1491
        %v1852 = vpack.c.b16 %v1612, %v1492
        %v1853 = vpack.c.b16 %v1613, %v1493
        %v1854 = vpack.c.b16 %v1614, %v1494
        %v1855 = vpack.c.b16 %v1615, %v1495
        %v1856 = vpack.c.b16 %v1616, %v1496
        %v1857 = vpack.c.b16 %v1617, %v1497
        %v1858 = vpack.c.b16 %v1618, %v1498
        %v1859 = vpack.c.b16 %v1619, %v1499
        %v1860 = vpack.c.b16 %v1620, %v1500
        %v1861 = vpack.c.b16 %v1621, %v1501
        %v1862 = vpack.c.b16 %v1622, %v1502
        %v1863 = vpack.c.b16 %v1623, %v1503
        %v1864 = vpack.c.b16 %v1624, %v1504
        %v1865 = vpack.c.b16 %v1625, %v1505
        %v1866 = vpack.c.b16 %v1626, %v1506
        %v1867 = vpack.c.b16 %v1627, %v1507
        %v1868 = vpack.c.b16 %v1628, %v1508
        %v1869 = vpack.c.b16 %v1629, %v1509
        %v1870 = vpack.c.b16 %v1630, %v1510
        %v1871 = vpack.c.b16 %v1631, %v1511
        %v1872 = vpack.c.b16 %v1632, %v1512
        %v1873 = vpack.c.b16 %v1633, %v1513
        %v1874 = vpack.c.b16 %v1634, %v1514
        %v1875 = vpack.c.b16 %v1635, %v1515
        %v1876 = vpack.c.b16 %v1636, %v1516
        %v1877 = vpack.c.b16 %v1637, %v1517
        %v1878 = vpack.c.b16 %v1638, %v1518
        %v1879 = vpack.c.b16 %v1639, %v1519
        %v1880 = vpack.c.b16 %v1640, %v1520
        %v1881 = vpack.c.b16 %v1641, %v1521
        %v1882 = vpack.c.b16 %v1642, %v1522
        %v1883 = vpack.c.b16 %v1643, %v1523
        %v1884 = vpack.c.b16 %v1644, %v1524
        %v1885 = vpack.c.b16 %v1645, %v1525
        %v1886 = vpack.c.b16 %v1646, %v1526
        %v1887 = vpack.c.b16 %v1647, %v1527
        %v1888 = vpack.c.b16 %v1648, %v1528
        %v1889 = vpack.c.b16 %v1649, %v1529
        %v1890 = vpack.c.b16 %v1650, %v1530
        %v1891 = vpack.c.b16 %v1651, %v1531
        %v1892 = vpack.c.b16 %v1652, %v1532
        %v1893 = vpack.c.b16 %v1653, %v1533
        %v1894 = vpack.c.b16 %v1654, %v1534
        %v1895 = vpack.c.b16 %v1655, %v1535
        %v1896 = vpack.c.b16 %v1656, %v1536
        %v1897 = vpack.c.b16 %v1657, %v1537
        %v1898 = vpack.c.b16 %v1658, %v1538
        %v1899 = vpack.c.b16 %v1659, %v1539
        %v1900 = vpack.c.b16 %v1660, %v1540
        %v1901 = vpack.c.b16 %v1661, %v1541
        %v1902 = vpack.c.b16 %v1662, %v1542
        %v1903 = vpack.c.b16 %v1663, %v1543
        %v1904 = vpack.c.b16 %v1664, %v1544
        %v1905 = vpack.c.b16 %v1665, %v1545
        %v1906 = vpack.c.b16 %v1666, %v1546
        %v1907 = vpack.c.b16 %v1667, %v1547
        %v1908 = vpack.c.b16 %v1668, %v1548
        %v1909 = vpack.c.b16 %v1669, %v1549
        %v1910 = vpack.c.b16 %v1670, %v1550
        %v1911 = vpack.c.b16 %v1671, %v1551
        %v1912 = vpack.c.b16 %v1672, %v1552
        %v1913 = vpack.c.b16 %v1673, %v1553
        %v1914 = vpack.c.b16 %v1674, %v1554
        %v1915 = vpack.c.b16 %v1675, %v1555
        %v1916 = vpack.c.b16 %v1676, %v1556
        %v1917 = vpack.c.b16 %v1677, %v1557
        %v1918 = vpack.c.b16 %v1678, %v1558
        %v1919 = vpack.c.b16 %v1679, %v1559
        %v1920 = vpack.c.b16 %v1680, %v1560
        %v1921 = vpack.c.b16 %v1681, %v1561
        %v1922 = vpack.c.b16 %v1682, %v1562
        %v1923 = vpack.c.b16 %v1683, %v1563
        %v1924 = vpack.c.b16 %v1684, %v1564
        %v1925 = vpack.c.b16 %v1685, %v1565
        %v1926 = vpack.c.b16 %v1686, %v1566
        %v1927 = vpack.c.b16 %v1687, %v1567
        %v1928 = vpack.c.b16 %v1688, %v1568
        %v1929 = vpack.c.b16 %v1689, %v1569
        %v1930 = vpack.c.b16 %v1690, %v1570
        %v1931 = vpack.c.b16 %v1691, %v1571
        %v1932 = vpack.c.b16 %v1692, %v1572
        %v1933 = vpack.c.b16 %v1693, %v1573
        %v1934 = vpack.c.b16 %v1694, %v1574
        %v1935 = vpack.c.b16 %v1695, %v1575
        %v1936 = vpack.c.b16 %v1696, %v1576
        %v1937 = vpack.c.b16 %v1697, %v1577
        %v1938 = vpack.c.b16 %v1698, %v1578
        %v1939 = vpack.c.b16 %v1699, %v1579
        %v1940 = vpack.c.b16 %v1700, %v1580
        %v1941 = vpack.c.b16 %v1701, %v1581
        %v1942 = vpack.c.b16 %v1702, %v1582
        %v1943 = vpack.c.b16 %v1703, %v1583
        %v1944 = vpack.c.b16 %v1704, %v1584
        %v1945 = vpack.c.b16 %v1705, %v1585
        %v1946 = vpack.c.b16 %v1706, %v1586
        %v1947 = vpack.c.b16 %v1707, %v1587
        %2188 = vmatpush.bf16.xpose.msra.mxu0 0
        %2189 = vmatpush.bf16.xpose.msra.mxu0 0
        %2190 = vmatpush.bf16.xpose.msra.mxu0 0
        %2191 = vmatpush.bf16.xpose.msra.mxu0 0
        %2192 = vmatpush.bf16.xpose.msra.mxu0 0
        %2193 = vmatpush.bf16.xpose.msra.mxu0 0
        %2194 = vmatpush.bf16.xpose.msra.mxu0 %v1828
        %2195 = vmatpush.bf16.xpose.msra.mxu0 %v1708
        %2196 = vmatmul.bf16.gmra.mxu0 %v627
        %v2197 = vpop.f32.mrf.mxu0
        %v2198 = vadd.f32 0.0, %v2197
        %v2199 = vpop.f32.mrf.mxu0
        %2200 = vdwg.mxu0
        %2201 = vmatpush.bf16.xpose.msra.mxu0 0
        %2202 = vmatpush.bf16.xpose.msra.mxu0 0
        %2203 = vmatpush.bf16.xpose.msra.mxu0 0
        %2204 = vmatpush.bf16.xpose.msra.mxu0 0
        %2205 = vmatpush.bf16.xpose.msra.mxu0 0
        %2206 = vmatpush.bf16.xpose.msra.mxu0 0
        %2207 = vmatpush.bf16.xpose.msra.mxu0 %v1829
        %2208 = vmatpush.bf16.xpose.msra.mxu0 %v1709
        %2209 = vmatmul.bf16.gmra.mxu0 %v628
        %v2210 = vpop.f32.mrf.mxu0
        %v2211 = vadd.f32 %v2198, %v2210
        %v2212 = vpop.f32.mrf.mxu0
        %2213 = vdwg.mxu0
        %2214 = vmatpush.bf16.xpose.msra.mxu0 0
        %2215 = vmatpush.bf16.xpose.msra.mxu0 0
        %2216 = vmatpush.bf16.xpose.msra.mxu0 0
        %2217 = vmatpush.bf16.xpose.msra.mxu0 0
        %2218 = vmatpush.bf16.xpose.msra.mxu0 0
        %2219 = vmatpush.bf16.xpose.msra.mxu0 0
        %2220 = vmatpush.bf16.xpose.msra.mxu0 %v1830
        %2221 = vmatpush.bf16.xpose.msra.mxu0 %v1710
        %2222 = vmatmul.bf16.gmra.mxu0 %v629
        %v2223 = vpop.f32.mrf.mxu0
        %v2224 = vadd.f32 %v2211, %v2223
        %v2225 = vpop.f32.mrf.mxu0
        %2226 = vdwg.mxu0
        %2227 = vmatpush.bf16.xpose.msra.mxu0 0
        %2228 = vmatpush.bf16.xpose.msra.mxu0 0
        %2229 = vmatpush.bf16.xpose.msra.mxu0 0
        %2230 = vmatpush.bf16.xpose.msra.mxu0 0
        %2231 = vmatpush.bf16.xpose.msra.mxu0 0
        %2232 = vmatpush.bf16.xpose.msra.mxu0 0
        %2233 = vmatpush.bf16.xpose.msra.mxu0 %v1831
        %2234 = vmatpush.bf16.xpose.msra.mxu0 %v1711
        %2235 = vmatmul.bf16.gmra.mxu0 %v630
        %v2236 = vpop.f32.mrf.mxu0
        %v2237 = vadd.f32 %v2224, %v2236
        %v2238 = vpop.f32.mrf.mxu0
        %2239 = vdwg.mxu0
        %2240 = vmatpush.bf16.xpose.msra.mxu0 0
        %2241 = vmatpush.bf16.xpose.msra.mxu0 0
        %2242 = vmatpush.bf16.xpose.msra.mxu0 0
        %2243 = vmatpush.bf16.xpose.msra.mxu0 0
        %2244 = vmatpush.bf16.xpose.msra.mxu0 0
        %2245 = vmatpush.bf16.xpose.msra.mxu0 0
        %2246 = vmatpush.bf16.xpose.msra.mxu0 %v1832
        %2247 = vmatpush.bf16.xpose.msra.mxu0 %v1712
        %2248 = vmatmul.bf16.gmra.mxu0 %v631
        %v2249 = vpop.f32.mrf.mxu0
        %v2250 = vadd.f32 %v2237, %v2249
        %v2251 = vpop.f32.mrf.mxu0
        %2252 = vdwg.mxu0
        %2253 = vmatpush.bf16.xpose.msra.mxu0 0
        %2254 = vmatpush.bf16.xpose.msra.mxu0 0
        %2255 = vmatpush.bf16.xpose.msra.mxu0 0
        %2256 = vmatpush.bf16.xpose.msra.mxu0 0
        %2257 = vmatpush.bf16.xpose.msra.mxu0 0
        %2258 = vmatpush.bf16.xpose.msra.mxu0 0
        %2259 = vmatpush.bf16.xpose.msra.mxu0 %v1833
        %2260 = vmatpush.bf16.xpose.msra.mxu0 %v1713
        %2261 = vmatmul.bf16.gmra.mxu0 %v632
        %v2262 = vpop.f32.mrf.mxu0
        %v2263 = vadd.f32 %v2250, %v2262
        %v2264 = vpop.f32.mrf.mxu0
        %2265 = vdwg.mxu0
        %2266 = vmatpush.bf16.xpose.msra.mxu0 0
        %2267 = vmatpush.bf16.xpose.msra.mxu0 0
        %2268 = vmatpush.bf16.xpose.msra.mxu0 0
        %2269 = vmatpush.bf16.xpose.msra.mxu0 0
        %2270 = vmatpush.bf16.xpose.msra.mxu0 0
        %2271 = vmatpush.bf16.xpose.msra.mxu0 0
        %2272 = vmatpush.bf16.xpose.msra.mxu0 %v1834
        %2273 = vmatpush.bf16.xpose.msra.mxu0 %v1714
        %2274 = vmatmul.bf16.gmra.mxu0 %v633
        %v2275 = vpop.f32.mrf.mxu0
        %v2276 = vadd.f32 %v2263, %v2275
        %v2277 = vpop.f32.mrf.mxu0
        %2278 = vdwg.mxu0
        %2279 = vmatpush.bf16.xpose.msra.mxu0 0
        %2280 = vmatpush.bf16.xpose.msra.mxu0 0
        %2281 = vmatpush.bf16.xpose.msra.mxu0 0
        %2282 = vmatpush.bf16.xpose.msra.mxu0 0
        %2283 = vmatpush.bf16.xpose.msra.mxu0 0
        %2284 = vmatpush.bf16.xpose.msra.mxu0 0
        %2285 = vmatpush.bf16.xpose.msra.mxu0 %v1835
        %2286 = vmatpush.bf16.xpose.msra.mxu0 %v1715
        %2287 = vmatmul.bf16.gmra.mxu0 %v634
        %v2288 = vpop.f32.mrf.mxu0
        %v2289 = vadd.f32 %v2276, %v2288
        %v2290 = vpop.f32.mrf.mxu0
        %2291 = vdwg.mxu0
        %2292 = vmatpush.bf16.xpose.msra.mxu0 0
        %2293 = vmatpush.bf16.xpose.msra.mxu0 0
        %2294 = vmatpush.bf16.xpose.msra.mxu0 0
        %2295 = vmatpush.bf16.xpose.msra.mxu0 0
        %2296 = vmatpush.bf16.xpose.msra.mxu0 0
        %2297 = vmatpush.bf16.xpose.msra.mxu0 0
        %2298 = vmatpush.bf16.xpose.msra.mxu0 %v1836
        %2299 = vmatpush.bf16.xpose.msra.mxu0 %v1716
        %2300 = vmatmul.bf16.gmra.mxu0 %v635
        %v2301 = vpop.f32.mrf.mxu0
        %v2302 = vadd.f32 %v2289, %v2301
        %v2303 = vpop.f32.mrf.mxu0
        %2304 = vdwg.mxu0
        %2305 = vmatpush.bf16.xpose.msra.mxu0 0
        %2306 = vmatpush.bf16.xpose.msra.mxu0 0
        %2307 = vmatpush.bf16.xpose.msra.mxu0 0
        %2308 = vmatpush.bf16.xpose.msra.mxu0 0
        %2309 = vmatpush.bf16.xpose.msra.mxu0 0
        %2310 = vmatpush.bf16.xpose.msra.mxu0 0
        %2311 = vmatpush.bf16.xpose.msra.mxu0 %v1837
        %2312 = vmatpush.bf16.xpose.msra.mxu0 %v1717
        %2313 = vmatmul.bf16.gmra.mxu0 %v636
        %v2314 = vpop.f32.mrf.mxu0
        %v2315 = vadd.f32 %v2302, %v2314
        %v2316 = vpop.f32.mrf.mxu0
        %2317 = vdwg.mxu0
        %2318 = vmatpush.bf16.xpose.msra.mxu0 0
        %2319 = vmatpush.bf16.xpose.msra.mxu0 0
        %2320 = vmatpush.bf16.xpose.msra.mxu0 0
        %2321 = vmatpush.bf16.xpose.msra.mxu0 0
        %2322 = vmatpush.bf16.xpose.msra.mxu0 0
        %2323 = vmatpush.bf16.xpose.msra.mxu0 0
        %2324 = vmatpush.bf16.xpose.msra.mxu0 %v1838
        %2325 = vmatpush.bf16.xpose.msra.mxu0 %v1718
        %2326 = vmatmul.bf16.gmra.mxu0 %v637
        %v2327 = vpop.f32.mrf.mxu0
        %v2328 = vadd.f32 %v2315, %v2327
        %v2329 = vpop.f32.mrf.mxu0
        %2330 = vdwg.mxu0
        %2331 = vmatpush.bf16.xpose.msra.mxu0 0
        %2332 = vmatpush.bf16.xpose.msra.mxu0 0
        %2333 = vmatpush.bf16.xpose.msra.mxu0 0
        %2334 = vmatpush.bf16.xpose.msra.mxu0 0
        %2335 = vmatpush.bf16.xpose.msra.mxu0 0
        %2336 = vmatpush.bf16.xpose.msra.mxu0 0
        %2337 = vmatpush.bf16.xpose.msra.mxu0 %v1839
        %2338 = vmatpush.bf16.xpose.msra.mxu0 %v1719
        %2339 = vmatmul.bf16.gmra.mxu0 %v638
        %v2340 = vpop.f32.mrf.mxu0
        %v2341 = vadd.f32 %v2328, %v2340
        %v2342 = vpop.f32.mrf.mxu0
        %2343 = vdwg.mxu0
        %2344 = vmatpush.bf16.xpose.msra.mxu0 0
        %2345 = vmatpush.bf16.xpose.msra.mxu0 0
        %2346 = vmatpush.bf16.xpose.msra.mxu0 0
        %2347 = vmatpush.bf16.xpose.msra.mxu0 0
        %2348 = vmatpush.bf16.xpose.msra.mxu0 0
        %2349 = vmatpush.bf16.xpose.msra.mxu0 0
        %2350 = vmatpush.bf16.xpose.msra.mxu0 %v1840
        %2351 = vmatpush.bf16.xpose.msra.mxu0 %v1720
        %2352 = vmatmul.bf16.gmra.mxu0 %v639
        %v2353 = vpop.f32.mrf.mxu0
        %v2354 = vadd.f32 %v2341, %v2353
        %v2355 = vpop.f32.mrf.mxu0
        %2356 = vdwg.mxu0
        %2357 = vmatpush.bf16.xpose.msra.mxu0 0
        %2358 = vmatpush.bf16.xpose.msra.mxu0 0
        %2359 = vmatpush.bf16.xpose.msra.mxu0 0
        %2360 = vmatpush.bf16.xpose.msra.mxu0 0
        %2361 = vmatpush.bf16.xpose.msra.mxu0 0
        %2362 = vmatpush.bf16.xpose.msra.mxu0 0
        %2363 = vmatpush.bf16.xpose.msra.mxu0 %v1841
        %2364 = vmatpush.bf16.xpose.msra.mxu0 %v1721
        %2365 = vmatmul.bf16.gmra.mxu0 %v640
        %v2366 = vpop.f32.mrf.mxu0
        %v2367 = vadd.f32 %v2354, %v2366
        %v2368 = vpop.f32.mrf.mxu0
        %2369 = vdwg.mxu0
        %2370 = vmatpush.bf16.xpose.msra.mxu0 0
        %2371 = vmatpush.bf16.xpose.msra.mxu0 0
        %2372 = vmatpush.bf16.xpose.msra.mxu0 0
        %2373 = vmatpush.bf16.xpose.msra.mxu0 0
        %2374 = vmatpush.bf16.xpose.msra.mxu0 0
        %2375 = vmatpush.bf16.xpose.msra.mxu0 0
        %2376 = vmatpush.bf16.xpose.msra.mxu0 %v1842
        %2377 = vmatpush.bf16.xpose.msra.mxu0 %v1722
        %2378 = vmatmul.bf16.gmra.mxu0 %v641
        %v2379 = vpop.f32.mrf.mxu0
        %v2380 = vadd.f32 %v2367, %v2379
        %v2381 = vpop.f32.mrf.mxu0
        %2382 = vdwg.mxu0
        %2383 = vmatpush.bf16.xpose.msra.mxu0 0
        %2384 = vmatpush.bf16.xpose.msra.mxu0 0
        %2385 = vmatpush.bf16.xpose.msra.mxu0 0
        %2386 = vmatpush.bf16.xpose.msra.mxu0 0
        %2387 = vmatpush.bf16.xpose.msra.mxu0 0
        %2388 = vmatpush.bf16.xpose.msra.mxu0 0
        %2389 = vmatpush.bf16.xpose.msra.mxu0 %v1843
        %2390 = vmatpush.bf16.xpose.msra.mxu0 %v1723
        %2391 = vmatmul.bf16.gmra.mxu0 %v642
        %v2392 = vpop.f32.mrf.mxu0
        %v2393 = vadd.f32 %v2380, %v2392
        %v2394 = vpop.f32.mrf.mxu0
        %2395 = vdwg.mxu0
        %2396 = vmatpush.bf16.xpose.msra.mxu0 0
        %2397 = vmatpush.bf16.xpose.msra.mxu0 0
        %2398 = vmatpush.bf16.xpose.msra.mxu0 0
        %2399 = vmatpush.bf16.xpose.msra.mxu0 0
        %2400 = vmatpush.bf16.xpose.msra.mxu0 0
        %2401 = vmatpush.bf16.xpose.msra.mxu0 0
        %2402 = vmatpush.bf16.xpose.msra.mxu0 %v1844
        %2403 = vmatpush.bf16.xpose.msra.mxu0 %v1724
        %2404 = vmatmul.bf16.gmra.mxu0 %v643
        %v2405 = vpop.f32.mrf.mxu0
        %v2406 = vadd.f32 %v2393, %v2405
        %v2407 = vpop.f32.mrf.mxu0
        %2408 = vdwg.mxu0
        %2409 = vmatpush.bf16.xpose.msra.mxu0 0
        %2410 = vmatpush.bf16.xpose.msra.mxu0 0
        %2411 = vmatpush.bf16.xpose.msra.mxu0 0
        %2412 = vmatpush.bf16.xpose.msra.mxu0 0
        %2413 = vmatpush.bf16.xpose.msra.mxu0 0
        %2414 = vmatpush.bf16.xpose.msra.mxu0 0
        %2415 = vmatpush.bf16.xpose.msra.mxu0 %v1845
        %2416 = vmatpush.bf16.xpose.msra.mxu0 %v1725
        %2417 = vmatmul.bf16.gmra.mxu0 %v644
        %v2418 = vpop.f32.mrf.mxu0
        %v2419 = vadd.f32 %v2406, %v2418
        %v2420 = vpop.f32.mrf.mxu0
        %2421 = vdwg.mxu0
        %2422 = vmatpush.bf16.xpose.msra.mxu0 0
        %2423 = vmatpush.bf16.xpose.msra.mxu0 0
        %2424 = vmatpush.bf16.xpose.msra.mxu0 0
        %2425 = vmatpush.bf16.xpose.msra.mxu0 0
        %2426 = vmatpush.bf16.xpose.msra.mxu0 0
        %2427 = vmatpush.bf16.xpose.msra.mxu0 0
        %2428 = vmatpush.bf16.xpose.msra.mxu0 %v1846
        %2429 = vmatpush.bf16.xpose.msra.mxu0 %v1726
        %2430 = vmatmul.bf16.gmra.mxu0 %v645
        %v2431 = vpop.f32.mrf.mxu0
        %v2432 = vadd.f32 %v2419, %v2431
        %v2433 = vpop.f32.mrf.mxu0
        %2434 = vdwg.mxu0
        %2435 = vmatpush.bf16.xpose.msra.mxu0 0
        %2436 = vmatpush.bf16.xpose.msra.mxu0 0
        %2437 = vmatpush.bf16.xpose.msra.mxu0 0
        %2438 = vmatpush.bf16.xpose.msra.mxu0 0
        %2439 = vmatpush.bf16.xpose.msra.mxu0 0
        %2440 = vmatpush.bf16.xpose.msra.mxu0 0
        %2441 = vmatpush.bf16.xpose.msra.mxu0 %v1847
        %2442 = vmatpush.bf16.xpose.msra.mxu0 %v1727
        %2443 = vmatmul.bf16.gmra.mxu0 %v646
        %v2444 = vpop.f32.mrf.mxu0
        %v2445 = vadd.f32 %v2432, %v2444
        %v2446 = vpop.f32.mrf.mxu0
        %2447 = vdwg.mxu0
        %2448 = vmatpush.bf16.xpose.msra.mxu0 0
        %2449 = vmatpush.bf16.xpose.msra.mxu0 0
        %2450 = vmatpush.bf16.xpose.msra.mxu0 0
        %2451 = vmatpush.bf16.xpose.msra.mxu0 0
        %2452 = vmatpush.bf16.xpose.msra.mxu0 0
        %2453 = vmatpush.bf16.xpose.msra.mxu0 0
        %2454 = vmatpush.bf16.xpose.msra.mxu0 %v1848
        %2455 = vmatpush.bf16.xpose.msra.mxu0 %v1728
        %2456 = vmatmul.bf16.gmra.mxu0 %v647
        %v2457 = vpop.f32.mrf.mxu0
        %v2458 = vadd.f32 %v2445, %v2457
        %v2459 = vpop.f32.mrf.mxu0
        %2460 = vdwg.mxu0
        %2461 = vmatpush.bf16.xpose.msra.mxu0 0
        %2462 = vmatpush.bf16.xpose.msra.mxu0 0
        %2463 = vmatpush.bf16.xpose.msra.mxu0 0
        %2464 = vmatpush.bf16.xpose.msra.mxu0 0
        %2465 = vmatpush.bf16.xpose.msra.mxu0 0
        %2466 = vmatpush.bf16.xpose.msra.mxu0 0
        %2467 = vmatpush.bf16.xpose.msra.mxu0 %v1849
        %2468 = vmatpush.bf16.xpose.msra.mxu0 %v1729
        %2469 = vmatmul.bf16.gmra.mxu0 %v648
        %v2470 = vpop.f32.mrf.mxu0
        %v2471 = vadd.f32 %v2458, %v2470
        %v2472 = vpop.f32.mrf.mxu0
        %2473 = vdwg.mxu0
        %2474 = vmatpush.bf16.xpose.msra.mxu0 0
        %2475 = vmatpush.bf16.xpose.msra.mxu0 0
        %2476 = vmatpush.bf16.xpose.msra.mxu0 0
        %2477 = vmatpush.bf16.xpose.msra.mxu0 0
        %2478 = vmatpush.bf16.xpose.msra.mxu0 0
        %2479 = vmatpush.bf16.xpose.msra.mxu0 0
        %2480 = vmatpush.bf16.xpose.msra.mxu0 %v1850
        %2481 = vmatpush.bf16.xpose.msra.mxu0 %v1730
        %2482 = vmatmul.bf16.gmra.mxu0 %v649
        %v2483 = vpop.f32.mrf.mxu0
        %v2484 = vadd.f32 %v2471, %v2483
        %v2485 = vpop.f32.mrf.mxu0
        %2486 = vdwg.mxu0
        %2487 = vmatpush.bf16.xpose.msra.mxu0 0
        %2488 = vmatpush.bf16.xpose.msra.mxu0 0
        %2489 = vmatpush.bf16.xpose.msra.mxu0 0
        %2490 = vmatpush.bf16.xpose.msra.mxu0 0
        %2491 = vmatpush.bf16.xpose.msra.mxu0 0
        %2492 = vmatpush.bf16.xpose.msra.mxu0 0
        %2493 = vmatpush.bf16.xpose.msra.mxu0 %v1851
        %2494 = vmatpush.bf16.xpose.msra.mxu0 %v1731
        %2495 = vmatmul.bf16.gmra.mxu0 %v650
        %v2496 = vpop.f32.mrf.mxu0
        %v2497 = vadd.f32 %v2484, %v2496
        %v2498 = vpop.f32.mrf.mxu0
        %2499 = vdwg.mxu0
        %2500 = vmatpush.bf16.xpose.msra.mxu0 0
        %2501 = vmatpush.bf16.xpose.msra.mxu0 0
        %2502 = vmatpush.bf16.xpose.msra.mxu0 0
        %2503 = vmatpush.bf16.xpose.msra.mxu0 0
        %2504 = vmatpush.bf16.xpose.msra.mxu0 0
        %2505 = vmatpush.bf16.xpose.msra.mxu0 0
        %2506 = vmatpush.bf16.xpose.msra.mxu0 %v1852
        %2507 = vmatpush.bf16.xpose.msra.mxu0 %v1732
        %2508 = vmatmul.bf16.gmra.mxu0 %v651
        %v2509 = vpop.f32.mrf.mxu0
        %v2510 = vadd.f32 %v2497, %v2509
        %v2511 = vpop.f32.mrf.mxu0
        %2512 = vdwg.mxu0
        %2513 = vmatpush.bf16.xpose.msra.mxu0 0
        %2514 = vmatpush.bf16.xpose.msra.mxu0 0
        %2515 = vmatpush.bf16.xpose.msra.mxu0 0
        %2516 = vmatpush.bf16.xpose.msra.mxu0 0
        %2517 = vmatpush.bf16.xpose.msra.mxu0 0
        %2518 = vmatpush.bf16.xpose.msra.mxu0 0
        %2519 = vmatpush.bf16.xpose.msra.mxu0 %v1853
        %2520 = vmatpush.bf16.xpose.msra.mxu0 %v1733
        %2521 = vmatmul.bf16.gmra.mxu0 %v652
        %v2522 = vpop.f32.mrf.mxu0
        %v2523 = vadd.f32 %v2510, %v2522
        %v2524 = vpop.f32.mrf.mxu0
        %2525 = vdwg.mxu0
        %2526 = vmatpush.bf16.xpose.msra.mxu0 0
        %2527 = vmatpush.bf16.xpose.msra.mxu0 0
        %2528 = vmatpush.bf16.xpose.msra.mxu0 0
        %2529 = vmatpush.bf16.xpose.msra.mxu0 0
        %2530 = vmatpush.bf16.xpose.msra.mxu0 0
        %2531 = vmatpush.bf16.xpose.msra.mxu0 0
        %2532 = vmatpush.bf16.xpose.msra.mxu0 %v1854
        %2533 = vmatpush.bf16.xpose.msra.mxu0 %v1734
        %2534 = vmatmul.bf16.gmra.mxu0 %v653
        %v2535 = vpop.f32.mrf.mxu0
        %v2536 = vadd.f32 %v2523, %v2535
        %v2537 = vpop.f32.mrf.mxu0
        %2538 = vdwg.mxu0
        %2539 = vmatpush.bf16.xpose.msra.mxu0 0
        %2540 = vmatpush.bf16.xpose.msra.mxu0 0
        %2541 = vmatpush.bf16.xpose.msra.mxu0 0
        %2542 = vmatpush.bf16.xpose.msra.mxu0 0
        %2543 = vmatpush.bf16.xpose.msra.mxu0 0
        %2544 = vmatpush.bf16.xpose.msra.mxu0 0
        %2545 = vmatpush.bf16.xpose.msra.mxu0 %v1855
        %2546 = vmatpush.bf16.xpose.msra.mxu0 %v1735
        %2547 = vmatmul.bf16.gmra.mxu0 %v654
        %v2548 = vpop.f32.mrf.mxu0
        %v2549 = vadd.f32 %v2536, %v2548
        %v2550 = vpop.f32.mrf.mxu0
        %2551 = vdwg.mxu0
        %2552 = vmatpush.bf16.xpose.msra.mxu0 0
        %2553 = vmatpush.bf16.xpose.msra.mxu0 0
        %2554 = vmatpush.bf16.xpose.msra.mxu0 0
        %2555 = vmatpush.bf16.xpose.msra.mxu0 0
        %2556 = vmatpush.bf16.xpose.msra.mxu0 0
        %2557 = vmatpush.bf16.xpose.msra.mxu0 0
        %2558 = vmatpush.bf16.xpose.msra.mxu0 %v1856
        %2559 = vmatpush.bf16.xpose.msra.mxu0 %v1736
        %2560 = vmatmul.bf16.gmra.mxu0 %v655
        %v2561 = vpop.f32.mrf.mxu0
        %v2562 = vadd.f32 %v2549, %v2561
        %v2563 = vpop.f32.mrf.mxu0
        %2564 = vdwg.mxu0
        %2565 = vmatpush.bf16.xpose.msra.mxu0 0
        %2566 = vmatpush.bf16.xpose.msra.mxu0 0
        %2567 = vmatpush.bf16.xpose.msra.mxu0 0
        %2568 = vmatpush.bf16.xpose.msra.mxu0 0
        %2569 = vmatpush.bf16.xpose.msra.mxu0 0
        %2570 = vmatpush.bf16.xpose.msra.mxu0 0
        %2571 = vmatpush.bf16.xpose.msra.mxu0 %v1857
        %2572 = vmatpush.bf16.xpose.msra.mxu0 %v1737
        %2573 = vmatmul.bf16.gmra.mxu0 %v656
        %v2574 = vpop.f32.mrf.mxu0
        %v2575 = vadd.f32 %v2562, %v2574
        %v2576 = vpop.f32.mrf.mxu0
        %2577 = vdwg.mxu0
        %2578 = vmatpush.bf16.xpose.msra.mxu0 0
        %2579 = vmatpush.bf16.xpose.msra.mxu0 0
        %2580 = vmatpush.bf16.xpose.msra.mxu0 0
        %2581 = vmatpush.bf16.xpose.msra.mxu0 0
        %2582 = vmatpush.bf16.xpose.msra.mxu0 0
        %2583 = vmatpush.bf16.xpose.msra.mxu0 0
        %2584 = vmatpush.bf16.xpose.msra.mxu0 %v1858
        %2585 = vmatpush.bf16.xpose.msra.mxu0 %v1738
        %2586 = vmatmul.bf16.gmra.mxu0 %v657
        %v2587 = vpop.f32.mrf.mxu0
        %v2588 = vadd.f32 %v2575, %v2587
        %v2589 = vpop.f32.mrf.mxu0
        %2590 = vdwg.mxu0
        %2591 = vmatpush.bf16.xpose.msra.mxu0 0
        %2592 = vmatpush.bf16.xpose.msra.mxu0 0
        %2593 = vmatpush.bf16.xpose.msra.mxu0 0
        %2594 = vmatpush.bf16.xpose.msra.mxu0 0
        %2595 = vmatpush.bf16.xpose.msra.mxu0 0
        %2596 = vmatpush.bf16.xpose.msra.mxu0 0
        %2597 = vmatpush.bf16.xpose.msra.mxu0 %v1859
        %2598 = vmatpush.bf16.xpose.msra.mxu0 %v1739
        %2599 = vmatmul.bf16.gmra.mxu0 %v658
        %v2600 = vpop.f32.mrf.mxu0
        %v2601 = vadd.f32 %v2588, %v2600
        %v2602 = vpop.f32.mrf.mxu0
        %2603 = vdwg.mxu0
        %2604 = vmatpush.bf16.xpose.msra.mxu0 0
        %2605 = vmatpush.bf16.xpose.msra.mxu0 0
        %2606 = vmatpush.bf16.xpose.msra.mxu0 0
        %2607 = vmatpush.bf16.xpose.msra.mxu0 0
        %2608 = vmatpush.bf16.xpose.msra.mxu0 0
        %2609 = vmatpush.bf16.xpose.msra.mxu0 0
        %2610 = vmatpush.bf16.xpose.msra.mxu0 %v1860
        %2611 = vmatpush.bf16.xpose.msra.mxu0 %v1740
        %2612 = vmatmul.bf16.gmra.mxu0 %v659
        %v2613 = vpop.f32.mrf.mxu0
        %v2614 = vadd.f32 %v2601, %v2613
        %v2615 = vpop.f32.mrf.mxu0
        %2616 = vdwg.mxu0
        %2617 = vmatpush.bf16.xpose.msra.mxu0 0
        %2618 = vmatpush.bf16.xpose.msra.mxu0 0
        %2619 = vmatpush.bf16.xpose.msra.mxu0 0
        %2620 = vmatpush.bf16.xpose.msra.mxu0 0
        %2621 = vmatpush.bf16.xpose.msra.mxu0 0
        %2622 = vmatpush.bf16.xpose.msra.mxu0 0
        %2623 = vmatpush.bf16.xpose.msra.mxu0 %v1861
        %2624 = vmatpush.bf16.xpose.msra.mxu0 %v1741
        %2625 = vmatmul.bf16.gmra.mxu0 %v660
        %v2626 = vpop.f32.mrf.mxu0
        %v2627 = vadd.f32 %v2614, %v2626
        %v2628 = vpop.f32.mrf.mxu0
        %2629 = vdwg.mxu0
        %2630 = vmatpush.bf16.xpose.msra.mxu0 0
        %2631 = vmatpush.bf16.xpose.msra.mxu0 0
        %2632 = vmatpush.bf16.xpose.msra.mxu0 0
        %2633 = vmatpush.bf16.xpose.msra.mxu0 0
        %2634 = vmatpush.bf16.xpose.msra.mxu0 0
        %2635 = vmatpush.bf16.xpose.msra.mxu0 0
        %2636 = vmatpush.bf16.xpose.msra.mxu0 %v1862
        %2637 = vmatpush.bf16.xpose.msra.mxu0 %v1742
        %2638 = vmatmul.bf16.gmra.mxu0 %v661
        %v2639 = vpop.f32.mrf.mxu0
        %v2640 = vadd.f32 %v2627, %v2639
        %v2641 = vpop.f32.mrf.mxu0
        %2642 = vdwg.mxu0
        %2643 = vmatpush.bf16.xpose.msra.mxu0 0
        %2644 = vmatpush.bf16.xpose.msra.mxu0 0
        %2645 = vmatpush.bf16.xpose.msra.mxu0 0
        %2646 = vmatpush.bf16.xpose.msra.mxu0 0
        %2647 = vmatpush.bf16.xpose.msra.mxu0 0
        %2648 = vmatpush.bf16.xpose.msra.mxu0 0
        %2649 = vmatpush.bf16.xpose.msra.mxu0 %v1863
        %2650 = vmatpush.bf16.xpose.msra.mxu0 %v1743
        %2651 = vmatmul.bf16.gmra.mxu0 %v662
        %v2652 = vpop.f32.mrf.mxu0
        %v2653 = vadd.f32 %v2640, %v2652
        %v2654 = vpop.f32.mrf.mxu0
        %2655 = vdwg.mxu0
        %2656 = vmatpush.bf16.xpose.msra.mxu0 0
        %2657 = vmatpush.bf16.xpose.msra.mxu0 0
        %2658 = vmatpush.bf16.xpose.msra.mxu0 0
        %2659 = vmatpush.bf16.xpose.msra.mxu0 0
        %2660 = vmatpush.bf16.xpose.msra.mxu0 0
        %2661 = vmatpush.bf16.xpose.msra.mxu0 0
        %2662 = vmatpush.bf16.xpose.msra.mxu0 %v1864
        %2663 = vmatpush.bf16.xpose.msra.mxu0 %v1744
        %2664 = vmatmul.bf16.gmra.mxu0 %v663
        %v2665 = vpop.f32.mrf.mxu0
        %v2666 = vadd.f32 %v2653, %v2665
        %v2667 = vpop.f32.mrf.mxu0
        %2668 = vdwg.mxu0
        %2669 = vmatpush.bf16.xpose.msra.mxu0 0
        %2670 = vmatpush.bf16.xpose.msra.mxu0 0
        %2671 = vmatpush.bf16.xpose.msra.mxu0 0
        %2672 = vmatpush.bf16.xpose.msra.mxu0 0
        %2673 = vmatpush.bf16.xpose.msra.mxu0 0
        %2674 = vmatpush.bf16.xpose.msra.mxu0 0
        %2675 = vmatpush.bf16.xpose.msra.mxu0 %v1865
        %2676 = vmatpush.bf16.xpose.msra.mxu0 %v1745
        %2677 = vmatmul.bf16.gmra.mxu0 %v664
        %v2678 = vpop.f32.mrf.mxu0
        %v2679 = vadd.f32 %v2666, %v2678
        %v2680 = vpop.f32.mrf.mxu0
        %2681 = vdwg.mxu0
        %2682 = vmatpush.bf16.xpose.msra.mxu0 0
        %2683 = vmatpush.bf16.xpose.msra.mxu0 0
        %2684 = vmatpush.bf16.xpose.msra.mxu0 0
        %2685 = vmatpush.bf16.xpose.msra.mxu0 0
        %2686 = vmatpush.bf16.xpose.msra.mxu0 0
        %2687 = vmatpush.bf16.xpose.msra.mxu0 0
        %2688 = vmatpush.bf16.xpose.msra.mxu0 %v1866
        %2689 = vmatpush.bf16.xpose.msra.mxu0 %v1746
        %2690 = vmatmul.bf16.gmra.mxu0 %v665
        %v2691 = vpop.f32.mrf.mxu0
        %v2692 = vadd.f32 %v2679, %v2691
        %v2693 = vpop.f32.mrf.mxu0
        %2694 = vdwg.mxu0
        %2695 = vmatpush.bf16.xpose.msra.mxu0 0
        %2696 = vmatpush.bf16.xpose.msra.mxu0 0
        %2697 = vmatpush.bf16.xpose.msra.mxu0 0
        %2698 = vmatpush.bf16.xpose.msra.mxu0 0
        %2699 = vmatpush.bf16.xpose.msra.mxu0 0
        %2700 = vmatpush.bf16.xpose.msra.mxu0 0
        %2701 = vmatpush.bf16.xpose.msra.mxu0 %v1867
        %2702 = vmatpush.bf16.xpose.msra.mxu0 %v1747
        %2703 = vmatmul.bf16.gmra.mxu0 %v666
        %v2704 = vpop.f32.mrf.mxu0
        %v2705 = vadd.f32 %v2692, %v2704
        %v2706 = vpop.f32.mrf.mxu0
        %2707 = vdwg.mxu0
        %2708 = vmatpush.bf16.xpose.msra.mxu0 0
        %2709 = vmatpush.bf16.xpose.msra.mxu0 0
        %2710 = vmatpush.bf16.xpose.msra.mxu0 0
        %2711 = vmatpush.bf16.xpose.msra.mxu0 0
        %2712 = vmatpush.bf16.xpose.msra.mxu0 0
        %2713 = vmatpush.bf16.xpose.msra.mxu0 0
        %2714 = vmatpush.bf16.xpose.msra.mxu0 %v1868
        %2715 = vmatpush.bf16.xpose.msra.mxu0 %v1748
        %2716 = vmatmul.bf16.gmra.mxu0 %v667
        %v2717 = vpop.f32.mrf.mxu0
        %v2718 = vadd.f32 %v2705, %v2717
        %v2719 = vpop.f32.mrf.mxu0
        %2720 = vdwg.mxu0
        %2721 = vmatpush.bf16.xpose.msra.mxu0 0
        %2722 = vmatpush.bf16.xpose.msra.mxu0 0
        %2723 = vmatpush.bf16.xpose.msra.mxu0 0
        %2724 = vmatpush.bf16.xpose.msra.mxu0 0
        %2725 = vmatpush.bf16.xpose.msra.mxu0 0
        %2726 = vmatpush.bf16.xpose.msra.mxu0 0
        %2727 = vmatpush.bf16.xpose.msra.mxu0 %v1869
        %2728 = vmatpush.bf16.xpose.msra.mxu0 %v1749
        %2729 = vmatmul.bf16.gmra.mxu0 %v668
        %v2730 = vpop.f32.mrf.mxu0
        %v2731 = vadd.f32 %v2718, %v2730
        %v2732 = vpop.f32.mrf.mxu0
        %2733 = vdwg.mxu0
        %2734 = vmatpush.bf16.xpose.msra.mxu0 0
        %2735 = vmatpush.bf16.xpose.msra.mxu0 0
        %2736 = vmatpush.bf16.xpose.msra.mxu0 0
        %2737 = vmatpush.bf16.xpose.msra.mxu0 0
        %2738 = vmatpush.bf16.xpose.msra.mxu0 0
        %2739 = vmatpush.bf16.xpose.msra.mxu0 0
        %2740 = vmatpush.bf16.xpose.msra.mxu0 %v1870
        %2741 = vmatpush.bf16.xpose.msra.mxu0 %v1750
        %2742 = vmatmul.bf16.gmra.mxu0 %v669
        %v2743 = vpop.f32.mrf.mxu0
        %v2744 = vadd.f32 %v2731, %v2743
        %v2745 = vpop.f32.mrf.mxu0
        %2746 = vdwg.mxu0
        %2747 = vmatpush.bf16.xpose.msra.mxu0 0
        %2748 = vmatpush.bf16.xpose.msra.mxu0 0
        %2749 = vmatpush.bf16.xpose.msra.mxu0 0
        %2750 = vmatpush.bf16.xpose.msra.mxu0 0
        %2751 = vmatpush.bf16.xpose.msra.mxu0 0
        %2752 = vmatpush.bf16.xpose.msra.mxu0 0
        %2753 = vmatpush.bf16.xpose.msra.mxu0 %v1871
        %2754 = vmatpush.bf16.xpose.msra.mxu0 %v1751
        %2755 = vmatmul.bf16.gmra.mxu0 %v670
        %v2756 = vpop.f32.mrf.mxu0
        %v2757 = vadd.f32 %v2744, %v2756
        %v2758 = vpop.f32.mrf.mxu0
        %2759 = vdwg.mxu0
        %2760 = vmatpush.bf16.xpose.msra.mxu0 0
        %2761 = vmatpush.bf16.xpose.msra.mxu0 0
        %2762 = vmatpush.bf16.xpose.msra.mxu0 0
        %2763 = vmatpush.bf16.xpose.msra.mxu0 0
        %2764 = vmatpush.bf16.xpose.msra.mxu0 0
        %2765 = vmatpush.bf16.xpose.msra.mxu0 0
        %2766 = vmatpush.bf16.xpose.msra.mxu0 %v1872
        %2767 = vmatpush.bf16.xpose.msra.mxu0 %v1752
        %2768 = vmatmul.bf16.gmra.mxu0 %v671
        %v2769 = vpop.f32.mrf.mxu0
        %v2770 = vadd.f32 %v2757, %v2769
        %v2771 = vpop.f32.mrf.mxu0
        %2772 = vdwg.mxu0
        %2773 = vmatpush.bf16.xpose.msra.mxu0 0
        %2774 = vmatpush.bf16.xpose.msra.mxu0 0
        %2775 = vmatpush.bf16.xpose.msra.mxu0 0
        %2776 = vmatpush.bf16.xpose.msra.mxu0 0
        %2777 = vmatpush.bf16.xpose.msra.mxu0 0
        %2778 = vmatpush.bf16.xpose.msra.mxu0 0
        %2779 = vmatpush.bf16.xpose.msra.mxu0 %v1873
        %2780 = vmatpush.bf16.xpose.msra.mxu0 %v1753
        %2781 = vmatmul.bf16.gmra.mxu0 %v672
        %v2782 = vpop.f32.mrf.mxu0
        %v2783 = vadd.f32 %v2770, %v2782
        %v2784 = vpop.f32.mrf.mxu0
        %2785 = vdwg.mxu0
        %2786 = vmatpush.bf16.xpose.msra.mxu0 0
        %2787 = vmatpush.bf16.xpose.msra.mxu0 0
        %2788 = vmatpush.bf16.xpose.msra.mxu0 0
        %2789 = vmatpush.bf16.xpose.msra.mxu0 0
        %2790 = vmatpush.bf16.xpose.msra.mxu0 0
        %2791 = vmatpush.bf16.xpose.msra.mxu0 0
        %2792 = vmatpush.bf16.xpose.msra.mxu0 %v1874
        %2793 = vmatpush.bf16.xpose.msra.mxu0 %v1754
        %2794 = vmatmul.bf16.gmra.mxu0 %v673
        %v2795 = vpop.f32.mrf.mxu0
        %v2796 = vadd.f32 %v2783, %v2795
        %v2797 = vpop.f32.mrf.mxu0
        %2798 = vdwg.mxu0
        %2799 = vmatpush.bf16.xpose.msra.mxu0 0
        %2800 = vmatpush.bf16.xpose.msra.mxu0 0
        %2801 = vmatpush.bf16.xpose.msra.mxu0 0
        %2802 = vmatpush.bf16.xpose.msra.mxu0 0
        %2803 = vmatpush.bf16.xpose.msra.mxu0 0
        %2804 = vmatpush.bf16.xpose.msra.mxu0 0
        %2805 = vmatpush.bf16.xpose.msra.mxu0 %v1875
        %2806 = vmatpush.bf16.xpose.msra.mxu0 %v1755
        %2807 = vmatmul.bf16.gmra.mxu0 %v674
        %v2808 = vpop.f32.mrf.mxu0
        %v2809 = vadd.f32 %v2796, %v2808
        %v2810 = vpop.f32.mrf.mxu0
        %2811 = vdwg.mxu0
        %2812 = vmatpush.bf16.xpose.msra.mxu0 0
        %2813 = vmatpush.bf16.xpose.msra.mxu0 0
        %2814 = vmatpush.bf16.xpose.msra.mxu0 0
        %2815 = vmatpush.bf16.xpose.msra.mxu0 0
        %2816 = vmatpush.bf16.xpose.msra.mxu0 0
        %2817 = vmatpush.bf16.xpose.msra.mxu0 0
        %2818 = vmatpush.bf16.xpose.msra.mxu0 %v1876
        %2819 = vmatpush.bf16.xpose.msra.mxu0 %v1756
        %2820 = vmatmul.bf16.gmra.mxu0 %v675
        %v2821 = vpop.f32.mrf.mxu0
        %v2822 = vadd.f32 %v2809, %v2821
        %v2823 = vpop.f32.mrf.mxu0
        %2824 = vdwg.mxu0
        %2825 = vmatpush.bf16.xpose.msra.mxu0 0
        %2826 = vmatpush.bf16.xpose.msra.mxu0 0
        %2827 = vmatpush.bf16.xpose.msra.mxu0 0
        %2828 = vmatpush.bf16.xpose.msra.mxu0 0
        %2829 = vmatpush.bf16.xpose.msra.mxu0 0
        %2830 = vmatpush.bf16.xpose.msra.mxu0 0
        %2831 = vmatpush.bf16.xpose.msra.mxu0 %v1877
        %2832 = vmatpush.bf16.xpose.msra.mxu0 %v1757
        %2833 = vmatmul.bf16.gmra.mxu0 %v676
        %v2834 = vpop.f32.mrf.mxu0
        %v2835 = vadd.f32 %v2822, %v2834
        %v2836 = vpop.f32.mrf.mxu0
        %2837 = vdwg.mxu0
        %2838 = vmatpush.bf16.xpose.msra.mxu0 0
        %2839 = vmatpush.bf16.xpose.msra.mxu0 0
        %2840 = vmatpush.bf16.xpose.msra.mxu0 0
        %2841 = vmatpush.bf16.xpose.msra.mxu0 0
        %2842 = vmatpush.bf16.xpose.msra.mxu0 0
        %2843 = vmatpush.bf16.xpose.msra.mxu0 0
        %2844 = vmatpush.bf16.xpose.msra.mxu0 %v1878
        %2845 = vmatpush.bf16.xpose.msra.mxu0 %v1758
        %2846 = vmatmul.bf16.gmra.mxu0 %v677
        %v2847 = vpop.f32.mrf.mxu0
        %v2848 = vadd.f32 %v2835, %v2847
        %v2849 = vpop.f32.mrf.mxu0
        %2850 = vdwg.mxu0
        %2851 = vmatpush.bf16.xpose.msra.mxu0 0
        %2852 = vmatpush.bf16.xpose.msra.mxu0 0
        %2853 = vmatpush.bf16.xpose.msra.mxu0 0
        %2854 = vmatpush.bf16.xpose.msra.mxu0 0
        %2855 = vmatpush.bf16.xpose.msra.mxu0 0
        %2856 = vmatpush.bf16.xpose.msra.mxu0 0
        %2857 = vmatpush.bf16.xpose.msra.mxu0 %v1879
        %2858 = vmatpush.bf16.xpose.msra.mxu0 %v1759
        %2859 = vmatmul.bf16.gmra.mxu0 %v678
        %v2860 = vpop.f32.mrf.mxu0
        %v2861 = vadd.f32 %v2848, %v2860
        %v2862 = vpop.f32.mrf.mxu0
        %2863 = vdwg.mxu0
        %2864 = vmatpush.bf16.xpose.msra.mxu0 0
        %2865 = vmatpush.bf16.xpose.msra.mxu0 0
        %2866 = vmatpush.bf16.xpose.msra.mxu0 0
        %2867 = vmatpush.bf16.xpose.msra.mxu0 0
        %2868 = vmatpush.bf16.xpose.msra.mxu0 0
        %2869 = vmatpush.bf16.xpose.msra.mxu0 0
        %2870 = vmatpush.bf16.xpose.msra.mxu0 %v1880
        %2871 = vmatpush.bf16.xpose.msra.mxu0 %v1760
        %2872 = vmatmul.bf16.gmra.mxu0 %v679
        %v2873 = vpop.f32.mrf.mxu0
        %v2874 = vadd.f32 %v2861, %v2873
        %v2875 = vpop.f32.mrf.mxu0
        %2876 = vdwg.mxu0
        %2877 = vmatpush.bf16.xpose.msra.mxu0 0
        %2878 = vmatpush.bf16.xpose.msra.mxu0 0
        %2879 = vmatpush.bf16.xpose.msra.mxu0 0
        %2880 = vmatpush.bf16.xpose.msra.mxu0 0
        %2881 = vmatpush.bf16.xpose.msra.mxu0 0
        %2882 = vmatpush.bf16.xpose.msra.mxu0 0
        %2883 = vmatpush.bf16.xpose.msra.mxu0 %v1881
        %2884 = vmatpush.bf16.xpose.msra.mxu0 %v1761
        %2885 = vmatmul.bf16.gmra.mxu0 %v680
        %v2886 = vpop.f32.mrf.mxu0
        %v2887 = vadd.f32 %v2874, %v2886
        %v2888 = vpop.f32.mrf.mxu0
        %2889 = vdwg.mxu0
        %2890 = vmatpush.bf16.xpose.msra.mxu0 0
        %2891 = vmatpush.bf16.xpose.msra.mxu0 0
        %2892 = vmatpush.bf16.xpose.msra.mxu0 0
        %2893 = vmatpush.bf16.xpose.msra.mxu0 0
        %2894 = vmatpush.bf16.xpose.msra.mxu0 0
        %2895 = vmatpush.bf16.xpose.msra.mxu0 0
        %2896 = vmatpush.bf16.xpose.msra.mxu0 %v1882
        %2897 = vmatpush.bf16.xpose.msra.mxu0 %v1762
        %2898 = vmatmul.bf16.gmra.mxu0 %v681
        %v2899 = vpop.f32.mrf.mxu0
        %v2900 = vadd.f32 %v2887, %v2899
        %v2901 = vpop.f32.mrf.mxu0
        %2902 = vdwg.mxu0
        %2903 = vmatpush.bf16.xpose.msra.mxu0 0
        %2904 = vmatpush.bf16.xpose.msra.mxu0 0
        %2905 = vmatpush.bf16.xpose.msra.mxu0 0
        %2906 = vmatpush.bf16.xpose.msra.mxu0 0
        %2907 = vmatpush.bf16.xpose.msra.mxu0 0
        %2908 = vmatpush.bf16.xpose.msra.mxu0 0
        %2909 = vmatpush.bf16.xpose.msra.mxu0 %v1883
        %2910 = vmatpush.bf16.xpose.msra.mxu0 %v1763
        %2911 = vmatmul.bf16.gmra.mxu0 %v682
        %v2912 = vpop.f32.mrf.mxu0
        %v2913 = vadd.f32 %v2900, %v2912
        %v2914 = vpop.f32.mrf.mxu0
        %2915 = vdwg.mxu0
        %2916 = vmatpush.bf16.xpose.msra.mxu0 0
        %2917 = vmatpush.bf16.xpose.msra.mxu0 0
        %2918 = vmatpush.bf16.xpose.msra.mxu0 0
        %2919 = vmatpush.bf16.xpose.msra.mxu0 0
        %2920 = vmatpush.bf16.xpose.msra.mxu0 0
        %2921 = vmatpush.bf16.xpose.msra.mxu0 0
        %2922 = vmatpush.bf16.xpose.msra.mxu0 %v1884
        %2923 = vmatpush.bf16.xpose.msra.mxu0 %v1764
        %2924 = vmatmul.bf16.gmra.mxu0 %v683
        %v2925 = vpop.f32.mrf.mxu0
        %v2926 = vadd.f32 %v2913, %v2925
        %v2927 = vpop.f32.mrf.mxu0
        %2928 = vdwg.mxu0
        %2929 = vmatpush.bf16.xpose.msra.mxu0 0
        %2930 = vmatpush.bf16.xpose.msra.mxu0 0
        %2931 = vmatpush.bf16.xpose.msra.mxu0 0
        %2932 = vmatpush.bf16.xpose.msra.mxu0 0
        %2933 = vmatpush.bf16.xpose.msra.mxu0 0
        %2934 = vmatpush.bf16.xpose.msra.mxu0 0
        %2935 = vmatpush.bf16.xpose.msra.mxu0 %v1885
        %2936 = vmatpush.bf16.xpose.msra.mxu0 %v1765
        %2937 = vmatmul.bf16.gmra.mxu0 %v684
        %v2938 = vpop.f32.mrf.mxu0
        %v2939 = vadd.f32 %v2926, %v2938
        %v2940 = vpop.f32.mrf.mxu0
        %2941 = vdwg.mxu0
        %2942 = vmatpush.bf16.xpose.msra.mxu0 0
        %2943 = vmatpush.bf16.xpose.msra.mxu0 0
        %2944 = vmatpush.bf16.xpose.msra.mxu0 0
        %2945 = vmatpush.bf16.xpose.msra.mxu0 0
        %2946 = vmatpush.bf16.xpose.msra.mxu0 0
        %2947 = vmatpush.bf16.xpose.msra.mxu0 0
        %2948 = vmatpush.bf16.xpose.msra.mxu0 %v1886
        %2949 = vmatpush.bf16.xpose.msra.mxu0 %v1766
        %2950 = vmatmul.bf16.gmra.mxu0 %v685
        %v2951 = vpop.f32.mrf.mxu0
        %v2952 = vadd.f32 %v2939, %v2951
        %v2953 = vpop.f32.mrf.mxu0
        %2954 = vdwg.mxu0
        %2955 = vmatpush.bf16.xpose.msra.mxu0 0
        %2956 = vmatpush.bf16.xpose.msra.mxu0 0
        %2957 = vmatpush.bf16.xpose.msra.mxu0 0
        %2958 = vmatpush.bf16.xpose.msra.mxu0 0
        %2959 = vmatpush.bf16.xpose.msra.mxu0 0
        %2960 = vmatpush.bf16.xpose.msra.mxu0 0
        %2961 = vmatpush.bf16.xpose.msra.mxu0 %v1887
        %2962 = vmatpush.bf16.xpose.msra.mxu0 %v1767
        %2963 = vmatmul.bf16.gmra.mxu0 %v686
        %v2964 = vpop.f32.mrf.mxu0
        %v2965 = vadd.f32 %v2952, %v2964
        %v2966 = vpop.f32.mrf.mxu0
        %2967 = vdwg.mxu0
        %2968 = vmatpush.bf16.xpose.msra.mxu0 0
        %2969 = vmatpush.bf16.xpose.msra.mxu0 0
        %2970 = vmatpush.bf16.xpose.msra.mxu0 0
        %2971 = vmatpush.bf16.xpose.msra.mxu0 0
        %2972 = vmatpush.bf16.xpose.msra.mxu0 0
        %2973 = vmatpush.bf16.xpose.msra.mxu0 0
        %2974 = vmatpush.bf16.xpose.msra.mxu0 %v1888
        %2975 = vmatpush.bf16.xpose.msra.mxu0 %v1768
        %2976 = vmatmul.bf16.gmra.mxu0 %v687
        %v2977 = vpop.f32.mrf.mxu0
        %v2978 = vadd.f32 %v2965, %v2977
        %v2979 = vpop.f32.mrf.mxu0
        %2980 = vdwg.mxu0
        %2981 = vmatpush.bf16.xpose.msra.mxu0 0
        %2982 = vmatpush.bf16.xpose.msra.mxu0 0
        %2983 = vmatpush.bf16.xpose.msra.mxu0 0
        %2984 = vmatpush.bf16.xpose.msra.mxu0 0
        %2985 = vmatpush.bf16.xpose.msra.mxu0 0
        %2986 = vmatpush.bf16.xpose.msra.mxu0 0
        %2987 = vmatpush.bf16.xpose.msra.mxu0 %v1889
        %2988 = vmatpush.bf16.xpose.msra.mxu0 %v1769
        %2989 = vmatmul.bf16.gmra.mxu0 %v688
        %v2990 = vpop.f32.mrf.mxu0
        %v2991 = vadd.f32 %v2978, %v2990
        %v2992 = vpop.f32.mrf.mxu0
        %2993 = vdwg.mxu0
        %2994 = vmatpush.bf16.xpose.msra.mxu0 0
        %2995 = vmatpush.bf16.xpose.msra.mxu0 0
        %2996 = vmatpush.bf16.xpose.msra.mxu0 0
        %2997 = vmatpush.bf16.xpose.msra.mxu0 0
        %2998 = vmatpush.bf16.xpose.msra.mxu0 0
        %2999 = vmatpush.bf16.xpose.msra.mxu0 0
        %3000 = vmatpush.bf16.xpose.msra.mxu0 %v1890
        %3001 = vmatpush.bf16.xpose.msra.mxu0 %v1770
        %3002 = vmatmul.bf16.gmra.mxu0 %v689
        %v3003 = vpop.f32.mrf.mxu0
        %v3004 = vadd.f32 %v2991, %v3003
        %v3005 = vpop.f32.mrf.mxu0
        %3006 = vdwg.mxu0
        %3007 = vmatpush.bf16.xpose.msra.mxu0 0
        %3008 = vmatpush.bf16.xpose.msra.mxu0 0
        %3009 = vmatpush.bf16.xpose.msra.mxu0 0
        %3010 = vmatpush.bf16.xpose.msra.mxu0 0
        %3011 = vmatpush.bf16.xpose.msra.mxu0 0
        %3012 = vmatpush.bf16.xpose.msra.mxu0 0
        %3013 = vmatpush.bf16.xpose.msra.mxu0 %v1891
        %3014 = vmatpush.bf16.xpose.msra.mxu0 %v1771
        %3015 = vmatmul.bf16.gmra.mxu0 %v690
        %v3016 = vpop.f32.mrf.mxu0
        %v3017 = vadd.f32 %v3004, %v3016
        %v3018 = vpop.f32.mrf.mxu0
        %3019 = vdwg.mxu0
        %3020 = vmatpush.bf16.xpose.msra.mxu0 0
        %3021 = vmatpush.bf16.xpose.msra.mxu0 0
        %3022 = vmatpush.bf16.xpose.msra.mxu0 0
        %3023 = vmatpush.bf16.xpose.msra.mxu0 0
        %3024 = vmatpush.bf16.xpose.msra.mxu0 0
        %3025 = vmatpush.bf16.xpose.msra.mxu0 0
        %3026 = vmatpush.bf16.xpose.msra.mxu0 %v1892
        %3027 = vmatpush.bf16.xpose.msra.mxu0 %v1772
        %3028 = vmatmul.bf16.gmra.mxu0 %v691
        %v3029 = vpop.f32.mrf.mxu0
        %v3030 = vadd.f32 %v3017, %v3029
        %v3031 = vpop.f32.mrf.mxu0
        %3032 = vdwg.mxu0
        %3033 = vmatpush.bf16.xpose.msra.mxu0 0
        %3034 = vmatpush.bf16.xpose.msra.mxu0 0
        %3035 = vmatpush.bf16.xpose.msra.mxu0 0
        %3036 = vmatpush.bf16.xpose.msra.mxu0 0
        %3037 = vmatpush.bf16.xpose.msra.mxu0 0
        %3038 = vmatpush.bf16.xpose.msra.mxu0 0
        %3039 = vmatpush.bf16.xpose.msra.mxu0 %v1893
        %3040 = vmatpush.bf16.xpose.msra.mxu0 %v1773
        %3041 = vmatmul.bf16.gmra.mxu0 %v692
        %v3042 = vpop.f32.mrf.mxu0
        %v3043 = vadd.f32 %v3030, %v3042
        %v3044 = vpop.f32.mrf.mxu0
        %3045 = vdwg.mxu0
        %3046 = vmatpush.bf16.xpose.msra.mxu0 0
        %3047 = vmatpush.bf16.xpose.msra.mxu0 0
        %3048 = vmatpush.bf16.xpose.msra.mxu0 0
        %3049 = vmatpush.bf16.xpose.msra.mxu0 0
        %3050 = vmatpush.bf16.xpose.msra.mxu0 0
        %3051 = vmatpush.bf16.xpose.msra.mxu0 0
        %3052 = vmatpush.bf16.xpose.msra.mxu0 %v1894
        %3053 = vmatpush.bf16.xpose.msra.mxu0 %v1774
        %3054 = vmatmul.bf16.gmra.mxu0 %v693
        %v3055 = vpop.f32.mrf.mxu0
        %v3056 = vadd.f32 %v3043, %v3055
        %v3057 = vpop.f32.mrf.mxu0
        %3058 = vdwg.mxu0
        %3059 = vmatpush.bf16.xpose.msra.mxu0 0
        %3060 = vmatpush.bf16.xpose.msra.mxu0 0
        %3061 = vmatpush.bf16.xpose.msra.mxu0 0
        %3062 = vmatpush.bf16.xpose.msra.mxu0 0
        %3063 = vmatpush.bf16.xpose.msra.mxu0 0
        %3064 = vmatpush.bf16.xpose.msra.mxu0 0
        %3065 = vmatpush.bf16.xpose.msra.mxu0 %v1895
        %3066 = vmatpush.bf16.xpose.msra.mxu0 %v1775
        %3067 = vmatmul.bf16.gmra.mxu0 %v694
        %v3068 = vpop.f32.mrf.mxu0
        %v3069 = vadd.f32 %v3056, %v3068
        %v3070 = vpop.f32.mrf.mxu0
        %3071 = vdwg.mxu0
        %3072 = vmatpush.bf16.xpose.msra.mxu0 0
        %3073 = vmatpush.bf16.xpose.msra.mxu0 0
        %3074 = vmatpush.bf16.xpose.msra.mxu0 0
        %3075 = vmatpush.bf16.xpose.msra.mxu0 0
        %3076 = vmatpush.bf16.xpose.msra.mxu0 0
        %3077 = vmatpush.bf16.xpose.msra.mxu0 0
        %3078 = vmatpush.bf16.xpose.msra.mxu0 %v1896
        %3079 = vmatpush.bf16.xpose.msra.mxu0 %v1776
        %3080 = vmatmul.bf16.gmra.mxu0 %v695
        %v3081 = vpop.f32.mrf.mxu0
        %v3082 = vadd.f32 %v3069, %v3081
        %v3083 = vpop.f32.mrf.mxu0
        %3084 = vdwg.mxu0
        %3085 = vmatpush.bf16.xpose.msra.mxu0 0
        %3086 = vmatpush.bf16.xpose.msra.mxu0 0
        %3087 = vmatpush.bf16.xpose.msra.mxu0 0
        %3088 = vmatpush.bf16.xpose.msra.mxu0 0
        %3089 = vmatpush.bf16.xpose.msra.mxu0 0
        %3090 = vmatpush.bf16.xpose.msra.mxu0 0
        %3091 = vmatpush.bf16.xpose.msra.mxu0 %v1897
        %3092 = vmatpush.bf16.xpose.msra.mxu0 %v1777
        %3093 = vmatmul.bf16.gmra.mxu0 %v696
        %v3094 = vpop.f32.mrf.mxu0
        %v3095 = vadd.f32 %v3082, %v3094
        %v3096 = vpop.f32.mrf.mxu0
        %3097 = vdwg.mxu0
        %3098 = vmatpush.bf16.xpose.msra.mxu0 0
        %3099 = vmatpush.bf16.xpose.msra.mxu0 0
        %3100 = vmatpush.bf16.xpose.msra.mxu0 0
        %3101 = vmatpush.bf16.xpose.msra.mxu0 0
        %3102 = vmatpush.bf16.xpose.msra.mxu0 0
        %3103 = vmatpush.bf16.xpose.msra.mxu0 0
        %3104 = vmatpush.bf16.xpose.msra.mxu0 %v1898
        %3105 = vmatpush.bf16.xpose.msra.mxu0 %v1778
        %3106 = vmatmul.bf16.gmra.mxu0 %v697
        %v3107 = vpop.f32.mrf.mxu0
        %v3108 = vadd.f32 %v3095, %v3107
        %v3109 = vpop.f32.mrf.mxu0
        %3110 = vdwg.mxu0
        %3111 = vmatpush.bf16.xpose.msra.mxu0 0
        %3112 = vmatpush.bf16.xpose.msra.mxu0 0
        %3113 = vmatpush.bf16.xpose.msra.mxu0 0
        %3114 = vmatpush.bf16.xpose.msra.mxu0 0
        %3115 = vmatpush.bf16.xpose.msra.mxu0 0
        %3116 = vmatpush.bf16.xpose.msra.mxu0 0
        %3117 = vmatpush.bf16.xpose.msra.mxu0 %v1899
        %3118 = vmatpush.bf16.xpose.msra.mxu0 %v1779
        %3119 = vmatmul.bf16.gmra.mxu0 %v698
        %v3120 = vpop.f32.mrf.mxu0
        %v3121 = vadd.f32 %v3108, %v3120
        %v3122 = vpop.f32.mrf.mxu0
        %3123 = vdwg.mxu0
        %3124 = vmatpush.bf16.xpose.msra.mxu0 0
        %3125 = vmatpush.bf16.xpose.msra.mxu0 0
        %3126 = vmatpush.bf16.xpose.msra.mxu0 0
        %3127 = vmatpush.bf16.xpose.msra.mxu0 0
        %3128 = vmatpush.bf16.xpose.msra.mxu0 0
        %3129 = vmatpush.bf16.xpose.msra.mxu0 0
        %3130 = vmatpush.bf16.xpose.msra.mxu0 %v1900
        %3131 = vmatpush.bf16.xpose.msra.mxu0 %v1780
        %3132 = vmatmul.bf16.gmra.mxu0 %v699
        %v3133 = vpop.f32.mrf.mxu0
        %v3134 = vadd.f32 %v3121, %v3133
        %v3135 = vpop.f32.mrf.mxu0
        %3136 = vdwg.mxu0
        %3137 = vmatpush.bf16.xpose.msra.mxu0 0
        %3138 = vmatpush.bf16.xpose.msra.mxu0 0
        %3139 = vmatpush.bf16.xpose.msra.mxu0 0
        %3140 = vmatpush.bf16.xpose.msra.mxu0 0
        %3141 = vmatpush.bf16.xpose.msra.mxu0 0
        %3142 = vmatpush.bf16.xpose.msra.mxu0 0
        %3143 = vmatpush.bf16.xpose.msra.mxu0 %v1901
        %3144 = vmatpush.bf16.xpose.msra.mxu0 %v1781
        %3145 = vmatmul.bf16.gmra.mxu0 %v700
        %v3146 = vpop.f32.mrf.mxu0
        %v3147 = vadd.f32 %v3134, %v3146
        %v3148 = vpop.f32.mrf.mxu0
        %3149 = vdwg.mxu0
        %3150 = vmatpush.bf16.xpose.msra.mxu0 0
        %3151 = vmatpush.bf16.xpose.msra.mxu0 0
        %3152 = vmatpush.bf16.xpose.msra.mxu0 0
        %3153 = vmatpush.bf16.xpose.msra.mxu0 0
        %3154 = vmatpush.bf16.xpose.msra.mxu0 0
        %3155 = vmatpush.bf16.xpose.msra.mxu0 0
        %3156 = vmatpush.bf16.xpose.msra.mxu0 %v1902
        %3157 = vmatpush.bf16.xpose.msra.mxu0 %v1782
        %3158 = vmatmul.bf16.gmra.mxu0 %v701
        %v3159 = vpop.f32.mrf.mxu0
        %v3160 = vadd.f32 %v3147, %v3159
        %v3161 = vpop.f32.mrf.mxu0
        %3162 = vdwg.mxu0
        %3163 = vmatpush.bf16.xpose.msra.mxu0 0
        %3164 = vmatpush.bf16.xpose.msra.mxu0 0
        %3165 = vmatpush.bf16.xpose.msra.mxu0 0
        %3166 = vmatpush.bf16.xpose.msra.mxu0 0
        %3167 = vmatpush.bf16.xpose.msra.mxu0 0
        %3168 = vmatpush.bf16.xpose.msra.mxu0 0
        %3169 = vmatpush.bf16.xpose.msra.mxu0 %v1903
        %3170 = vmatpush.bf16.xpose.msra.mxu0 %v1783
        %3171 = vmatmul.bf16.gmra.mxu0 %v702
        %v3172 = vpop.f32.mrf.mxu0
        %v3173 = vadd.f32 %v3160, %v3172
        %v3174 = vpop.f32.mrf.mxu0
        %3175 = vdwg.mxu0
        %3176 = vmatpush.bf16.xpose.msra.mxu0 0
        %3177 = vmatpush.bf16.xpose.msra.mxu0 0
        %3178 = vmatpush.bf16.xpose.msra.mxu0 0
        %3179 = vmatpush.bf16.xpose.msra.mxu0 0
        %3180 = vmatpush.bf16.xpose.msra.mxu0 0
        %3181 = vmatpush.bf16.xpose.msra.mxu0 0
        %3182 = vmatpush.bf16.xpose.msra.mxu0 %v1904
        %3183 = vmatpush.bf16.xpose.msra.mxu0 %v1784
        %3184 = vmatmul.bf16.gmra.mxu0 %v703
        %v3185 = vpop.f32.mrf.mxu0
        %v3186 = vadd.f32 %v3173, %v3185
        %v3187 = vpop.f32.mrf.mxu0
        %3188 = vdwg.mxu0
        %3189 = vmatpush.bf16.xpose.msra.mxu0 0
        %3190 = vmatpush.bf16.xpose.msra.mxu0 0
        %3191 = vmatpush.bf16.xpose.msra.mxu0 0
        %3192 = vmatpush.bf16.xpose.msra.mxu0 0
        %3193 = vmatpush.bf16.xpose.msra.mxu0 0
        %3194 = vmatpush.bf16.xpose.msra.mxu0 0
        %3195 = vmatpush.bf16.xpose.msra.mxu0 %v1905
        %3196 = vmatpush.bf16.xpose.msra.mxu0 %v1785
        %3197 = vmatmul.bf16.gmra.mxu0 %v704
        %v3198 = vpop.f32.mrf.mxu0
        %v3199 = vadd.f32 %v3186, %v3198
        %v3200 = vpop.f32.mrf.mxu0
        %3201 = vdwg.mxu0
        %3202 = vmatpush.bf16.xpose.msra.mxu0 0
        %3203 = vmatpush.bf16.xpose.msra.mxu0 0
        %3204 = vmatpush.bf16.xpose.msra.mxu0 0
        %3205 = vmatpush.bf16.xpose.msra.mxu0 0
        %3206 = vmatpush.bf16.xpose.msra.mxu0 0
        %3207 = vmatpush.bf16.xpose.msra.mxu0 0
        %3208 = vmatpush.bf16.xpose.msra.mxu0 %v1906
        %3209 = vmatpush.bf16.xpose.msra.mxu0 %v1786
        %3210 = vmatmul.bf16.gmra.mxu0 %v705
        %v3211 = vpop.f32.mrf.mxu0
        %v3212 = vadd.f32 %v3199, %v3211
        %v3213 = vpop.f32.mrf.mxu0
        %3214 = vdwg.mxu0
        %3215 = vmatpush.bf16.xpose.msra.mxu0 0
        %3216 = vmatpush.bf16.xpose.msra.mxu0 0
        %3217 = vmatpush.bf16.xpose.msra.mxu0 0
        %3218 = vmatpush.bf16.xpose.msra.mxu0 0
        %3219 = vmatpush.bf16.xpose.msra.mxu0 0
        %3220 = vmatpush.bf16.xpose.msra.mxu0 0
        %3221 = vmatpush.bf16.xpose.msra.mxu0 %v1907
        %3222 = vmatpush.bf16.xpose.msra.mxu0 %v1787
        %3223 = vmatmul.bf16.gmra.mxu0 %v706
        %v3224 = vpop.f32.mrf.mxu0
        %v3225 = vadd.f32 %v3212, %v3224
        %v3226 = vpop.f32.mrf.mxu0
        %3227 = vdwg.mxu0
        %3228 = vmatpush.bf16.xpose.msra.mxu0 0
        %3229 = vmatpush.bf16.xpose.msra.mxu0 0
        %3230 = vmatpush.bf16.xpose.msra.mxu0 0
        %3231 = vmatpush.bf16.xpose.msra.mxu0 0
        %3232 = vmatpush.bf16.xpose.msra.mxu0 0
        %3233 = vmatpush.bf16.xpose.msra.mxu0 0
        %3234 = vmatpush.bf16.xpose.msra.mxu0 %v1908
        %3235 = vmatpush.bf16.xpose.msra.mxu0 %v1788
        %3236 = vmatmul.bf16.gmra.mxu0 %v707
        %v3237 = vpop.f32.mrf.mxu0
        %v3238 = vadd.f32 %v3225, %v3237
        %v3239 = vpop.f32.mrf.mxu0
        %3240 = vdwg.mxu0
        %3241 = vmatpush.bf16.xpose.msra.mxu0 0
        %3242 = vmatpush.bf16.xpose.msra.mxu0 0
        %3243 = vmatpush.bf16.xpose.msra.mxu0 0
        %3244 = vmatpush.bf16.xpose.msra.mxu0 0
        %3245 = vmatpush.bf16.xpose.msra.mxu0 0
        %3246 = vmatpush.bf16.xpose.msra.mxu0 0
        %3247 = vmatpush.bf16.xpose.msra.mxu0 %v1909
        %3248 = vmatpush.bf16.xpose.msra.mxu0 %v1789
        %3249 = vmatmul.bf16.gmra.mxu0 %v708
        %v3250 = vpop.f32.mrf.mxu0
        %v3251 = vadd.f32 %v3238, %v3250
        %v3252 = vpop.f32.mrf.mxu0
        %3253 = vdwg.mxu0
        %3254 = vmatpush.bf16.xpose.msra.mxu0 0
        %3255 = vmatpush.bf16.xpose.msra.mxu0 0
        %3256 = vmatpush.bf16.xpose.msra.mxu0 0
        %3257 = vmatpush.bf16.xpose.msra.mxu0 0
        %3258 = vmatpush.bf16.xpose.msra.mxu0 0
        %3259 = vmatpush.bf16.xpose.msra.mxu0 0
        %3260 = vmatpush.bf16.xpose.msra.mxu0 %v1910
        %3261 = vmatpush.bf16.xpose.msra.mxu0 %v1790
        %3262 = vmatmul.bf16.gmra.mxu0 %v709
        %v3263 = vpop.f32.mrf.mxu0
        %v3264 = vadd.f32 %v3251, %v3263
        %v3265 = vpop.f32.mrf.mxu0
        %3266 = vdwg.mxu0
        %3267 = vmatpush.bf16.xpose.msra.mxu0 0
        %3268 = vmatpush.bf16.xpose.msra.mxu0 0
        %3269 = vmatpush.bf16.xpose.msra.mxu0 0
        %3270 = vmatpush.bf16.xpose.msra.mxu0 0
        %3271 = vmatpush.bf16.xpose.msra.mxu0 0
        %3272 = vmatpush.bf16.xpose.msra.mxu0 0
        %3273 = vmatpush.bf16.xpose.msra.mxu0 %v1911
        %3274 = vmatpush.bf16.xpose.msra.mxu0 %v1791
        %3275 = vmatmul.bf16.gmra.mxu0 %v710
        %v3276 = vpop.f32.mrf.mxu0
        %v3277 = vadd.f32 %v3264, %v3276
        %v3278 = vpop.f32.mrf.mxu0
        %3279 = vdwg.mxu0
        %3280 = vmatpush.bf16.xpose.msra.mxu0 0
        %3281 = vmatpush.bf16.xpose.msra.mxu0 0
        %3282 = vmatpush.bf16.xpose.msra.mxu0 0
        %3283 = vmatpush.bf16.xpose.msra.mxu0 0
        %3284 = vmatpush.bf16.xpose.msra.mxu0 0
        %3285 = vmatpush.bf16.xpose.msra.mxu0 0
        %3286 = vmatpush.bf16.xpose.msra.mxu0 %v1912
        %3287 = vmatpush.bf16.xpose.msra.mxu0 %v1792
        %3288 = vmatmul.bf16.gmra.mxu0 %v711
        %v3289 = vpop.f32.mrf.mxu0
        %v3290 = vadd.f32 %v3277, %v3289
        %v3291 = vpop.f32.mrf.mxu0
        %3292 = vdwg.mxu0
        %3293 = vmatpush.bf16.xpose.msra.mxu0 0
        %3294 = vmatpush.bf16.xpose.msra.mxu0 0
        %3295 = vmatpush.bf16.xpose.msra.mxu0 0
        %3296 = vmatpush.bf16.xpose.msra.mxu0 0
        %3297 = vmatpush.bf16.xpose.msra.mxu0 0
        %3298 = vmatpush.bf16.xpose.msra.mxu0 0
        %3299 = vmatpush.bf16.xpose.msra.mxu0 %v1913
        %3300 = vmatpush.bf16.xpose.msra.mxu0 %v1793
        %3301 = vmatmul.bf16.gmra.mxu0 %v712
        %v3302 = vpop.f32.mrf.mxu0
        %v3303 = vadd.f32 %v3290, %v3302
        %v3304 = vpop.f32.mrf.mxu0
        %3305 = vdwg.mxu0
        %3306 = vmatpush.bf16.xpose.msra.mxu0 0
        %3307 = vmatpush.bf16.xpose.msra.mxu0 0
        %3308 = vmatpush.bf16.xpose.msra.mxu0 0
        %3309 = vmatpush.bf16.xpose.msra.mxu0 0
        %3310 = vmatpush.bf16.xpose.msra.mxu0 0
        %3311 = vmatpush.bf16.xpose.msra.mxu0 0
        %3312 = vmatpush.bf16.xpose.msra.mxu0 %v1914
        %3313 = vmatpush.bf16.xpose.msra.mxu0 %v1794
        %3314 = vmatmul.bf16.gmra.mxu0 %v713
        %v3315 = vpop.f32.mrf.mxu0
        %v3316 = vadd.f32 %v3303, %v3315
        %v3317 = vpop.f32.mrf.mxu0
        %3318 = vdwg.mxu0
        %3319 = vmatpush.bf16.xpose.msra.mxu0 0
        %3320 = vmatpush.bf16.xpose.msra.mxu0 0
        %3321 = vmatpush.bf16.xpose.msra.mxu0 0
        %3322 = vmatpush.bf16.xpose.msra.mxu0 0
        %3323 = vmatpush.bf16.xpose.msra.mxu0 0
        %3324 = vmatpush.bf16.xpose.msra.mxu0 0
        %3325 = vmatpush.bf16.xpose.msra.mxu0 %v1915
        %3326 = vmatpush.bf16.xpose.msra.mxu0 %v1795
        %3327 = vmatmul.bf16.gmra.mxu0 %v714
        %v3328 = vpop.f32.mrf.mxu0
        %v3329 = vadd.f32 %v3316, %v3328
        %v3330 = vpop.f32.mrf.mxu0
        %3331 = vdwg.mxu0
        %3332 = vmatpush.bf16.xpose.msra.mxu0 0
        %3333 = vmatpush.bf16.xpose.msra.mxu0 0
        %3334 = vmatpush.bf16.xpose.msra.mxu0 0
        %3335 = vmatpush.bf16.xpose.msra.mxu0 0
        %3336 = vmatpush.bf16.xpose.msra.mxu0 0
        %3337 = vmatpush.bf16.xpose.msra.mxu0 0
        %3338 = vmatpush.bf16.xpose.msra.mxu0 %v1916
        %3339 = vmatpush.bf16.xpose.msra.mxu0 %v1796
        %3340 = vmatmul.bf16.gmra.mxu0 %v715
        %v3341 = vpop.f32.mrf.mxu0
        %v3342 = vadd.f32 %v3329, %v3341
        %v3343 = vpop.f32.mrf.mxu0
        %3344 = vdwg.mxu0
        %3345 = vmatpush.bf16.xpose.msra.mxu0 0
        %3346 = vmatpush.bf16.xpose.msra.mxu0 0
        %3347 = vmatpush.bf16.xpose.msra.mxu0 0
        %3348 = vmatpush.bf16.xpose.msra.mxu0 0
        %3349 = vmatpush.bf16.xpose.msra.mxu0 0
        %3350 = vmatpush.bf16.xpose.msra.mxu0 0
        %3351 = vmatpush.bf16.xpose.msra.mxu0 %v1917
        %3352 = vmatpush.bf16.xpose.msra.mxu0 %v1797
        %3353 = vmatmul.bf16.gmra.mxu0 %v716
        %v3354 = vpop.f32.mrf.mxu0
        %v3355 = vadd.f32 %v3342, %v3354
        %v3356 = vpop.f32.mrf.mxu0
        %3357 = vdwg.mxu0
        %3358 = vmatpush.bf16.xpose.msra.mxu0 0
        %3359 = vmatpush.bf16.xpose.msra.mxu0 0
        %3360 = vmatpush.bf16.xpose.msra.mxu0 0
        %3361 = vmatpush.bf16.xpose.msra.mxu0 0
        %3362 = vmatpush.bf16.xpose.msra.mxu0 0
        %3363 = vmatpush.bf16.xpose.msra.mxu0 0
        %3364 = vmatpush.bf16.xpose.msra.mxu0 %v1918
        %3365 = vmatpush.bf16.xpose.msra.mxu0 %v1798
        %3366 = vmatmul.bf16.gmra.mxu0 %v717
        %v3367 = vpop.f32.mrf.mxu0
        %v3368 = vadd.f32 %v3355, %v3367
        %v3369 = vpop.f32.mrf.mxu0
        %3370 = vdwg.mxu0
        %3371 = vmatpush.bf16.xpose.msra.mxu0 0
        %3372 = vmatpush.bf16.xpose.msra.mxu0 0
        %3373 = vmatpush.bf16.xpose.msra.mxu0 0
        %3374 = vmatpush.bf16.xpose.msra.mxu0 0
        %3375 = vmatpush.bf16.xpose.msra.mxu0 0
        %3376 = vmatpush.bf16.xpose.msra.mxu0 0
        %3377 = vmatpush.bf16.xpose.msra.mxu0 %v1919
        %3378 = vmatpush.bf16.xpose.msra.mxu0 %v1799
        %3379 = vmatmul.bf16.gmra.mxu0 %v718
        %v3380 = vpop.f32.mrf.mxu0
        %v3381 = vadd.f32 %v3368, %v3380
        %v3382 = vpop.f32.mrf.mxu0
        %3383 = vdwg.mxu0
        %3384 = vmatpush.bf16.xpose.msra.mxu0 0
        %3385 = vmatpush.bf16.xpose.msra.mxu0 0
        %3386 = vmatpush.bf16.xpose.msra.mxu0 0
        %3387 = vmatpush.bf16.xpose.msra.mxu0 0
        %3388 = vmatpush.bf16.xpose.msra.mxu0 0
        %3389 = vmatpush.bf16.xpose.msra.mxu0 0
        %3390 = vmatpush.bf16.xpose.msra.mxu0 %v1920
        %3391 = vmatpush.bf16.xpose.msra.mxu0 %v1800
        %3392 = vmatmul.bf16.gmra.mxu0 %v719
        %v3393 = vpop.f32.mrf.mxu0
        %v3394 = vadd.f32 %v3381, %v3393
        %v3395 = vpop.f32.mrf.mxu0
        %3396 = vdwg.mxu0
        %3397 = vmatpush.bf16.xpose.msra.mxu0 0
        %3398 = vmatpush.bf16.xpose.msra.mxu0 0
        %3399 = vmatpush.bf16.xpose.msra.mxu0 0
        %3400 = vmatpush.bf16.xpose.msra.mxu0 0
        %3401 = vmatpush.bf16.xpose.msra.mxu0 0
        %3402 = vmatpush.bf16.xpose.msra.mxu0 0
        %3403 = vmatpush.bf16.xpose.msra.mxu0 %v1921
        %3404 = vmatpush.bf16.xpose.msra.mxu0 %v1801
        %3405 = vmatmul.bf16.gmra.mxu0 %v720
        %v3406 = vpop.f32.mrf.mxu0
        %v3407 = vadd.f32 %v3394, %v3406
        %v3408 = vpop.f32.mrf.mxu0
        %3409 = vdwg.mxu0
        %3410 = vmatpush.bf16.xpose.msra.mxu0 0
        %3411 = vmatpush.bf16.xpose.msra.mxu0 0
        %3412 = vmatpush.bf16.xpose.msra.mxu0 0
        %3413 = vmatpush.bf16.xpose.msra.mxu0 0
        %3414 = vmatpush.bf16.xpose.msra.mxu0 0
        %3415 = vmatpush.bf16.xpose.msra.mxu0 0
        %3416 = vmatpush.bf16.xpose.msra.mxu0 %v1922
        %3417 = vmatpush.bf16.xpose.msra.mxu0 %v1802
        %3418 = vmatmul.bf16.gmra.mxu0 %v721
        %v3419 = vpop.f32.mrf.mxu0
        %v3420 = vadd.f32 %v3407, %v3419
        %v3421 = vpop.f32.mrf.mxu0
        %3422 = vdwg.mxu0
        %3423 = vmatpush.bf16.xpose.msra.mxu0 0
        %3424 = vmatpush.bf16.xpose.msra.mxu0 0
        %3425 = vmatpush.bf16.xpose.msra.mxu0 0
        %3426 = vmatpush.bf16.xpose.msra.mxu0 0
        %3427 = vmatpush.bf16.xpose.msra.mxu0 0
        %3428 = vmatpush.bf16.xpose.msra.mxu0 0
        %3429 = vmatpush.bf16.xpose.msra.mxu0 %v1923
        %3430 = vmatpush.bf16.xpose.msra.mxu0 %v1803
        %3431 = vmatmul.bf16.gmra.mxu0 %v722
        %v3432 = vpop.f32.mrf.mxu0
        %v3433 = vadd.f32 %v3420, %v3432
        %v3434 = vpop.f32.mrf.mxu0
        %3435 = vdwg.mxu0
        %3436 = vmatpush.bf16.xpose.msra.mxu0 0
        %3437 = vmatpush.bf16.xpose.msra.mxu0 0
        %3438 = vmatpush.bf16.xpose.msra.mxu0 0
        %3439 = vmatpush.bf16.xpose.msra.mxu0 0
        %3440 = vmatpush.bf16.xpose.msra.mxu0 0
        %3441 = vmatpush.bf16.xpose.msra.mxu0 0
        %3442 = vmatpush.bf16.xpose.msra.mxu0 %v1924
        %3443 = vmatpush.bf16.xpose.msra.mxu0 %v1804
        %3444 = vmatmul.bf16.gmra.mxu0 %v723
        %v3445 = vpop.f32.mrf.mxu0
        %v3446 = vadd.f32 %v3433, %v3445
        %v3447 = vpop.f32.mrf.mxu0
        %3448 = vdwg.mxu0
        %3449 = vmatpush.bf16.xpose.msra.mxu0 0
        %3450 = vmatpush.bf16.xpose.msra.mxu0 0
        %3451 = vmatpush.bf16.xpose.msra.mxu0 0
        %3452 = vmatpush.bf16.xpose.msra.mxu0 0
        %3453 = vmatpush.bf16.xpose.msra.mxu0 0
        %3454 = vmatpush.bf16.xpose.msra.mxu0 0
        %3455 = vmatpush.bf16.xpose.msra.mxu0 %v1925
        %3456 = vmatpush.bf16.xpose.msra.mxu0 %v1805
        %3457 = vmatmul.bf16.gmra.mxu0 %v724
        %v3458 = vpop.f32.mrf.mxu0
        %v3459 = vadd.f32 %v3446, %v3458
        %v3460 = vpop.f32.mrf.mxu0
        %3461 = vdwg.mxu0
        %3462 = vmatpush.bf16.xpose.msra.mxu0 0
        %3463 = vmatpush.bf16.xpose.msra.mxu0 0
        %3464 = vmatpush.bf16.xpose.msra.mxu0 0
        %3465 = vmatpush.bf16.xpose.msra.mxu0 0
        %3466 = vmatpush.bf16.xpose.msra.mxu0 0
        %3467 = vmatpush.bf16.xpose.msra.mxu0 0
        %3468 = vmatpush.bf16.xpose.msra.mxu0 %v1926
        %3469 = vmatpush.bf16.xpose.msra.mxu0 %v1806
        %3470 = vmatmul.bf16.gmra.mxu0 %v725
        %v3471 = vpop.f32.mrf.mxu0
        %v3472 = vadd.f32 %v3459, %v3471
        %v3473 = vpop.f32.mrf.mxu0
        %3474 = vdwg.mxu0
        %3475 = vmatpush.bf16.xpose.msra.mxu0 0
        %3476 = vmatpush.bf16.xpose.msra.mxu0 0
        %3477 = vmatpush.bf16.xpose.msra.mxu0 0
        %3478 = vmatpush.bf16.xpose.msra.mxu0 0
        %3479 = vmatpush.bf16.xpose.msra.mxu0 0
        %3480 = vmatpush.bf16.xpose.msra.mxu0 0
        %3481 = vmatpush.bf16.xpose.msra.mxu0 %v1927
        %3482 = vmatpush.bf16.xpose.msra.mxu0 %v1807
        %3483 = vmatmul.bf16.gmra.mxu0 %v726
        %v3484 = vpop.f32.mrf.mxu0
        %v3485 = vadd.f32 %v3472, %v3484
        %v3486 = vpop.f32.mrf.mxu0
        %3487 = vdwg.mxu0
        %3488 = vmatpush.bf16.xpose.msra.mxu0 0
        %3489 = vmatpush.bf16.xpose.msra.mxu0 0
        %3490 = vmatpush.bf16.xpose.msra.mxu0 0
        %3491 = vmatpush.bf16.xpose.msra.mxu0 0
        %3492 = vmatpush.bf16.xpose.msra.mxu0 0
        %3493 = vmatpush.bf16.xpose.msra.mxu0 0
        %3494 = vmatpush.bf16.xpose.msra.mxu0 %v1928
        %3495 = vmatpush.bf16.xpose.msra.mxu0 %v1808
        %3496 = vmatmul.bf16.gmra.mxu0 %v727
        %v3497 = vpop.f32.mrf.mxu0
        %v3498 = vadd.f32 %v3485, %v3497
        %v3499 = vpop.f32.mrf.mxu0
        %3500 = vdwg.mxu0
        %3501 = vmatpush.bf16.xpose.msra.mxu0 0
        %3502 = vmatpush.bf16.xpose.msra.mxu0 0
        %3503 = vmatpush.bf16.xpose.msra.mxu0 0
        %3504 = vmatpush.bf16.xpose.msra.mxu0 0
        %3505 = vmatpush.bf16.xpose.msra.mxu0 0
        %3506 = vmatpush.bf16.xpose.msra.mxu0 0
        %3507 = vmatpush.bf16.xpose.msra.mxu0 %v1929
        %3508 = vmatpush.bf16.xpose.msra.mxu0 %v1809
        %3509 = vmatmul.bf16.gmra.mxu0 %v728
        %v3510 = vpop.f32.mrf.mxu0
        %v3511 = vadd.f32 %v3498, %v3510
        %v3512 = vpop.f32.mrf.mxu0
        %3513 = vdwg.mxu0
        %3514 = vmatpush.bf16.xpose.msra.mxu0 0
        %3515 = vmatpush.bf16.xpose.msra.mxu0 0
        %3516 = vmatpush.bf16.xpose.msra.mxu0 0
        %3517 = vmatpush.bf16.xpose.msra.mxu0 0
        %3518 = vmatpush.bf16.xpose.msra.mxu0 0
        %3519 = vmatpush.bf16.xpose.msra.mxu0 0
        %3520 = vmatpush.bf16.xpose.msra.mxu0 %v1930
        %3521 = vmatpush.bf16.xpose.msra.mxu0 %v1810
        %3522 = vmatmul.bf16.gmra.mxu0 %v729
        %v3523 = vpop.f32.mrf.mxu0
        %v3524 = vadd.f32 %v3511, %v3523
        %v3525 = vpop.f32.mrf.mxu0
        %3526 = vdwg.mxu0
        %3527 = vmatpush.bf16.xpose.msra.mxu0 0
        %3528 = vmatpush.bf16.xpose.msra.mxu0 0
        %3529 = vmatpush.bf16.xpose.msra.mxu0 0
        %3530 = vmatpush.bf16.xpose.msra.mxu0 0
        %3531 = vmatpush.bf16.xpose.msra.mxu0 0
        %3532 = vmatpush.bf16.xpose.msra.mxu0 0
        %3533 = vmatpush.bf16.xpose.msra.mxu0 %v1931
        %3534 = vmatpush.bf16.xpose.msra.mxu0 %v1811
        %3535 = vmatmul.bf16.gmra.mxu0 %v730
        %v3536 = vpop.f32.mrf.mxu0
        %v3537 = vadd.f32 %v3524, %v3536
        %v3538 = vpop.f32.mrf.mxu0
        %3539 = vdwg.mxu0
        %3540 = vmatpush.bf16.xpose.msra.mxu0 0
        %3541 = vmatpush.bf16.xpose.msra.mxu0 0
        %3542 = vmatpush.bf16.xpose.msra.mxu0 0
        %3543 = vmatpush.bf16.xpose.msra.mxu0 0
        %3544 = vmatpush.bf16.xpose.msra.mxu0 0
        %3545 = vmatpush.bf16.xpose.msra.mxu0 0
        %3546 = vmatpush.bf16.xpose.msra.mxu0 %v1932
        %3547 = vmatpush.bf16.xpose.msra.mxu0 %v1812
        %3548 = vmatmul.bf16.gmra.mxu0 %v731
        %v3549 = vpop.f32.mrf.mxu0
        %v3550 = vadd.f32 %v3537, %v3549
        %v3551 = vpop.f32.mrf.mxu0
        %3552 = vdwg.mxu0
        %3553 = vmatpush.bf16.xpose.msra.mxu0 0
        %3554 = vmatpush.bf16.xpose.msra.mxu0 0
        %3555 = vmatpush.bf16.xpose.msra.mxu0 0
        %3556 = vmatpush.bf16.xpose.msra.mxu0 0
        %3557 = vmatpush.bf16.xpose.msra.mxu0 0
        %3558 = vmatpush.bf16.xpose.msra.mxu0 0
        %3559 = vmatpush.bf16.xpose.msra.mxu0 %v1933
        %3560 = vmatpush.bf16.xpose.msra.mxu0 %v1813
        %3561 = vmatmul.bf16.gmra.mxu0 %v732
        %v3562 = vpop.f32.mrf.mxu0
        %v3563 = vadd.f32 %v3550, %v3562
        %v3564 = vpop.f32.mrf.mxu0
        %3565 = vdwg.mxu0
        %3566 = vmatpush.bf16.xpose.msra.mxu0 0
        %3567 = vmatpush.bf16.xpose.msra.mxu0 0
        %3568 = vmatpush.bf16.xpose.msra.mxu0 0
        %3569 = vmatpush.bf16.xpose.msra.mxu0 0
        %3570 = vmatpush.bf16.xpose.msra.mxu0 0
        %3571 = vmatpush.bf16.xpose.msra.mxu0 0
        %3572 = vmatpush.bf16.xpose.msra.mxu0 %v1934
        %3573 = vmatpush.bf16.xpose.msra.mxu0 %v1814
        %3574 = vmatmul.bf16.gmra.mxu0 %v733
        %v3575 = vpop.f32.mrf.mxu0
        %v3576 = vadd.f32 %v3563, %v3575
        %v3577 = vpop.f32.mrf.mxu0
        %3578 = vdwg.mxu0
        %3579 = vmatpush.bf16.xpose.msra.mxu0 0
        %3580 = vmatpush.bf16.xpose.msra.mxu0 0
        %3581 = vmatpush.bf16.xpose.msra.mxu0 0
        %3582 = vmatpush.bf16.xpose.msra.mxu0 0
        %3583 = vmatpush.bf16.xpose.msra.mxu0 0
        %3584 = vmatpush.bf16.xpose.msra.mxu0 0
        %3585 = vmatpush.bf16.xpose.msra.mxu0 %v1935
        %3586 = vmatpush.bf16.xpose.msra.mxu0 %v1815
        %3587 = vmatmul.bf16.gmra.mxu0 %v734
        %v3588 = vpop.f32.mrf.mxu0
        %v3589 = vadd.f32 %v3576, %v3588
        %v3590 = vpop.f32.mrf.mxu0
        %3591 = vdwg.mxu0
        %3592 = vmatpush.bf16.xpose.msra.mxu0 0
        %3593 = vmatpush.bf16.xpose.msra.mxu0 0
        %3594 = vmatpush.bf16.xpose.msra.mxu0 0
        %3595 = vmatpush.bf16.xpose.msra.mxu0 0
        %3596 = vmatpush.bf16.xpose.msra.mxu0 0
        %3597 = vmatpush.bf16.xpose.msra.mxu0 0
        %3598 = vmatpush.bf16.xpose.msra.mxu0 %v1936
        %3599 = vmatpush.bf16.xpose.msra.mxu0 %v1816
        %3600 = vmatmul.bf16.gmra.mxu0 %v735
        %v3601 = vpop.f32.mrf.mxu0
        %v3602 = vadd.f32 %v3589, %v3601
        %v3603 = vpop.f32.mrf.mxu0
        %3604 = vdwg.mxu0
        %3605 = vmatpush.bf16.xpose.msra.mxu0 0
        %3606 = vmatpush.bf16.xpose.msra.mxu0 0
        %3607 = vmatpush.bf16.xpose.msra.mxu0 0
        %3608 = vmatpush.bf16.xpose.msra.mxu0 0
        %3609 = vmatpush.bf16.xpose.msra.mxu0 0
        %3610 = vmatpush.bf16.xpose.msra.mxu0 0
        %3611 = vmatpush.bf16.xpose.msra.mxu0 %v1937
        %3612 = vmatpush.bf16.xpose.msra.mxu0 %v1817
        %3613 = vmatmul.bf16.gmra.mxu0 %v736
        %v3614 = vpop.f32.mrf.mxu0
        %v3615 = vadd.f32 %v3602, %v3614
        %v3616 = vpop.f32.mrf.mxu0
        %3617 = vdwg.mxu0
        %3618 = vmatpush.bf16.xpose.msra.mxu0 0
        %3619 = vmatpush.bf16.xpose.msra.mxu0 0
        %3620 = vmatpush.bf16.xpose.msra.mxu0 0
        %3621 = vmatpush.bf16.xpose.msra.mxu0 0
        %3622 = vmatpush.bf16.xpose.msra.mxu0 0
        %3623 = vmatpush.bf16.xpose.msra.mxu0 0
        %3624 = vmatpush.bf16.xpose.msra.mxu0 %v1938
        %3625 = vmatpush.bf16.xpose.msra.mxu0 %v1818
        %3626 = vmatmul.bf16.gmra.mxu0 %v737
        %v3627 = vpop.f32.mrf.mxu0
        %v3628 = vadd.f32 %v3615, %v3627
        %v3629 = vpop.f32.mrf.mxu0
        %3630 = vdwg.mxu0
        %3631 = vmatpush.bf16.xpose.msra.mxu0 0
        %3632 = vmatpush.bf16.xpose.msra.mxu0 0
        %3633 = vmatpush.bf16.xpose.msra.mxu0 0
        %3634 = vmatpush.bf16.xpose.msra.mxu0 0
        %3635 = vmatpush.bf16.xpose.msra.mxu0 0
        %3636 = vmatpush.bf16.xpose.msra.mxu0 0
        %3637 = vmatpush.bf16.xpose.msra.mxu0 %v1939
        %3638 = vmatpush.bf16.xpose.msra.mxu0 %v1819
        %3639 = vmatmul.bf16.gmra.mxu0 %v738
        %v3640 = vpop.f32.mrf.mxu0
        %v3641 = vadd.f32 %v3628, %v3640
        %v3642 = vpop.f32.mrf.mxu0
        %3643 = vdwg.mxu0
        %3644 = vmatpush.bf16.xpose.msra.mxu0 0
        %3645 = vmatpush.bf16.xpose.msra.mxu0 0
        %3646 = vmatpush.bf16.xpose.msra.mxu0 0
        %3647 = vmatpush.bf16.xpose.msra.mxu0 0
        %3648 = vmatpush.bf16.xpose.msra.mxu0 0
        %3649 = vmatpush.bf16.xpose.msra.mxu0 0
        %3650 = vmatpush.bf16.xpose.msra.mxu0 %v1940
        %3651 = vmatpush.bf16.xpose.msra.mxu0 %v1820
        %3652 = vmatmul.bf16.gmra.mxu0 %v739
        %v3653 = vpop.f32.mrf.mxu0
        %v3654 = vadd.f32 %v3641, %v3653
        %v3655 = vpop.f32.mrf.mxu0
        %3656 = vdwg.mxu0
        %3657 = vmatpush.bf16.xpose.msra.mxu0 0
        %3658 = vmatpush.bf16.xpose.msra.mxu0 0
        %3659 = vmatpush.bf16.xpose.msra.mxu0 0
        %3660 = vmatpush.bf16.xpose.msra.mxu0 0
        %3661 = vmatpush.bf16.xpose.msra.mxu0 0
        %3662 = vmatpush.bf16.xpose.msra.mxu0 0
        %3663 = vmatpush.bf16.xpose.msra.mxu0 %v1941
        %3664 = vmatpush.bf16.xpose.msra.mxu0 %v1821
        %3665 = vmatmul.bf16.gmra.mxu0 %v740
        %v3666 = vpop.f32.mrf.mxu0
        %v3667 = vadd.f32 %v3654, %v3666
        %v3668 = vpop.f32.mrf.mxu0
        %3669 = vdwg.mxu0
        %3670 = vmatpush.bf16.xpose.msra.mxu0 0
        %3671 = vmatpush.bf16.xpose.msra.mxu0 0
        %3672 = vmatpush.bf16.xpose.msra.mxu0 0
        %3673 = vmatpush.bf16.xpose.msra.mxu0 0
        %3674 = vmatpush.bf16.xpose.msra.mxu0 0
        %3675 = vmatpush.bf16.xpose.msra.mxu0 0
        %3676 = vmatpush.bf16.xpose.msra.mxu0 %v1942
        %3677 = vmatpush.bf16.xpose.msra.mxu0 %v1822
        %3678 = vmatmul.bf16.gmra.mxu0 %v741
        %v3679 = vpop.f32.mrf.mxu0
        %v3680 = vadd.f32 %v3667, %v3679
        %v3681 = vpop.f32.mrf.mxu0
        %3682 = vdwg.mxu0
        %3683 = vmatpush.bf16.xpose.msra.mxu0 0
        %3684 = vmatpush.bf16.xpose.msra.mxu0 0
        %3685 = vmatpush.bf16.xpose.msra.mxu0 0
        %3686 = vmatpush.bf16.xpose.msra.mxu0 0
        %3687 = vmatpush.bf16.xpose.msra.mxu0 0
        %3688 = vmatpush.bf16.xpose.msra.mxu0 0
        %3689 = vmatpush.bf16.xpose.msra.mxu0 %v1943
        %3690 = vmatpush.bf16.xpose.msra.mxu0 %v1823
        %3691 = vmatmul.bf16.gmra.mxu0 %v742
        %v3692 = vpop.f32.mrf.mxu0
        %v3693 = vadd.f32 %v3680, %v3692
        %v3694 = vpop.f32.mrf.mxu0
        %3695 = vdwg.mxu0
        %3696 = vmatpush.bf16.xpose.msra.mxu0 0
        %3697 = vmatpush.bf16.xpose.msra.mxu0 0
        %3698 = vmatpush.bf16.xpose.msra.mxu0 0
        %3699 = vmatpush.bf16.xpose.msra.mxu0 0
        %3700 = vmatpush.bf16.xpose.msra.mxu0 0
        %3701 = vmatpush.bf16.xpose.msra.mxu0 0
        %3702 = vmatpush.bf16.xpose.msra.mxu0 %v1944
        %3703 = vmatpush.bf16.xpose.msra.mxu0 %v1824
        %3704 = vmatmul.bf16.gmra.mxu0 %v743
        %v3705 = vpop.f32.mrf.mxu0
        %v3706 = vadd.f32 %v3693, %v3705
        %v3707 = vpop.f32.mrf.mxu0
        %3708 = vdwg.mxu0
        %3709 = vmatpush.bf16.xpose.msra.mxu0 0
        %3710 = vmatpush.bf16.xpose.msra.mxu0 0
        %3711 = vmatpush.bf16.xpose.msra.mxu0 0
        %3712 = vmatpush.bf16.xpose.msra.mxu0 0
        %3713 = vmatpush.bf16.xpose.msra.mxu0 0
        %3714 = vmatpush.bf16.xpose.msra.mxu0 0
        %3715 = vmatpush.bf16.xpose.msra.mxu0 %v1945
        %3716 = vmatpush.bf16.xpose.msra.mxu0 %v1825
        %3717 = vmatmul.bf16.gmra.mxu0 %v744
        %v3718 = vpop.f32.mrf.mxu0
        %v3719 = vadd.f32 %v3706, %v3718
        %v3720 = vpop.f32.mrf.mxu0
        %3721 = vdwg.mxu0
        %3722 = vmatpush.bf16.xpose.msra.mxu0 0
        %3723 = vmatpush.bf16.xpose.msra.mxu0 0
        %3724 = vmatpush.bf16.xpose.msra.mxu0 0
        %3725 = vmatpush.bf16.xpose.msra.mxu0 0
        %3726 = vmatpush.bf16.xpose.msra.mxu0 0
        %3727 = vmatpush.bf16.xpose.msra.mxu0 0
        %3728 = vmatpush.bf16.xpose.msra.mxu0 %v1946
        %3729 = vmatpush.bf16.xpose.msra.mxu0 %v1826
        %3730 = vmatmul.bf16.gmra.mxu0 %v745
        %v3731 = vpop.f32.mrf.mxu0
        %v3732 = vadd.f32 %v3719, %v3731
        %v3733 = vpop.f32.mrf.mxu0
        %3734 = vdwg.mxu0
        %3735 = vmatpush.bf16.xpose.msra.mxu0 0
        %3736 = vmatpush.bf16.xpose.msra.mxu0 0
        %3737 = vmatpush.bf16.xpose.msra.mxu0 0
        %3738 = vmatpush.bf16.xpose.msra.mxu0 0
        %3739 = vmatpush.bf16.xpose.msra.mxu0 0
        %3740 = vmatpush.bf16.xpose.msra.mxu0 0
        %3741 = vmatpush.bf16.xpose.msra.mxu0 %v1947
        %3742 = vmatpush.bf16.xpose.msra.mxu0 %v1827
        %3743 = vmatmul.bf16.gmra.mxu0 %v746
        %v3744 = vpop.f32.mrf.mxu0
        %v3745 = vadd.f32 %v3732, %v3744
        %v3746 = vpop.f32.mrf.mxu0
        %3747 = vdwg.mxu0
        %v3748 = vadd.f32 %v747, %v3745
        %vm3749 = vcmask 261120
        %3750 = vst.msk [vmem:[#allocation2] sm:$0xff] %vm3749, %v3748
        %p3751 = scmp.eq.s32.totalorder %s24, 1
        // Predicated region
        $region65: #{tpu_custom_call.1} parent=39 // pred_check
          %p3752 = pneg %p3751
        $region66: #{tpu_custom_call.1} parent=39 // pred_check_branch
          %3754 = sbr.rel (%p3752) target = $region68
        $region67: #{tpu_custom_call.1} parent=39 // pred_region
          %v3755 = vld [vmem:[#allocation2] sm:$0xff]
          %v3756 = vld [vmem:[#allocation8] sm:$0x1]
          %v3758 = vperm.slane %v3756, 0
          %v3760 = vadd.f32 %v3755, %v3758
          %v3761 = vmax.f32 %v3760, 0.0
          %v3762 = vld [vmem:[#allocation9] sm:$0xff]
          %v3763 = vld [vmem:[#allocation9 + $0x8] sm:$0xff]
          %v3764 = vld [vmem:[#allocation9 + $0x10] sm:$0xff]
          %v3765 = vld [vmem:[#allocation9 + $0x18] sm:$0xff]
          %v3766 = vld [vmem:[#allocation11] sm:$0x1]
          %v3768 = vperm.slane %v3766, 0
          %v3771 = vsel %vm3749, %v3761, 0
          %3773 = vmatpush.msra.mxu0 0.0
          %3774 = vmatpush.msra.mxu0 0.0
          %3775 = vmatpush.msra.mxu0 0.0
          %3776 = vmatpush.msra.mxu0 0.0
          %3777 = vmatpush.msra.mxu0 0.0
          %3778 = vmatpush.msra.mxu0 0.0
          %3779 = vmatpush.msra.mxu0 0.0
          %3780 = vmatpush.msra.mxu0 0.0
          %3781 = vmatpush.msra.mxu0 0.0
          %3782 = vmatpush.msra.mxu0 0.0
          %3783 = vmatpush.msra.mxu0 0.0
          %3784 = vmatpush.msra.mxu0 0.0
          %3785 = vmatpush.msra.mxu0 %v3765
          %3786 = vmatpush.msra.mxu0 %v3764
          %3787 = vmatpush.msra.mxu0 %v3763
          %3788 = vmatpush.msra.mxu0 %v3762
          %3789 = vmatmul.f32.gmra.mxu0 %v3771
          %v3790 = vpop.f32.mrf.mxu0
          %v3791 = vadd.f32 %v3768, %v3790
          %3792 = vdwg.mxu0
          %3793 = vst [vmem:[#allocation12] sm:$0xff] %v3791
        $region68: #{tpu_custom_call.1} parent=39 // pred_fallthru
          _
        // Predicated region
        $region69: #{tpu_custom_call.1} parent=39 // pred_check
          %p3794 = pneg %p152
        $region70: #{tpu_custom_call.1} parent=39 // pred_check_branch
          %3796 = sbr.rel (%p3794) target = $region72
        $region71: #{tpu_custom_call.1} parent=39 // pred_region
          %3798 = vsyncadd [#allocation5], 0
          %s3800 = sshll.u32 [#allocation12], 4
          %s3801 = int_to_ptr.vmem [resolvable:$true] %s3800
          %s3802 = sshll.u32 %s5, 4
          %s3803 = int_to_ptr.hbm [resolvable:$true] %s3802
          %3805 = dma.vmem_to_hbm [thread:$0]  %s3801, 128, %s3803, [#allocation5]
        $region72: #{tpu_custom_call.1} parent=39 // pred_fallthru
          _
        // Predicated region
        $region73: #{tpu_custom_call.1} parent=39 // pred_check
          %p3806 = pneg %p152
        $region74: #{tpu_custom_call.1} parent=39 // pred_check_branch
          %3808 = sbr.rel (%p3806) target = $region76
        $region75: #{tpu_custom_call.1} parent=39 // pred_region
          %3810 = dma.done [#allocation5], 128
        $region76: #{tpu_custom_call.1} parent=39 // pred_fallthru
          _
      $region40: #{tpu_custom_call.1} parent=5 // pred_fallthru
        _
      %p3811 = scmp.le.s32.totalorder 2, %s19
      // Predicated region
      $region77: #{tpu_custom_call.1} parent=5 // pred_check
        %p3812 = pneg %p3811
      $region78: #{tpu_custom_call.1} parent=5 // pred_check_branch
        %3814 = sbr.rel (%p3812) target = $region80
      $region79: #{tpu_custom_call.1} parent=5 // pred_region
        %s3815 = ssub.s32 %s19, 2
      $region80: #{tpu_custom_call.1} parent=5 // pred_fallthru
        _
    $region6: #{tpu_custom_call.1} parent=1 // loop_footer
      %s23 = sadd.s32 1, %s19
    $region7: #{tpu_custom_call.1} parent=1 // loop_footer_branch
      %18 = sbr.rel target = $region3
    $region8: #{tpu_custom_call.1} parent=1 // loop_exit
      _
    %3816 = vsyncpa [#allocation4], 1
    %s3817 = scalar_lea.sflag [#allocation4], 1
    %3818 = vsyncpa %s3817, 1
    %3819 = vsyncpa [#allocation7], 1
    %s3820 = scalar_lea.sflag [#allocation7], 1
    %3821 = vsyncpa %s3820, 1
    %3822 = vsyncpa [#allocation10], 1
    %3823 = vsyncpa [#allocation5], 1
    %s3824 = scalar_lea.sflag [#allocation5], 1
    %3825 = vsyncpa %s3824, 1

</llo_original>
